<compile_context>
chip_gen: v7x
topology: tpu7x:2x2x1
jax: 0.10.0
libtpu: 0.0.40
codegen_flags: <defaults>
</compile_context>

<pallas_src>
import functools
import math

import jax
import jax.numpy as jnp
from jax.experimental import pallas as pl
from jax.experimental.pallas import tpu as pltpu

PAD_IDX = 0
EOS_IDX = 1
NEG_INF = -1e30


# ----------------------------- fused Pallas kernel -----------------------------

def _layernorm(v, g, b, eps):
    mu = jnp.mean(v, axis=-1, keepdims=True)
    var = jnp.mean(jnp.square(v - mu), axis=-1, keepdims=True)
    return (v - mu) * jax.lax.rsqrt(var + eps) * g + b


def _fused_forward_kernel(
        # inputs
        x_ref, sel_ref, base_ref, bias_ref,
        lin_w_ref, lin_b_ref,
        wqkv_ref, bqkv_ref, wo_ref, bo_ref,
        w1_ref, b1_ref, w2_ref, b2_ref,
        g1_ref, be1_ref, g2_ref, be2_ref,
        vw_ref, vb_ref,
        # output
        out_ref,
        # scratch
        attn_ref,
        *, B, T, D, H, hd, L, scale, eps):
    # ---- input projection: xv = linear(dropout(x)); dropout == identity ----
    xv = jnp.dot(x_ref[...], lin_w_ref[...],
                 preferred_element_type=jnp.float32) + lin_b_ref[...]        # (B, D)

    # ---- activation slab (batch-major, row b*T + t) ----
    # base already holds [0, emb(tok_0), ..., emb(tok_{S-1})] + positional enc;
    # the one-hot selection matmul drops xv[b] into row b*T (no scatter stores).
    h = base_ref[...] + jnp.dot(sel_ref[...], xv,
                                preferred_element_type=jnp.float32)         # (B*T, D)

    # ---- post-norm TransformerEncoder layers ----
    for li in range(L):
        # --- multi-head self attention ---
        qkv = jnp.dot(h, wqkv_ref[li],
                      preferred_element_type=jnp.float32) + bqkv_ref[li]     # (B*T, 3D)
        q = qkv[:, :D] * scale          # fold 1/sqrt(hd) once, not per score tile
        k = qkv[:, D:2 * D]
        v = qkv[:, 2 * D:3 * D]

        for b in range(B):
            bias_b = bias_ref[b]                                             # (T, T)
            qb = q[b * T:(b + 1) * T, :]
            kb = k[b * T:(b + 1) * T, :]
            vb = v[b * T:(b + 1) * T, :]
            for hh in range(H):
                qh = qb[:, hh * hd:(hh + 1) * hd]
                kh = kb[:, hh * hd:(hh + 1) * hd]
                vh = vb[:, hh * hd:(hh + 1) * hd]
                # scores = (q * scale) @ k^T + (causal + key-padding) bias
                s = jax.lax.dot_general(qh, kh, (((1,), (1,)), ((), ())),
                                        preferred_element_type=jnp.float32)
                s = s + bias_b
                m = jnp.max(s, axis=-1, keepdims=True)
                p = jnp.exp(s - m)
                l = jnp.sum(p, axis=-1, keepdims=True)   # >= 1: diagonal always visible
                o = jnp.dot(p, vh, preferred_element_type=jnp.float32)
                o = o * pl.reciprocal(l, approx=True)
                attn_ref[b * T:(b + 1) * T, hh * hd:(hh + 1) * hd] = o

        attn_out = jnp.dot(attn_ref[...], wo_ref[li],
                           preferred_element_type=jnp.float32) + bo_ref[li]
        h = _layernorm(h + attn_out, g1_ref[li], be1_ref[li], eps)

        # --- feed forward (ReLU, dim_feedforward = 2*D) ---
        ff = jnp.maximum(
            jnp.dot(h, w1_ref[li], preferred_element_type=jnp.float32) + b1_ref[li],
            0.0)
        ff = jnp.dot(ff, w2_ref[li],
                     preferred_element_type=jnp.float32) + b2_ref[li]
        h = _layernorm(h + ff, g2_ref[li], be2_ref[li], eps)

    # ---- vocab projection (lane-dense: padded to a multiple of 128) ----
    out_ref[...] = (jnp.dot(h, vw_ref[...], preferred_element_type=jnp.float32)
                    + vb_ref[...]).astype(out_ref.dtype)


def _full_spec(shape):
    zeros = (0,) * len(shape)
    return pl.BlockSpec(shape, lambda i, _z=zeros: _z)


# ------------------------------ glue / params ------------------------------

def positional_encoding(T, d):
    pos = jnp.arange(T, dtype=jnp.float32)[:, None]
    div = jnp.exp(jnp.arange(0, d, 2, dtype=jnp.float32) * (-math.log(10000.0) / d))
    pe = jnp.zeros((T, d), dtype=jnp.float32)
    pe = pe.at[:, 0::2].set(jnp.sin(pos * div))
    pe = pe.at[:, 1::2].set(jnp.cos(pos * div))
    return pe  # (T, d)


def init_params(key, vocab_size, dim_in, dim_out, n_layers):
    D = dim_out
    keys = jax.random.split(key, 3 + n_layers)

    def dense(k, fan_in, fan_out):
        k1, k2 = jax.random.split(k)
        lim = 1.0 / math.sqrt(fan_in)
        w = jax.random.uniform(k1, (fan_in, fan_out), minval=-lim, maxval=lim,
                               dtype=jnp.float32)
        b = jax.random.uniform(k2, (fan_out,), minval=-lim, maxval=lim,
                               dtype=jnp.float32)
        return w, b

    params = {}
    params['linear_w'], params['linear_b'] = dense(keys[0], dim_in, D)
    emb = jax.random.normal(keys[1], (vocab_size, D), dtype=jnp.float32)
    params['embedding'] = emb.at[PAD_IDX].set(0.0)   # nn.Embedding padding_idx row = 0
    params['vproj_w'], params['vproj_b'] = dense(keys[2], D, vocab_size)

    wqkv, bqkv, wo, bo, w1, b1, w2, b2 = ([] for _ in range(8))
    for li in range(n_layers):
        lk = jax.random.split(keys[3 + li], 4)
        a, b = dense(lk[0], D, 3 * D); wqkv.append(a); bqkv.append(b)
        a, b = dense(lk[1], D, D);     wo.append(a);   bo.append(b)
        a, b = dense(lk[2], D, 2 * D); w1.append(a);   b1.append(b)
        a, b = dense(lk[3], 2 * D, D); w2.append(a);   b2.append(b)

    params['wqkv'] = jnp.stack(wqkv); params['bqkv'] = jnp.stack(bqkv)
    params['wo'] = jnp.stack(wo);     params['bo'] = jnp.stack(bo)
    params['w1'] = jnp.stack(w1);     params['b1'] = jnp.stack(b1)
    params['w2'] = jnp.stack(w2);     params['b2'] = jnp.stack(b2)
    params['g1'] = jnp.ones((n_layers, D), jnp.float32)
    params['be1'] = jnp.zeros((n_layers, D), jnp.float32)
    params['g2'] = jnp.ones((n_layers, D), jnp.float32)
    params['be2'] = jnp.zeros((n_layers, D), jnp.float32)
    return params


def forward(params, x, input_sequence, n_heads):
    """x: (B, dim_in) f32, input_sequence: (S, B) int32 -> (S+1, B, vocab) f32."""
    B, _ = x.shape
    S = input_sequence.shape[0]
    D = params['linear_w'].shape[1]
    V = params['vproj_w'].shape[1]
    L = params['wqkv'].shape[0]
    T = S + 1
    H = n_heads
    hd = D // H
    scale = 1.0 / math.sqrt(hd)
    Vpad = ((V + 127) // 128) * 128

    # XLA glue (all fused under jit):
    #   base  : (B*T, D) batch-major slab = [0, emb(tok_0..S-1)] + positional enc
    #   sel   : (B*T, B) one-hot; sel @ xv places the projected vector at row b*T
    #   bias  : (B, T, T) additive attention bias (causal + key padding)
    embs = jnp.take(params['embedding'], input_sequence.T, axis=0)       # (B, S, D)
    slab = jnp.concatenate([jnp.zeros((B, 1, D), jnp.float32), embs], axis=1)
    base = slab.reshape(B * T, D) + jnp.tile(positional_encoding(T, D), (B, 1))

    sel = jnp.zeros((B * T, B), jnp.float32)
    sel = sel.at[jnp.arange(B) * T, jnp.arange(B)].set(1.0)

    causal = jnp.tril(jnp.ones((T, T), dtype=bool))                      # (T, T)
    keypad = jnp.concatenate(
        [jnp.zeros((1, B), dtype=bool), input_sequence == PAD_IDX], axis=0).T  # (B, T)
    allowed = causal[None, :, :] & (~keypad[:, None, :])                 # (B, T, T)
    bias = jnp.where(allowed, 0.0, NEG_INF).astype(jnp.float32)

    vw_pad = jnp.pad(params['vproj_w'], ((0, 0), (0, Vpad - V)))
    vb_pad = jnp.pad(params['vproj_b'], ((0, Vpad - V),)).reshape(1, Vpad)

    inputs = (
        x.astype(jnp.float32), sel, base, bias,
        params['linear_w'], params['linear_b'].reshape(1, D),
        params['wqkv'], params['bqkv'].reshape(L, 1, 3 * D),
        params['wo'], params['bo'].reshape(L, 1, D),
        params['w1'], params['b1'].reshape(L, 1, 2 * D),
        params['w2'], params['b2'].reshape(L, 1, D),
        params['g1'].reshape(L, 1, D), params['be1'].reshape(L, 1, D),
        params['g2'].reshape(L, 1, D), params['be2'].reshape(L, 1, D),
        vw_pad, vb_pad,
    )

    kernel = functools.partial(_fused_forward_kernel, B=B, T=T, D=D, H=H, hd=hd,
                               L=L, scale=scale, eps=1e-5)

    out = pl.pallas_call(
        kernel,
        out_shape=jax.ShapeDtypeStruct((B * T, Vpad), jnp.float32),
        grid=(1,),
        in_specs=[_full_spec(a.shape) for a in inputs],
        out_specs=_full_spec((B * T, Vpad)),
        scratch_shapes=[pltpu.VMEM((B * T, D), jnp.float32)],  # attention output
        compiler_params=pltpu.CompilerParams(
            dimension_semantics=("arbitrary",)),
    )(*inputs)

    # (B*T, Vpad) -> (T, B, V) (sequence-first like nn.Transformer, batch_first=False)
    return out.reshape(B, T, Vpad)[:, :, :V].transpose(1, 0, 2)


# --------------------------- pure-JAX reference ---------------------------

def reference_forward(params, x, input_sequence, n_heads):
    B = x.shape[0]
    S = input_sequence.shape[0]
    D = params['linear_w'].shape[1]
    L = params['wqkv'].shape[0]
    T = S + 1
    H = n_heads
    hd = D // H
    scale = 1.0 / math.sqrt(hd)

    xv = x @ params['linear_w'] + params['linear_b']                    # (B, D)
    embs = jnp.take(params['embedding'], input_sequence, axis=0)        # (S, B, D)
    h = jnp.concatenate([xv[None], embs], axis=0) \
        + positional_encoding(T, D)[:, None, :]                         # (T, B, D)

    causal = jnp.tril(jnp.ones((T, T), dtype=bool))
    keypad = jnp.concatenate(
        [jnp.zeros((1, B), dtype=bool), input_sequence == PAD_IDX], axis=0).T
    allowed = causal[None, :, :] & (~keypad[:, None, :])
    bias = jnp.where(allowed, 0.0, NEG_INF)

    def ln(v, g, b):
        mu = jnp.mean(v, -1, keepdims=True)
        var = jnp.mean((v - mu) ** 2, -1, keepdims=True)
        return (v - mu) / jnp.sqrt(var + 1e-5) * g + b

    for li in range(L):
        qkv = h @ params['wqkv'][li] + params['bqkv'][li]               # (T, B, 3D)
        q, k, v = jnp.split(qkv, 3, axis=-1)

        def heads(m):
            return m.reshape(T, B, H, hd).transpose(1, 2, 0, 3)         # (B, H, T, hd)

        q, k, v = heads(q), heads(k), heads(v)
        s = jnp.einsum('bhqd,bhkd->bhqk', q, k) * scale + bias[:, None]
        p = jax.nn.softmax(s, axis=-1)
        o = jnp.einsum('bhqk,bhkd->bhqd', p, v)
        o = o.transpose(2, 0, 1, 3).reshape(T, B, D)
        attn_out = o @ params['wo'][li] + params['bo'][li]
        h = ln(h + attn_out, params['g1'][li], params['be1'][li])
        ff = jax.nn.relu(h @ params['w1'][li] + params['b1'][li]) \
            @ params['w2'][li] + params['b2'][li]
        h = ln(h + ff, params['g2'][li], params['be2'][li])

    return h @ params['vproj_w'] + params['vproj_b']                    # (T, B, V)


if __name__ == "__main__":
    vocab_size, dim_in, dim_out = 20, 48, 32
    n_layers, n_heads = 2, 4
    S, B = 8, 2

    key = jax.random.PRNGKey(0)
    kp, kx, ks = jax.random.split(key, 3)
    params = init_params(kp, vocab_size, dim_in, dim_out, n_layers)

    x = jax.random.normal(kx, (B, dim_in), dtype=jnp.float32)
    input_sequence = jax.random.randint(ks, (S, B), 2, vocab_size, dtype=jnp.int32)
    input_sequence = input_sequence.at[-2:, 1].set(PAD_IDX)  # exercise key-padding mask

    fwd = jax.jit(forward, static_argnames='n_heads')
    out = fwd(params, x, input_sequence, n_heads=n_heads)
    jax.block_until_ready(out)

    assert out.shape == (S + 1, B, vocab_size), out.shape
    assert bool(jnp.all(jnp.isfinite(out)))

    ref = reference_forward(params, x, input_sequence, n_heads)
    max_err = float(jnp.max(jnp.abs(out - ref)))
    assert jnp.allclose(out, ref, rtol=2e-2, atol=2e-2), max_err

    print("KERNEL_OK")
</pallas_src>

<mosaic_0001>
module attributes {stable_mosaic.version = 11 : i64} {
  func.func @_fused_forward_kernel(%arg0: i32, %arg1: memref<2x48xf32, #tpu.memory_space<vmem>>, %arg2: memref<18x2xf32, #tpu.memory_space<vmem>>, %arg3: memref<18x32xf32, #tpu.memory_space<vmem>>, %arg4: memref<2x9x9xf32, #tpu.memory_space<vmem>>, %arg5: memref<48x32xf32, #tpu.memory_space<vmem>>, %arg6: memref<1x32xf32, #tpu.memory_space<vmem>>, %arg7: memref<2x32x96xf32, #tpu.memory_space<vmem>>, %arg8: memref<2x1x96xf32, #tpu.memory_space<vmem>>, %arg9: memref<2x32x32xf32, #tpu.memory_space<vmem>>, %arg10: memref<2x1x32xf32, #tpu.memory_space<vmem>>, %arg11: memref<2x32x64xf32, #tpu.memory_space<vmem>>, %arg12: memref<2x1x64xf32, #tpu.memory_space<vmem>>, %arg13: memref<2x64x32xf32, #tpu.memory_space<vmem>>, %arg14: memref<2x1x32xf32, #tpu.memory_space<vmem>>, %arg15: memref<2x1x32xf32, #tpu.memory_space<vmem>>, %arg16: memref<2x1x32xf32, #tpu.memory_space<vmem>>, %arg17: memref<2x1x32xf32, #tpu.memory_space<vmem>>, %arg18: memref<2x1x32xf32, #tpu.memory_space<vmem>>, %arg19: memref<32x128xf32, #tpu.memory_space<vmem>>, %arg20: memref<1x128xf32, #tpu.memory_space<vmem>>, %arg21: memref<18x128xf32, #tpu.memory_space<vmem>>, %arg22: memref<18x32xf32, #tpu.memory_space<vmem>>) attributes {dimension_semantics = [#tpu.dimension_semantics<arbitrary>], iteration_bounds = array<i64: 1>, scalar_prefetch = 0 : i64, scratch_operands = 1 : i64, tpu.core_type = #tpu.core_type<tc>, window_params = [{pipeline_mode = #tpu.pipeline_mode<synchronous>, transform_indices = @transform_0, window_bounds = array<i64: 2, 48>}, {pipeline_mode = #tpu.pipeline_mode<synchronous>, transform_indices = @transform_1, window_bounds = array<i64: 18, 2>}, {pipeline_mode = #tpu.pipeline_mode<synchronous>, transform_indices = @transform_2, window_bounds = array<i64: 18, 32>}, {pipeline_mode = #tpu.pipeline_mode<synchronous>, transform_indices = @transform_3, window_bounds = array<i64: 2, 9, 9>}, {pipeline_mode = #tpu.pipeline_mode<synchronous>, transform_indices = @transform_4, window_bounds = array<i64: 48, 32>}, {pipeline_mode = #tpu.pipeline_mode<synchronous>, transform_indices = @transform_5, window_bounds = array<i64: 1, 32>}, {pipeline_mode = #tpu.pipeline_mode<synchronous>, transform_indices = @transform_6, window_bounds = array<i64: 2, 32, 96>}, {pipeline_mode = #tpu.pipeline_mode<synchronous>, transform_indices = @transform_7, window_bounds = array<i64: 2, 1, 96>}, {pipeline_mode = #tpu.pipeline_mode<synchronous>, transform_indices = @transform_8, window_bounds = array<i64: 2, 32, 32>}, {pipeline_mode = #tpu.pipeline_mode<synchronous>, transform_indices = @transform_9, window_bounds = array<i64: 2, 1, 32>}, {pipeline_mode = #tpu.pipeline_mode<synchronous>, transform_indices = @transform_10, window_bounds = array<i64: 2, 32, 64>}, {pipeline_mode = #tpu.pipeline_mode<synchronous>, transform_indices = @transform_11, window_bounds = array<i64: 2, 1, 64>}, {pipeline_mode = #tpu.pipeline_mode<synchronous>, transform_indices = @transform_12, window_bounds = array<i64: 2, 64, 32>}, {pipeline_mode = #tpu.pipeline_mode<synchronous>, transform_indices = @transform_13, window_bounds = array<i64: 2, 1, 32>}, {pipeline_mode = #tpu.pipeline_mode<synchronous>, transform_indices = @transform_14, window_bounds = array<i64: 2, 1, 32>}, {pipeline_mode = #tpu.pipeline_mode<synchronous>, transform_indices = @transform_15, window_bounds = array<i64: 2, 1, 32>}, {pipeline_mode = #tpu.pipeline_mode<synchronous>, transform_indices = @transform_16, window_bounds = array<i64: 2, 1, 32>}, {pipeline_mode = #tpu.pipeline_mode<synchronous>, transform_indices = @transform_17, window_bounds = array<i64: 2, 1, 32>}, {pipeline_mode = #tpu.pipeline_mode<synchronous>, transform_indices = @transform_18, window_bounds = array<i64: 32, 128>}, {pipeline_mode = #tpu.pipeline_mode<synchronous>, transform_indices = @transform_19, window_bounds = array<i64: 1, 128>}, {pipeline_mode = #tpu.pipeline_mode<synchronous>, transform_indices = @transform_20, window_bounds = array<i64: 18, 128>}]} {
    %c0 = arith.constant 0 : index
    %c0_0 = arith.constant 0 : index
    %0 = vector.load %arg1[%c0, %c0_0] : memref<2x48xf32, #tpu.memory_space<vmem>>, vector<2x48xf32>
    %c0_1 = arith.constant 0 : index
    %c0_2 = arith.constant 0 : index
    %1 = vector.load %arg5[%c0_1, %c0_2] : memref<48x32xf32, #tpu.memory_space<vmem>>, vector<48x32xf32>
    %cst = arith.constant dense<0.000000e+00> : vector<2x32xf32>
    %2 = tpu.matmul %0, %1, %cst {dimension_numbers = #tpu.dot_dimension_numbers<[1], [0], [0], [1], [0, 0, 1, 1], [], []>} : vector<2x48xf32>, vector<48x32xf32>, vector<2x32xf32> -> vector<2x32xf32>
    %c0_3 = arith.constant 0 : index
    %c0_4 = arith.constant 0 : index
    %3 = vector.load %arg6[%c0_3, %c0_4] : memref<1x32xf32, #tpu.memory_space<vmem>>, vector<1x32xf32>
    %4 = vector.broadcast %3 : vector<1x32xf32> to vector<2x32xf32>
    %5 = arith.addf %2, %4 : vector<2x32xf32>
    %c0_5 = arith.constant 0 : index
    %c0_6 = arith.constant 0 : index
    %6 = vector.load %arg3[%c0_5, %c0_6] : memref<18x32xf32, #tpu.memory_space<vmem>>, vector<18x32xf32>
    %c0_7 = arith.constant 0 : index
    %c0_8 = arith.constant 0 : index
    %7 = vector.load %arg2[%c0_7, %c0_8] : memref<18x2xf32, #tpu.memory_space<vmem>>, vector<18x2xf32>
    %cst_9 = arith.constant dense<0.000000e+00> : vector<18x32xf32>
    %8 = tpu.matmul %7, %5, %cst_9 {dimension_numbers = #tpu.dot_dimension_numbers<[1], [0], [0], [1], [0, 0, 1, 1], [], []>} : vector<18x2xf32>, vector<2x32xf32>, vector<18x32xf32> -> vector<18x32xf32>
    %9 = arith.addf %6, %8 : vector<18x32xf32>
    %c0_10 = arith.constant 0 : index
    %c0_11 = arith.constant 0 : index
    %c0_12 = arith.constant 0 : index
    %10 = vector.load %arg7[%c0_10, %c0_11, %c0_12] : memref<2x32x96xf32, #tpu.memory_space<vmem>>, vector<1x32x96xf32>
    %11 = vector.shape_cast %10 : vector<1x32x96xf32> to vector<32x96xf32>
    %cst_13 = arith.constant dense<0.000000e+00> : vector<18x96xf32>
    %12 = tpu.matmul %9, %11, %cst_13 {dimension_numbers = #tpu.dot_dimension_numbers<[1], [0], [0], [1], [0, 0, 1, 1], [], []>} : vector<18x32xf32>, vector<32x96xf32>, vector<18x96xf32> -> vector<18x96xf32>
    %c0_14 = arith.constant 0 : index
    %c0_15 = arith.constant 0 : index
    %c0_16 = arith.constant 0 : index
    %13 = vector.load %arg8[%c0_14, %c0_15, %c0_16] : memref<2x1x96xf32, #tpu.memory_space<vmem>>, vector<1x1x96xf32>
    %14 = vector.shape_cast %13 : vector<1x1x96xf32> to vector<1x96xf32>
    %15 = vector.broadcast %14 : vector<1x96xf32> to vector<18x96xf32>
    %16 = arith.addf %12, %15 : vector<18x96xf32>
    %17 = vector.extract_strided_slice %16 {offsets = [0, 0], sizes = [18, 32], strides = [1, 1]} : vector<18x96xf32> to vector<18x32xf32>
    %cst_17 = arith.constant 0.353553385 : f32
    %18 = vector.broadcast %cst_17 : f32 to vector<18x32xf32>
    %19 = arith.mulf %17, %18 : vector<18x32xf32>
    %20 = vector.extract_strided_slice %16 {offsets = [0, 32], sizes = [18, 32], strides = [1, 1]} : vector<18x96xf32> to vector<18x32xf32>
    %21 = vector.extract_strided_slice %16 {offsets = [0, 64], sizes = [18, 32], strides = [1, 1]} : vector<18x96xf32> to vector<18x32xf32>
    %c0_18 = arith.constant 0 : index
    %c0_19 = arith.constant 0 : index
    %c0_20 = arith.constant 0 : index
    %22 = vector.load %arg4[%c0_18, %c0_19, %c0_20] : memref<2x9x9xf32, #tpu.memory_space<vmem>>, vector<1x9x9xf32>
    %23 = vector.shape_cast %22 : vector<1x9x9xf32> to vector<9x9xf32>
    %24 = vector.extract_strided_slice %19 {offsets = [0, 0], sizes = [9, 32], strides = [1, 1]} : vector<18x32xf32> to vector<9x32xf32>
    %25 = vector.extract_strided_slice %20 {offsets = [0, 0], sizes = [9, 32], strides = [1, 1]} : vector<18x32xf32> to vector<9x32xf32>
    %26 = vector.extract_strided_slice %21 {offsets = [0, 0], sizes = [9, 32], strides = [1, 1]} : vector<18x32xf32> to vector<9x32xf32>
    %27 = vector.extract_strided_slice %24 {offsets = [0, 0], sizes = [9, 8], strides = [1, 1]} : vector<9x32xf32> to vector<9x8xf32>
    %28 = vector.extract_strided_slice %25 {offsets = [0, 0], sizes = [9, 8], strides = [1, 1]} : vector<9x32xf32> to vector<9x8xf32>
    %29 = vector.extract_strided_slice %26 {offsets = [0, 0], sizes = [9, 8], strides = [1, 1]} : vector<9x32xf32> to vector<9x8xf32>
    %cst_21 = arith.constant dense<0.000000e+00> : vector<9x9xf32>
    %30 = tpu.matmul %27, %28, %cst_21 {dimension_numbers = #tpu.dot_dimension_numbers<[1], [1], [0], [0], [0, 0, 1, 0], [], []>} : vector<9x8xf32>, vector<9x8xf32>, vector<9x9xf32> -> vector<9x9xf32>
    %31 = arith.addf %30, %23 : vector<9x9xf32>
    %cst_22 = arith.constant dense<0xFF800000> : vector<9xf32>
    %32 = vector.multi_reduction <maximumf>, %31, %cst_22 [1] : vector<9x9xf32> to vector<9xf32>
    %33 = vector.shape_cast %32 : vector<9xf32> to vector<9x1xf32>
    %34 = vector.broadcast %33 : vector<9x1xf32> to vector<9x9xf32>
    %35 = arith.subf %31, %34 : vector<9x9xf32>
    %36 = math.exp %35 : vector<9x9xf32>
    %cst_23 = arith.constant dense<0.000000e+00> : vector<9xf32>
    %37 = vector.multi_reduction <add>, %36, %cst_23 [1] : vector<9x9xf32> to vector<9xf32>
    %38 = vector.shape_cast %37 : vector<9xf32> to vector<9x1xf32>
    %cst_24 = arith.constant dense<0.000000e+00> : vector<9x8xf32>
    %39 = tpu.matmul %36, %29, %cst_24 {dimension_numbers = #tpu.dot_dimension_numbers<[1], [0], [0], [1], [0, 0, 1, 1], [], []>} : vector<9x9xf32>, vector<9x8xf32>, vector<9x8xf32> -> vector<9x8xf32>
    %40 = tpu.reciprocal %38 {approx = true} : vector<9x1xf32> -> vector<9x1xf32>
    %41 = vector.broadcast %40 : vector<9x1xf32> to vector<9x8xf32>
    %42 = arith.mulf %39, %41 : vector<9x8xf32>
    %c0_25 = arith.constant 0 : index
    %c0_26 = arith.constant 0 : index
    %43 = vector.load %arg22[%c0_25, %c0_26] : memref<18x32xf32, #tpu.memory_space<vmem>>, vector<9x8xf32>
    tpu.vector_store %arg22[%c0_25, %c0_26], %42 {strides = array<i32>} : memref<18x32xf32, #tpu.memory_space<vmem>>, vector<9x8xf32>,
    %44 = vector.extract_strided_slice %24 {offsets = [0, 8], sizes = [9, 8], strides = [1, 1]} : vector<9x32xf32> to vector<9x8xf32>
    %45 = vector.extract_strided_slice %25 {offsets = [0, 8], sizes = [9, 8], strides = [1, 1]} : vector<9x32xf32> to vector<9x8xf32>
    %46 = vector.extract_strided_slice %26 {offsets = [0, 8], sizes = [9, 8], strides = [1, 1]} : vector<9x32xf32> to vector<9x8xf32>
    %cst_27 = arith.constant dense<0.000000e+00> : vector<9x9xf32>
    %47 = tpu.matmul %44, %45, %cst_27 {dimension_numbers = #tpu.dot_dimension_numbers<[1], [1], [0], [0], [0, 0, 1, 0], [], []>} : vector<9x8xf32>, vector<9x8xf32>, vector<9x9xf32> -> vector<9x9xf32>
    %48 = arith.addf %47, %23 : vector<9x9xf32>
    %cst_28 = arith.constant dense<0xFF800000> : vector<9xf32>
    %49 = vector.multi_reduction <maximumf>, %48, %cst_28 [1] : vector<9x9xf32> to vector<9xf32>
    %50 = vector.shape_cast %49 : vector<9xf32> to vector<9x1xf32>
    %51 = vector.broadcast %50 : vector<9x1xf32> to vector<9x9xf32>
    %52 = arith.subf %48, %51 : vector<9x9xf32>
    %53 = math.exp %52 : vector<9x9xf32>
    %cst_29 = arith.constant dense<0.000000e+00> : vector<9xf32>
    %54 = vector.multi_reduction <add>, %53, %cst_29 [1] : vector<9x9xf32> to vector<9xf32>
    %55 = vector.shape_cast %54 : vector<9xf32> to vector<9x1xf32>
    %cst_30 = arith.constant dense<0.000000e+00> : vector<9x8xf32>
    %56 = tpu.matmul %53, %46, %cst_30 {dimension_numbers = #tpu.dot_dimension_numbers<[1], [0], [0], [1], [0, 0, 1, 1], [], []>} : vector<9x9xf32>, vector<9x8xf32>, vector<9x8xf32> -> vector<9x8xf32>
    %57 = tpu.reciprocal %55 {approx = true} : vector<9x1xf32> -> vector<9x1xf32>
    %58 = vector.broadcast %57 : vector<9x1xf32> to vector<9x8xf32>
    %59 = arith.mulf %56, %58 : vector<9x8xf32>
    %c0_31 = arith.constant 0 : index
    %c8 = arith.constant 8 : index
    %60 = vector.load %arg22[%c0_31, %c8] : memref<18x32xf32, #tpu.memory_space<vmem>>, vector<9x8xf32>
    tpu.vector_store %arg22[%c0_31, %c8], %59 {strides = array<i32>} : memref<18x32xf32, #tpu.memory_space<vmem>>, vector<9x8xf32>,
    %61 = vector.extract_strided_slice %24 {offsets = [0, 16], sizes = [9, 8], strides = [1, 1]} : vector<9x32xf32> to vector<9x8xf32>
    %62 = vector.extract_strided_slice %25 {offsets = [0, 16], sizes = [9, 8], strides = [1, 1]} : vector<9x32xf32> to vector<9x8xf32>
    %63 = vector.extract_strided_slice %26 {offsets = [0, 16], sizes = [9, 8], strides = [1, 1]} : vector<9x32xf32> to vector<9x8xf32>
    %cst_32 = arith.constant dense<0.000000e+00> : vector<9x9xf32>
    %64 = tpu.matmul %61, %62, %cst_32 {dimension_numbers = #tpu.dot_dimension_numbers<[1], [1], [0], [0], [0, 0, 1, 0], [], []>} : vector<9x8xf32>, vector<9x8xf32>, vector<9x9xf32> -> vector<9x9xf32>
    %65 = arith.addf %64, %23 : vector<9x9xf32>
    %cst_33 = arith.constant dense<0xFF800000> : vector<9xf32>
    %66 = vector.multi_reduction <maximumf>, %65, %cst_33 [1] : vector<9x9xf32> to vector<9xf32>
    %67 = vector.shape_cast %66 : vector<9xf32> to vector<9x1xf32>
    %68 = vector.broadcast %67 : vector<9x1xf32> to vector<9x9xf32>
    %69 = arith.subf %65, %68 : vector<9x9xf32>
    %70 = math.exp %69 : vector<9x9xf32>
    %cst_34 = arith.constant dense<0.000000e+00> : vector<9xf32>
    %71 = vector.multi_reduction <add>, %70, %cst_34 [1] : vector<9x9xf32> to vector<9xf32>
    %72 = vector.shape_cast %71 : vector<9xf32> to vector<9x1xf32>
    %cst_35 = arith.constant dense<0.000000e+00> : vector<9x8xf32>
    %73 = tpu.matmul %70, %63, %cst_35 {dimension_numbers = #tpu.dot_dimension_numbers<[1], [0], [0], [1], [0, 0, 1, 1], [], []>} : vector<9x9xf32>, vector<9x8xf32>, vector<9x8xf32> -> vector<9x8xf32>
    %74 = tpu.reciprocal %72 {approx = true} : vector<9x1xf32> -> vector<9x1xf32>
    %75 = vector.broadcast %74 : vector<9x1xf32> to vector<9x8xf32>
    %76 = arith.mulf %73, %75 : vector<9x8xf32>
    %c0_36 = arith.constant 0 : index
    %c16 = arith.constant 16 : index
    %77 = vector.load %arg22[%c0_36, %c16] : memref<18x32xf32, #tpu.memory_space<vmem>>, vector<9x8xf32>
    tpu.vector_store %arg22[%c0_36, %c16], %76 {strides = array<i32>} : memref<18x32xf32, #tpu.memory_space<vmem>>, vector<9x8xf32>,
    %78 = vector.extract_strided_slice %24 {offsets = [0, 24], sizes = [9, 8], strides = [1, 1]} : vector<9x32xf32> to vector<9x8xf32>
    %79 = vector.extract_strided_slice %25 {offsets = [0, 24], sizes = [9, 8], strides = [1, 1]} : vector<9x32xf32> to vector<9x8xf32>
    %80 = vector.extract_strided_slice %26 {offsets = [0, 24], sizes = [9, 8], strides = [1, 1]} : vector<9x32xf32> to vector<9x8xf32>
    %cst_37 = arith.constant dense<0.000000e+00> : vector<9x9xf32>
    %81 = tpu.matmul %78, %79, %cst_37 {dimension_numbers = #tpu.dot_dimension_numbers<[1], [1], [0], [0], [0, 0, 1, 0], [], []>} : vector<9x8xf32>, vector<9x8xf32>, vector<9x9xf32> -> vector<9x9xf32>
    %82 = arith.addf %81, %23 : vector<9x9xf32>
    %cst_38 = arith.constant dense<0xFF800000> : vector<9xf32>
    %83 = vector.multi_reduction <maximumf>, %82, %cst_38 [1] : vector<9x9xf32> to vector<9xf32>
    %84 = vector.shape_cast %83 : vector<9xf32> to vector<9x1xf32>
    %85 = vector.broadcast %84 : vector<9x1xf32> to vector<9x9xf32>
    %86 = arith.subf %82, %85 : vector<9x9xf32>
    %87 = math.exp %86 : vector<9x9xf32>
    %cst_39 = arith.constant dense<0.000000e+00> : vector<9xf32>
    %88 = vector.multi_reduction <add>, %87, %cst_39 [1] : vector<9x9xf32> to vector<9xf32>
    %89 = vector.shape_cast %88 : vector<9xf32> to vector<9x1xf32>
    %cst_40 = arith.constant dense<0.000000e+00> : vector<9x8xf32>
    %90 = tpu.matmul %87, %80, %cst_40 {dimension_numbers = #tpu.dot_dimension_numbers<[1], [0], [0], [1], [0, 0, 1, 1], [], []>} : vector<9x9xf32>, vector<9x8xf32>, vector<9x8xf32> -> vector<9x8xf32>
    %91 = tpu.reciprocal %89 {approx = true} : vector<9x1xf32> -> vector<9x1xf32>
    %92 = vector.broadcast %91 : vector<9x1xf32> to vector<9x8xf32>
    %93 = arith.mulf %90, %92 : vector<9x8xf32>
    %c0_41 = arith.constant 0 : index
    %c24 = arith.constant 24 : index
    %94 = vector.load %arg22[%c0_41, %c24] : memref<18x32xf32, #tpu.memory_space<vmem>>, vector<9x8xf32>
    tpu.vector_store %arg22[%c0_41, %c24], %93 {strides = array<i32>} : memref<18x32xf32, #tpu.memory_space<vmem>>, vector<9x8xf32>,
    %c1 = arith.constant 1 : index
    %c0_42 = arith.constant 0 : index
    %c0_43 = arith.constant 0 : index
    %95 = vector.load %arg4[%c1, %c0_42, %c0_43] : memref<2x9x9xf32, #tpu.memory_space<vmem>>, vector<1x9x9xf32>
    %96 = vector.shape_cast %95 : vector<1x9x9xf32> to vector<9x9xf32>
    %97 = vector.extract_strided_slice %19 {offsets = [9, 0], sizes = [9, 32], strides = [1, 1]} : vector<18x32xf32> to vector<9x32xf32>
    %98 = vector.extract_strided_slice %20 {offsets = [9, 0], sizes = [9, 32], strides = [1, 1]} : vector<18x32xf32> to vector<9x32xf32>
    %99 = vector.extract_strided_slice %21 {offsets = [9, 0], sizes = [9, 32], strides = [1, 1]} : vector<18x32xf32> to vector<9x32xf32>
    %100 = vector.extract_strided_slice %97 {offsets = [0, 0], sizes = [9, 8], strides = [1, 1]} : vector<9x32xf32> to vector<9x8xf32>
    %101 = vector.extract_strided_slice %98 {offsets = [0, 0], sizes = [9, 8], strides = [1, 1]} : vector<9x32xf32> to vector<9x8xf32>
    %102 = vector.extract_strided_slice %99 {offsets = [0, 0], sizes = [9, 8], strides = [1, 1]} : vector<9x32xf32> to vector<9x8xf32>
    %cst_44 = arith.constant dense<0.000000e+00> : vector<9x9xf32>
    %103 = tpu.matmul %100, %101, %cst_44 {dimension_numbers = #tpu.dot_dimension_numbers<[1], [1], [0], [0], [0, 0, 1, 0], [], []>} : vector<9x8xf32>, vector<9x8xf32>, vector<9x9xf32> -> vector<9x9xf32>
    %104 = arith.addf %103, %96 : vector<9x9xf32>
    %cst_45 = arith.constant dense<0xFF800000> : vector<9xf32>
    %105 = vector.multi_reduction <maximumf>, %104, %cst_45 [1] : vector<9x9xf32> to vector<9xf32>
    %106 = vector.shape_cast %105 : vector<9xf32> to vector<9x1xf32>
    %107 = vector.broadcast %106 : vector<9x1xf32> to vector<9x9xf32>
    %108 = arith.subf %104, %107 : vector<9x9xf32>
    %109 = math.exp %108 : vector<9x9xf32>
    %cst_46 = arith.constant dense<0.000000e+00> : vector<9xf32>
    %110 = vector.multi_reduction <add>, %109, %cst_46 [1] : vector<9x9xf32> to vector<9xf32>
    %111 = vector.shape_cast %110 : vector<9xf32> to vector<9x1xf32>
    %cst_47 = arith.constant dense<0.000000e+00> : vector<9x8xf32>
    %112 = tpu.matmul %109, %102, %cst_47 {dimension_numbers = #tpu.dot_dimension_numbers<[1], [0], [0], [1], [0, 0, 1, 1], [], []>} : vector<9x9xf32>, vector<9x8xf32>, vector<9x8xf32> -> vector<9x8xf32>
    %113 = tpu.reciprocal %111 {approx = true} : vector<9x1xf32> -> vector<9x1xf32>
    %114 = vector.broadcast %113 : vector<9x1xf32> to vector<9x8xf32>
    %115 = arith.mulf %112, %114 : vector<9x8xf32>
    %c9 = arith.constant 9 : index
    %c0_48 = arith.constant 0 : index
    %116 = vector.load %arg22[%c9, %c0_48] : memref<18x32xf32, #tpu.memory_space<vmem>>, vector<9x8xf32>
    tpu.vector_store %arg22[%c9, %c0_48], %115 {strides = array<i32>} : memref<18x32xf32, #tpu.memory_space<vmem>>, vector<9x8xf32>,
    %117 = vector.extract_strided_slice %97 {offsets = [0, 8], sizes = [9, 8], strides = [1, 1]} : vector<9x32xf32> to vector<9x8xf32>
    %118 = vector.extract_strided_slice %98 {offsets = [0, 8], sizes = [9, 8], strides = [1, 1]} : vector<9x32xf32> to vector<9x8xf32>
    %119 = vector.extract_strided_slice %99 {offsets = [0, 8], sizes = [9, 8], strides = [1, 1]} : vector<9x32xf32> to vector<9x8xf32>
    %cst_49 = arith.constant dense<0.000000e+00> : vector<9x9xf32>
    %120 = tpu.matmul %117, %118, %cst_49 {dimension_numbers = #tpu.dot_dimension_numbers<[1], [1], [0], [0], [0, 0, 1, 0], [], []>} : vector<9x8xf32>, vector<9x8xf32>, vector<9x9xf32> -> vector<9x9xf32>
    %121 = arith.addf %120, %96 : vector<9x9xf32>
    %cst_50 = arith.constant dense<0xFF800000> : vector<9xf32>
    %122 = vector.multi_reduction <maximumf>, %121, %cst_50 [1] : vector<9x9xf32> to vector<9xf32>
    %123 = vector.shape_cast %122 : vector<9xf32> to vector<9x1xf32>
    %124 = vector.broadcast %123 : vector<9x1xf32> to vector<9x9xf32>
    %125 = arith.subf %121, %124 : vector<9x9xf32>
    %126 = math.exp %125 : vector<9x9xf32>
    %cst_51 = arith.constant dense<0.000000e+00> : vector<9xf32>
    %127 = vector.multi_reduction <add>, %126, %cst_51 [1] : vector<9x9xf32> to vector<9xf32>
    %128 = vector.shape_cast %127 : vector<9xf32> to vector<9x1xf32>
    %cst_52 = arith.constant dense<0.000000e+00> : vector<9x8xf32>
    %129 = tpu.matmul %126, %119, %cst_52 {dimension_numbers = #tpu.dot_dimension_numbers<[1], [0], [0], [1], [0, 0, 1, 1], [], []>} : vector<9x9xf32>, vector<9x8xf32>, vector<9x8xf32> -> vector<9x8xf32>
    %130 = tpu.reciprocal %128 {approx = true} : vector<9x1xf32> -> vector<9x1xf32>
    %131 = vector.broadcast %130 : vector<9x1xf32> to vector<9x8xf32>
    %132 = arith.mulf %129, %131 : vector<9x8xf32>
    %c9_53 = arith.constant 9 : index
    %c8_54 = arith.constant 8 : index
    %133 = vector.load %arg22[%c9_53, %c8_54] : memref<18x32xf32, #tpu.memory_space<vmem>>, vector<9x8xf32>
    tpu.vector_store %arg22[%c9_53, %c8_54], %132 {strides = array<i32>} : memref<18x32xf32, #tpu.memory_space<vmem>>, vector<9x8xf32>,
    %134 = vector.extract_strided_slice %97 {offsets = [0, 16], sizes = [9, 8], strides = [1, 1]} : vector<9x32xf32> to vector<9x8xf32>
    %135 = vector.extract_strided_slice %98 {offsets = [0, 16], sizes = [9, 8], strides = [1, 1]} : vector<9x32xf32> to vector<9x8xf32>
    %136 = vector.extract_strided_slice %99 {offsets = [0, 16], sizes = [9, 8], strides = [1, 1]} : vector<9x32xf32> to vector<9x8xf32>
    %cst_55 = arith.constant dense<0.000000e+00> : vector<9x9xf32>
    %137 = tpu.matmul %134, %135, %cst_55 {dimension_numbers = #tpu.dot_dimension_numbers<[1], [1], [0], [0], [0, 0, 1, 0], [], []>} : vector<9x8xf32>, vector<9x8xf32>, vector<9x9xf32> -> vector<9x9xf32>
    %138 = arith.addf %137, %96 : vector<9x9xf32>
    %cst_56 = arith.constant dense<0xFF800000> : vector<9xf32>
    %139 = vector.multi_reduction <maximumf>, %138, %cst_56 [1] : vector<9x9xf32> to vector<9xf32>
    %140 = vector.shape_cast %139 : vector<9xf32> to vector<9x1xf32>
    %141 = vector.broadcast %140 : vector<9x1xf32> to vector<9x9xf32>
    %142 = arith.subf %138, %141 : vector<9x9xf32>
    %143 = math.exp %142 : vector<9x9xf32>
    %cst_57 = arith.constant dense<0.000000e+00> : vector<9xf32>
    %144 = vector.multi_reduction <add>, %143, %cst_57 [1] : vector<9x9xf32> to vector<9xf32>
    %145 = vector.shape_cast %144 : vector<9xf32> to vector<9x1xf32>
    %cst_58 = arith.constant dense<0.000000e+00> : vector<9x8xf32>
    %146 = tpu.matmul %143, %136, %cst_58 {dimension_numbers = #tpu.dot_dimension_numbers<[1], [0], [0], [1], [0, 0, 1, 1], [], []>} : vector<9x9xf32>, vector<9x8xf32>, vector<9x8xf32> -> vector<9x8xf32>
    %147 = tpu.reciprocal %145 {approx = true} : vector<9x1xf32> -> vector<9x1xf32>
    %148 = vector.broadcast %147 : vector<9x1xf32> to vector<9x8xf32>
    %149 = arith.mulf %146, %148 : vector<9x8xf32>
    %c9_59 = arith.constant 9 : index
    %c16_60 = arith.constant 16 : index
    %150 = vector.load %arg22[%c9_59, %c16_60] : memref<18x32xf32, #tpu.memory_space<vmem>>, vector<9x8xf32>
    tpu.vector_store %arg22[%c9_59, %c16_60], %149 {strides = array<i32>} : memref<18x32xf32, #tpu.memory_space<vmem>>, vector<9x8xf32>,
    %151 = vector.extract_strided_slice %97 {offsets = [0, 24], sizes = [9, 8], strides = [1, 1]} : vector<9x32xf32> to vector<9x8xf32>
    %152 = vector.extract_strided_slice %98 {offsets = [0, 24], sizes = [9, 8], strides = [1, 1]} : vector<9x32xf32> to vector<9x8xf32>
    %153 = vector.extract_strided_slice %99 {offsets = [0, 24], sizes = [9, 8], strides = [1, 1]} : vector<9x32xf32> to vector<9x8xf32>
    %cst_61 = arith.constant dense<0.000000e+00> : vector<9x9xf32>
    %154 = tpu.matmul %151, %152, %cst_61 {dimension_numbers = #tpu.dot_dimension_numbers<[1], [1], [0], [0], [0, 0, 1, 0], [], []>} : vector<9x8xf32>, vector<9x8xf32>, vector<9x9xf32> -> vector<9x9xf32>
    %155 = arith.addf %154, %96 : vector<9x9xf32>
    %cst_62 = arith.constant dense<0xFF800000> : vector<9xf32>
    %156 = vector.multi_reduction <maximumf>, %155, %cst_62 [1] : vector<9x9xf32> to vector<9xf32>
    %157 = vector.shape_cast %156 : vector<9xf32> to vector<9x1xf32>
    %158 = vector.broadcast %157 : vector<9x1xf32> to vector<9x9xf32>
    %159 = arith.subf %155, %158 : vector<9x9xf32>
    %160 = math.exp %159 : vector<9x9xf32>
    %cst_63 = arith.constant dense<0.000000e+00> : vector<9xf32>
    %161 = vector.multi_reduction <add>, %160, %cst_63 [1] : vector<9x9xf32> to vector<9xf32>
    %162 = vector.shape_cast %161 : vector<9xf32> to vector<9x1xf32>
    %cst_64 = arith.constant dense<0.000000e+00> : vector<9x8xf32>
    %163 = tpu.matmul %160, %153, %cst_64 {dimension_numbers = #tpu.dot_dimension_numbers<[1], [0], [0], [1], [0, 0, 1, 1], [], []>} : vector<9x9xf32>, vector<9x8xf32>, vector<9x8xf32> -> vector<9x8xf32>
    %164 = tpu.reciprocal %162 {approx = true} : vector<9x1xf32> -> vector<9x1xf32>
    %165 = vector.broadcast %164 : vector<9x1xf32> to vector<9x8xf32>
    %166 = arith.mulf %163, %165 : vector<9x8xf32>
    %c9_65 = arith.constant 9 : index
    %c24_66 = arith.constant 24 : index
    %167 = vector.load %arg22[%c9_65, %c24_66] : memref<18x32xf32, #tpu.memory_space<vmem>>, vector<9x8xf32>
    tpu.vector_store %arg22[%c9_65, %c24_66], %166 {strides = array<i32>} : memref<18x32xf32, #tpu.memory_space<vmem>>, vector<9x8xf32>,
    %c0_67 = arith.constant 0 : index
    %c0_68 = arith.constant 0 : index
    %168 = vector.load %arg22[%c0_67, %c0_68] : memref<18x32xf32, #tpu.memory_space<vmem>>, vector<18x32xf32>
    %c0_69 = arith.constant 0 : index
    %c0_70 = arith.constant 0 : index
    %c0_71 = arith.constant 0 : index
    %169 = vector.load %arg9[%c0_69, %c0_70, %c0_71] : memref<2x32x32xf32, #tpu.memory_space<vmem>>, vector<1x32x32xf32>
    %170 = vector.shape_cast %169 : vector<1x32x32xf32> to vector<32x32xf32>
    %cst_72 = arith.constant dense<0.000000e+00> : vector<18x32xf32>
    %171 = tpu.matmul %168, %170, %cst_72 {dimension_numbers = #tpu.dot_dimension_numbers<[1], [0], [0], [1], [0, 0, 1, 1], [], []>} : vector<18x32xf32>, vector<32x32xf32>, vector<18x32xf32> -> vector<18x32xf32>
    %c0_73 = arith.constant 0 : index
    %c0_74 = arith.constant 0 : index
    %c0_75 = arith.constant 0 : index
    %172 = vector.load %arg10[%c0_73, %c0_74, %c0_75] : memref<2x1x32xf32, #tpu.memory_space<vmem>>, vector<1x1x32xf32>
    %173 = vector.shape_cast %172 : vector<1x1x32xf32> to vector<1x32xf32>
    %174 = vector.broadcast %173 : vector<1x32xf32> to vector<18x32xf32>
    %175 = arith.addf %171, %174 : vector<18x32xf32>
    %176 = arith.addf %9, %175 : vector<18x32xf32>
    %c0_76 = arith.constant 0 : index
    %c0_77 = arith.constant 0 : index
    %c0_78 = arith.constant 0 : index
    %177 = vector.load %arg15[%c0_76, %c0_77, %c0_78] : memref<2x1x32xf32, #tpu.memory_space<vmem>>, vector<1x1x32xf32>
    %178 = vector.shape_cast %177 : vector<1x1x32xf32> to vector<1x32xf32>
    %c0_79 = arith.constant 0 : index
    %c0_80 = arith.constant 0 : index
    %c0_81 = arith.constant 0 : index
    %179 = vector.load %arg16[%c0_79, %c0_80, %c0_81] : memref<2x1x32xf32, #tpu.memory_space<vmem>>, vector<1x1x32xf32>
    %180 = vector.shape_cast %179 : vector<1x1x32xf32> to vector<1x32xf32>
    %cst_82 = arith.constant dense<0.000000e+00> : vector<18xf32>
    %181 = vector.multi_reduction <add>, %176, %cst_82 [1] : vector<18x32xf32> to vector<18xf32>
    %182 = vector.shape_cast %181 : vector<18xf32> to vector<18x1xf32>
    %cst_83 = arith.constant 3.200000e+01 : f32
    %183 = vector.broadcast %cst_83 : f32 to vector<18x1xf32>
    %184 = arith.divf %182, %183 : vector<18x1xf32>
    %185 = vector.broadcast %184 : vector<18x1xf32> to vector<18x32xf32>
    %186 = arith.subf %176, %185 : vector<18x32xf32>
    %187 = arith.mulf %186, %186 : vector<18x32xf32>
    %cst_84 = arith.constant dense<0.000000e+00> : vector<18xf32>
    %188 = vector.multi_reduction <add>, %187, %cst_84 [1] : vector<18x32xf32> to vector<18xf32>
    %189 = vector.shape_cast %188 : vector<18xf32> to vector<18x1xf32>
    %cst_85 = arith.constant 3.200000e+01 : f32
    %190 = vector.broadcast %cst_85 : f32 to vector<18x1xf32>
    %191 = arith.divf %189, %190 : vector<18x1xf32>
    %192 = vector.broadcast %184 : vector<18x1xf32> to vector<18x32xf32>
    %193 = arith.subf %176, %192 : vector<18x32xf32>
    %cst_86 = arith.constant 9.99999974E-6 : f32
    %194 = vector.broadcast %cst_86 : f32 to vector<18x1xf32>
    %195 = arith.addf %191, %194 : vector<18x1xf32>
    %196 = math.rsqrt %195 : vector<18x1xf32>
    %197 = vector.broadcast %196 : vector<18x1xf32> to vector<18x32xf32>
    %198 = arith.mulf %193, %197 : vector<18x32xf32>
    %199 = vector.broadcast %178 : vector<1x32xf32> to vector<18x32xf32>
    %200 = arith.mulf %198, %199 : vector<18x32xf32>
    %201 = vector.broadcast %180 : vector<1x32xf32> to vector<18x32xf32>
    %202 = arith.addf %200, %201 : vector<18x32xf32>
    %c0_87 = arith.constant 0 : index
    %c0_88 = arith.constant 0 : index
    %c0_89 = arith.constant 0 : index
    %203 = vector.load %arg11[%c0_87, %c0_88, %c0_89] : memref<2x32x64xf32, #tpu.memory_space<vmem>>, vector<1x32x64xf32>
    %204 = vector.shape_cast %203 : vector<1x32x64xf32> to vector<32x64xf32>
    %cst_90 = arith.constant dense<0.000000e+00> : vector<18x64xf32>
    %205 = tpu.matmul %202, %204, %cst_90 {dimension_numbers = #tpu.dot_dimension_numbers<[1], [0], [0], [1], [0, 0, 1, 1], [], []>} : vector<18x32xf32>, vector<32x64xf32>, vector<18x64xf32> -> vector<18x64xf32>
    %c0_91 = arith.constant 0 : index
    %c0_92 = arith.constant 0 : index
    %c0_93 = arith.constant 0 : index
    %206 = vector.load %arg12[%c0_91, %c0_92, %c0_93] : memref<2x1x64xf32, #tpu.memory_space<vmem>>, vector<1x1x64xf32>
    %207 = vector.shape_cast %206 : vector<1x1x64xf32> to vector<1x64xf32>
    %208 = vector.broadcast %207 : vector<1x64xf32> to vector<18x64xf32>
    %209 = arith.addf %205, %208 : vector<18x64xf32>
    %cst_94 = arith.constant 0.000000e+00 : f32
    %210 = vector.broadcast %cst_94 : f32 to vector<18x64xf32>
    %211 = arith.maximumf %209, %210 : vector<18x64xf32>
    %c0_95 = arith.constant 0 : index
    %c0_96 = arith.constant 0 : index
    %c0_97 = arith.constant 0 : index
    %212 = vector.load %arg13[%c0_95, %c0_96, %c0_97] : memref<2x64x32xf32, #tpu.memory_space<vmem>>, vector<1x64x32xf32>
    %213 = vector.shape_cast %212 : vector<1x64x32xf32> to vector<64x32xf32>
    %cst_98 = arith.constant dense<0.000000e+00> : vector<18x32xf32>
    %214 = tpu.matmul %211, %213, %cst_98 {dimension_numbers = #tpu.dot_dimension_numbers<[1], [0], [0], [1], [0, 0, 1, 1], [], []>} : vector<18x64xf32>, vector<64x32xf32>, vector<18x32xf32> -> vector<18x32xf32>
    %c0_99 = arith.constant 0 : index
    %c0_100 = arith.constant 0 : index
    %c0_101 = arith.constant 0 : index
    %215 = vector.load %arg14[%c0_99, %c0_100, %c0_101] : memref<2x1x32xf32, #tpu.memory_space<vmem>>, vector<1x1x32xf32>
    %216 = vector.shape_cast %215 : vector<1x1x32xf32> to vector<1x32xf32>
    %217 = vector.broadcast %216 : vector<1x32xf32> to vector<18x32xf32>
    %218 = arith.addf %214, %217 : vector<18x32xf32>
    %219 = arith.addf %202, %218 : vector<18x32xf32>
    %c0_102 = arith.constant 0 : index
    %c0_103 = arith.constant 0 : index
    %c0_104 = arith.constant 0 : index
    %220 = vector.load %arg17[%c0_102, %c0_103, %c0_104] : memref<2x1x32xf32, #tpu.memory_space<vmem>>, vector<1x1x32xf32>
    %221 = vector.shape_cast %220 : vector<1x1x32xf32> to vector<1x32xf32>
    %c0_105 = arith.constant 0 : index
    %c0_106 = arith.constant 0 : index
    %c0_107 = arith.constant 0 : index
    %222 = vector.load %arg18[%c0_105, %c0_106, %c0_107] : memref<2x1x32xf32, #tpu.memory_space<vmem>>, vector<1x1x32xf32>
    %223 = vector.shape_cast %222 : vector<1x1x32xf32> to vector<1x32xf32>
    %cst_108 = arith.constant dense<0.000000e+00> : vector<18xf32>
    %224 = vector.multi_reduction <add>, %219, %cst_108 [1] : vector<18x32xf32> to vector<18xf32>
    %225 = vector.shape_cast %224 : vector<18xf32> to vector<18x1xf32>
    %cst_109 = arith.constant 3.200000e+01 : f32
    %226 = vector.broadcast %cst_109 : f32 to vector<18x1xf32>
    %227 = arith.divf %225, %226 : vector<18x1xf32>
    %228 = vector.broadcast %227 : vector<18x1xf32> to vector<18x32xf32>
    %229 = arith.subf %219, %228 : vector<18x32xf32>
    %230 = arith.mulf %229, %229 : vector<18x32xf32>
    %cst_110 = arith.constant dense<0.000000e+00> : vector<18xf32>
    %231 = vector.multi_reduction <add>, %230, %cst_110 [1] : vector<18x32xf32> to vector<18xf32>
    %232 = vector.shape_cast %231 : vector<18xf32> to vector<18x1xf32>
    %cst_111 = arith.constant 3.200000e+01 : f32
    %233 = vector.broadcast %cst_111 : f32 to vector<18x1xf32>
    %234 = arith.divf %232, %233 : vector<18x1xf32>
    %235 = vector.broadcast %227 : vector<18x1xf32> to vector<18x32xf32>
    %236 = arith.subf %219, %235 : vector<18x32xf32>
    %cst_112 = arith.constant 9.99999974E-6 : f32
    %237 = vector.broadcast %cst_112 : f32 to vector<18x1xf32>
    %238 = arith.addf %234, %237 : vector<18x1xf32>
    %239 = math.rsqrt %238 : vector<18x1xf32>
    %240 = vector.broadcast %239 : vector<18x1xf32> to vector<18x32xf32>
    %241 = arith.mulf %236, %240 : vector<18x32xf32>
    %242 = vector.broadcast %221 : vector<1x32xf32> to vector<18x32xf32>
    %243 = arith.mulf %241, %242 : vector<18x32xf32>
    %244 = vector.broadcast %223 : vector<1x32xf32> to vector<18x32xf32>
    %245 = arith.addf %243, %244 : vector<18x32xf32>
    %c1_113 = arith.constant 1 : index
    %c0_114 = arith.constant 0 : index
    %c0_115 = arith.constant 0 : index
    %246 = vector.load %arg7[%c1_113, %c0_114, %c0_115] : memref<2x32x96xf32, #tpu.memory_space<vmem>>, vector<1x32x96xf32>
    %247 = vector.shape_cast %246 : vector<1x32x96xf32> to vector<32x96xf32>
    %cst_116 = arith.constant dense<0.000000e+00> : vector<18x96xf32>
    %248 = tpu.matmul %245, %247, %cst_116 {dimension_numbers = #tpu.dot_dimension_numbers<[1], [0], [0], [1], [0, 0, 1, 1], [], []>} : vector<18x32xf32>, vector<32x96xf32>, vector<18x96xf32> -> vector<18x96xf32>
    %c1_117 = arith.constant 1 : index
    %c0_118 = arith.constant 0 : index
    %c0_119 = arith.constant 0 : index
    %249 = vector.load %arg8[%c1_117, %c0_118, %c0_119] : memref<2x1x96xf32, #tpu.memory_space<vmem>>, vector<1x1x96xf32>
    %250 = vector.shape_cast %249 : vector<1x1x96xf32> to vector<1x96xf32>
    %251 = vector.broadcast %250 : vector<1x96xf32> to vector<18x96xf32>
    %252 = arith.addf %248, %251 : vector<18x96xf32>
    %253 = vector.extract_strided_slice %252 {offsets = [0, 0], sizes = [18, 32], strides = [1, 1]} : vector<18x96xf32> to vector<18x32xf32>
    %cst_120 = arith.constant 0.353553385 : f32
    %254 = vector.broadcast %cst_120 : f32 to vector<18x32xf32>
    %255 = arith.mulf %253, %254 : vector<18x32xf32>
    %256 = vector.extract_strided_slice %252 {offsets = [0, 32], sizes = [18, 32], strides = [1, 1]} : vector<18x96xf32> to vector<18x32xf32>
    %257 = vector.extract_strided_slice %252 {offsets = [0, 64], sizes = [18, 32], strides = [1, 1]} : vector<18x96xf32> to vector<18x32xf32>
    %c0_121 = arith.constant 0 : index
    %c0_122 = arith.constant 0 : index
    %c0_123 = arith.constant 0 : index
    %258 = vector.load %arg4[%c0_121, %c0_122, %c0_123] : memref<2x9x9xf32, #tpu.memory_space<vmem>>, vector<1x9x9xf32>
    %259 = vector.shape_cast %258 : vector<1x9x9xf32> to vector<9x9xf32>
    %260 = vector.extract_strided_slice %255 {offsets = [0, 0], sizes = [9, 32], strides = [1, 1]} : vector<18x32xf32> to vector<9x32xf32>
    %261 = vector.extract_strided_slice %256 {offsets = [0, 0], sizes = [9, 32], strides = [1, 1]} : vector<18x32xf32> to vector<9x32xf32>
    %262 = vector.extract_strided_slice %257 {offsets = [0, 0], sizes = [9, 32], strides = [1, 1]} : vector<18x32xf32> to vector<9x32xf32>
    %263 = vector.extract_strided_slice %260 {offsets = [0, 0], sizes = [9, 8], strides = [1, 1]} : vector<9x32xf32> to vector<9x8xf32>
    %264 = vector.extract_strided_slice %261 {offsets = [0, 0], sizes = [9, 8], strides = [1, 1]} : vector<9x32xf32> to vector<9x8xf32>
    %265 = vector.extract_strided_slice %262 {offsets = [0, 0], sizes = [9, 8], strides = [1, 1]} : vector<9x32xf32> to vector<9x8xf32>
    %cst_124 = arith.constant dense<0.000000e+00> : vector<9x9xf32>
    %266 = tpu.matmul %263, %264, %cst_124 {dimension_numbers = #tpu.dot_dimension_numbers<[1], [1], [0], [0], [0, 0, 1, 0], [], []>} : vector<9x8xf32>, vector<9x8xf32>, vector<9x9xf32> -> vector<9x9xf32>
    %267 = arith.addf %266, %259 : vector<9x9xf32>
    %cst_125 = arith.constant dense<0xFF800000> : vector<9xf32>
    %268 = vector.multi_reduction <maximumf>, %267, %cst_125 [1] : vector<9x9xf32> to vector<9xf32>
    %269 = vector.shape_cast %268 : vector<9xf32> to vector<9x1xf32>
    %270 = vector.broadcast %269 : vector<9x1xf32> to vector<9x9xf32>
    %271 = arith.subf %267, %270 : vector<9x9xf32>
    %272 = math.exp %271 : vector<9x9xf32>
    %cst_126 = arith.constant dense<0.000000e+00> : vector<9xf32>
    %273 = vector.multi_reduction <add>, %272, %cst_126 [1] : vector<9x9xf32> to vector<9xf32>
    %274 = vector.shape_cast %273 : vector<9xf32> to vector<9x1xf32>
    %cst_127 = arith.constant dense<0.000000e+00> : vector<9x8xf32>
    %275 = tpu.matmul %272, %265, %cst_127 {dimension_numbers = #tpu.dot_dimension_numbers<[1], [0], [0], [1], [0, 0, 1, 1], [], []>} : vector<9x9xf32>, vector<9x8xf32>, vector<9x8xf32> -> vector<9x8xf32>
    %276 = tpu.reciprocal %274 {approx = true} : vector<9x1xf32> -> vector<9x1xf32>
    %277 = vector.broadcast %276 : vector<9x1xf32> to vector<9x8xf32>
    %278 = arith.mulf %275, %277 : vector<9x8xf32>
    %c0_128 = arith.constant 0 : index
    %c0_129 = arith.constant 0 : index
    %279 = vector.load %arg22[%c0_128, %c0_129] : memref<18x32xf32, #tpu.memory_space<vmem>>, vector<9x8xf32>
    tpu.vector_store %arg22[%c0_128, %c0_129], %278 {strides = array<i32>} : memref<18x32xf32, #tpu.memory_space<vmem>>, vector<9x8xf32>,
    %280 = vector.extract_strided_slice %260 {offsets = [0, 8], sizes = [9, 8], strides = [1, 1]} : vector<9x32xf32> to vector<9x8xf32>
    %281 = vector.extract_strided_slice %261 {offsets = [0, 8], sizes = [9, 8], strides = [1, 1]} : vector<9x32xf32> to vector<9x8xf32>
    %282 = vector.extract_strided_slice %262 {offsets = [0, 8], sizes = [9, 8], strides = [1, 1]} : vector<9x32xf32> to vector<9x8xf32>
    %cst_130 = arith.constant dense<0.000000e+00> : vector<9x9xf32>
    %283 = tpu.matmul %280, %281, %cst_130 {dimension_numbers = #tpu.dot_dimension_numbers<[1], [1], [0], [0], [0, 0, 1, 0], [], []>} : vector<9x8xf32>, vector<9x8xf32>, vector<9x9xf32> -> vector<9x9xf32>
    %284 = arith.addf %283, %259 : vector<9x9xf32>
    %cst_131 = arith.constant dense<0xFF800000> : vector<9xf32>
    %285 = vector.multi_reduction <maximumf>, %284, %cst_131 [1] : vector<9x9xf32> to vector<9xf32>
    %286 = vector.shape_cast %285 : vector<9xf32> to vector<9x1xf32>
    %287 = vector.broadcast %286 : vector<9x1xf32> to vector<9x9xf32>
    %288 = arith.subf %284, %287 : vector<9x9xf32>
    %289 = math.exp %288 : vector<9x9xf32>
    %cst_132 = arith.constant dense<0.000000e+00> : vector<9xf32>
    %290 = vector.multi_reduction <add>, %289, %cst_132 [1] : vector<9x9xf32> to vector<9xf32>
    %291 = vector.shape_cast %290 : vector<9xf32> to vector<9x1xf32>
    %cst_133 = arith.constant dense<0.000000e+00> : vector<9x8xf32>
    %292 = tpu.matmul %289, %282, %cst_133 {dimension_numbers = #tpu.dot_dimension_numbers<[1], [0], [0], [1], [0, 0, 1, 1], [], []>} : vector<9x9xf32>, vector<9x8xf32>, vector<9x8xf32> -> vector<9x8xf32>
    %293 = tpu.reciprocal %291 {approx = true} : vector<9x1xf32> -> vector<9x1xf32>
    %294 = vector.broadcast %293 : vector<9x1xf32> to vector<9x8xf32>
    %295 = arith.mulf %292, %294 : vector<9x8xf32>
    %c0_134 = arith.constant 0 : index
    %c8_135 = arith.constant 8 : index
    %296 = vector.load %arg22[%c0_134, %c8_135] : memref<18x32xf32, #tpu.memory_space<vmem>>, vector<9x8xf32>
    tpu.vector_store %arg22[%c0_134, %c8_135], %295 {strides = array<i32>} : memref<18x32xf32, #tpu.memory_space<vmem>>, vector<9x8xf32>,
    %297 = vector.extract_strided_slice %260 {offsets = [0, 16], sizes = [9, 8], strides = [1, 1]} : vector<9x32xf32> to vector<9x8xf32>
    %298 = vector.extract_strided_slice %261 {offsets = [0, 16], sizes = [9, 8], strides = [1, 1]} : vector<9x32xf32> to vector<9x8xf32>
    %299 = vector.extract_strided_slice %262 {offsets = [0, 16], sizes = [9, 8], strides = [1, 1]} : vector<9x32xf32> to vector<9x8xf32>
    %cst_136 = arith.constant dense<0.000000e+00> : vector<9x9xf32>
    %300 = tpu.matmul %297, %298, %cst_136 {dimension_numbers = #tpu.dot_dimension_numbers<[1], [1], [0], [0], [0, 0, 1, 0], [], []>} : vector<9x8xf32>, vector<9x8xf32>, vector<9x9xf32> -> vector<9x9xf32>
    %301 = arith.addf %300, %259 : vector<9x9xf32>
    %cst_137 = arith.constant dense<0xFF800000> : vector<9xf32>
    %302 = vector.multi_reduction <maximumf>, %301, %cst_137 [1] : vector<9x9xf32> to vector<9xf32>
    %303 = vector.shape_cast %302 : vector<9xf32> to vector<9x1xf32>
    %304 = vector.broadcast %303 : vector<9x1xf32> to vector<9x9xf32>
    %305 = arith.subf %301, %304 : vector<9x9xf32>
    %306 = math.exp %305 : vector<9x9xf32>
    %cst_138 = arith.constant dense<0.000000e+00> : vector<9xf32>
    %307 = vector.multi_reduction <add>, %306, %cst_138 [1] : vector<9x9xf32> to vector<9xf32>
    %308 = vector.shape_cast %307 : vector<9xf32> to vector<9x1xf32>
    %cst_139 = arith.constant dense<0.000000e+00> : vector<9x8xf32>
    %309 = tpu.matmul %306, %299, %cst_139 {dimension_numbers = #tpu.dot_dimension_numbers<[1], [0], [0], [1], [0, 0, 1, 1], [], []>} : vector<9x9xf32>, vector<9x8xf32>, vector<9x8xf32> -> vector<9x8xf32>
    %310 = tpu.reciprocal %308 {approx = true} : vector<9x1xf32> -> vector<9x1xf32>
    %311 = vector.broadcast %310 : vector<9x1xf32> to vector<9x8xf32>
    %312 = arith.mulf %309, %311 : vector<9x8xf32>
    %c0_140 = arith.constant 0 : index
    %c16_141 = arith.constant 16 : index
    %313 = vector.load %arg22[%c0_140, %c16_141] : memref<18x32xf32, #tpu.memory_space<vmem>>, vector<9x8xf32>
    tpu.vector_store %arg22[%c0_140, %c16_141], %312 {strides = array<i32>} : memref<18x32xf32, #tpu.memory_space<vmem>>, vector<9x8xf32>,
    %314 = vector.extract_strided_slice %260 {offsets = [0, 24], sizes = [9, 8], strides = [1, 1]} : vector<9x32xf32> to vector<9x8xf32>
    %315 = vector.extract_strided_slice %261 {offsets = [0, 24], sizes = [9, 8], strides = [1, 1]} : vector<9x32xf32> to vector<9x8xf32>
    %316 = vector.extract_strided_slice %262 {offsets = [0, 24], sizes = [9, 8], strides = [1, 1]} : vector<9x32xf32> to vector<9x8xf32>
    %cst_142 = arith.constant dense<0.000000e+00> : vector<9x9xf32>
    %317 = tpu.matmul %314, %315, %cst_142 {dimension_numbers = #tpu.dot_dimension_numbers<[1], [1], [0], [0], [0, 0, 1, 0], [], []>} : vector<9x8xf32>, vector<9x8xf32>, vector<9x9xf32> -> vector<9x9xf32>
    %318 = arith.addf %317, %259 : vector<9x9xf32>
    %cst_143 = arith.constant dense<0xFF800000> : vector<9xf32>
    %319 = vector.multi_reduction <maximumf>, %318, %cst_143 [1] : vector<9x9xf32> to vector<9xf32>
    %320 = vector.shape_cast %319 : vector<9xf32> to vector<9x1xf32>
    %321 = vector.broadcast %320 : vector<9x1xf32> to vector<9x9xf32>
    %322 = arith.subf %318, %321 : vector<9x9xf32>
    %323 = math.exp %322 : vector<9x9xf32>
    %cst_144 = arith.constant dense<0.000000e+00> : vector<9xf32>
    %324 = vector.multi_reduction <add>, %323, %cst_144 [1] : vector<9x9xf32> to vector<9xf32>
    %325 = vector.shape_cast %324 : vector<9xf32> to vector<9x1xf32>
    %cst_145 = arith.constant dense<0.000000e+00> : vector<9x8xf32>
    %326 = tpu.matmul %323, %316, %cst_145 {dimension_numbers = #tpu.dot_dimension_numbers<[1], [0], [0], [1], [0, 0, 1, 1], [], []>} : vector<9x9xf32>, vector<9x8xf32>, vector<9x8xf32> -> vector<9x8xf32>
    %327 = tpu.reciprocal %325 {approx = true} : vector<9x1xf32> -> vector<9x1xf32>
    %328 = vector.broadcast %327 : vector<9x1xf32> to vector<9x8xf32>
    %329 = arith.mulf %326, %328 : vector<9x8xf32>
    %c0_146 = arith.constant 0 : index
    %c24_147 = arith.constant 24 : index
    %330 = vector.load %arg22[%c0_146, %c24_147] : memref<18x32xf32, #tpu.memory_space<vmem>>, vector<9x8xf32>
    tpu.vector_store %arg22[%c0_146, %c24_147], %329 {strides = array<i32>} : memref<18x32xf32, #tpu.memory_space<vmem>>, vector<9x8xf32>,
    %c1_148 = arith.constant 1 : index
    %c0_149 = arith.constant 0 : index
    %c0_150 = arith.constant 0 : index
    %331 = vector.load %arg4[%c1_148, %c0_149, %c0_150] : memref<2x9x9xf32, #tpu.memory_space<vmem>>, vector<1x9x9xf32>
    %332 = vector.shape_cast %331 : vector<1x9x9xf32> to vector<9x9xf32>
    %333 = vector.extract_strided_slice %255 {offsets = [9, 0], sizes = [9, 32], strides = [1, 1]} : vector<18x32xf32> to vector<9x32xf32>
    %334 = vector.extract_strided_slice %256 {offsets = [9, 0], sizes = [9, 32], strides = [1, 1]} : vector<18x32xf32> to vector<9x32xf32>
    %335 = vector.extract_strided_slice %257 {offsets = [9, 0], sizes = [9, 32], strides = [1, 1]} : vector<18x32xf32> to vector<9x32xf32>
    %336 = vector.extract_strided_slice %333 {offsets = [0, 0], sizes = [9, 8], strides = [1, 1]} : vector<9x32xf32> to vector<9x8xf32>
    %337 = vector.extract_strided_slice %334 {offsets = [0, 0], sizes = [9, 8], strides = [1, 1]} : vector<9x32xf32> to vector<9x8xf32>
    %338 = vector.extract_strided_slice %335 {offsets = [0, 0], sizes = [9, 8], strides = [1, 1]} : vector<9x32xf32> to vector<9x8xf32>
    %cst_151 = arith.constant dense<0.000000e+00> : vector<9x9xf32>
    %339 = tpu.matmul %336, %337, %cst_151 {dimension_numbers = #tpu.dot_dimension_numbers<[1], [1], [0], [0], [0, 0, 1, 0], [], []>} : vector<9x8xf32>, vector<9x8xf32>, vector<9x9xf32> -> vector<9x9xf32>
    %340 = arith.addf %339, %332 : vector<9x9xf32>
    %cst_152 = arith.constant dense<0xFF800000> : vector<9xf32>
    %341 = vector.multi_reduction <maximumf>, %340, %cst_152 [1] : vector<9x9xf32> to vector<9xf32>
    %342 = vector.shape_cast %341 : vector<9xf32> to vector<9x1xf32>
    %343 = vector.broadcast %342 : vector<9x1xf32> to vector<9x9xf32>
    %344 = arith.subf %340, %343 : vector<9x9xf32>
    %345 = math.exp %344 : vector<9x9xf32>
    %cst_153 = arith.constant dense<0.000000e+00> : vector<9xf32>
    %346 = vector.multi_reduction <add>, %345, %cst_153 [1] : vector<9x9xf32> to vector<9xf32>
    %347 = vector.shape_cast %346 : vector<9xf32> to vector<9x1xf32>
    %cst_154 = arith.constant dense<0.000000e+00> : vector<9x8xf32>
    %348 = tpu.matmul %345, %338, %cst_154 {dimension_numbers = #tpu.dot_dimension_numbers<[1], [0], [0], [1], [0, 0, 1, 1], [], []>} : vector<9x9xf32>, vector<9x8xf32>, vector<9x8xf32> -> vector<9x8xf32>
    %349 = tpu.reciprocal %347 {approx = true} : vector<9x1xf32> -> vector<9x1xf32>
    %350 = vector.broadcast %349 : vector<9x1xf32> to vector<9x8xf32>
    %351 = arith.mulf %348, %350 : vector<9x8xf32>
    %c9_155 = arith.constant 9 : index
    %c0_156 = arith.constant 0 : index
    %352 = vector.load %arg22[%c9_155, %c0_156] : memref<18x32xf32, #tpu.memory_space<vmem>>, vector<9x8xf32>
    tpu.vector_store %arg22[%c9_155, %c0_156], %351 {strides = array<i32>} : memref<18x32xf32, #tpu.memory_space<vmem>>, vector<9x8xf32>,
    %353 = vector.extract_strided_slice %333 {offsets = [0, 8], sizes = [9, 8], strides = [1, 1]} : vector<9x32xf32> to vector<9x8xf32>
    %354 = vector.extract_strided_slice %334 {offsets = [0, 8], sizes = [9, 8], strides = [1, 1]} : vector<9x32xf32> to vector<9x8xf32>
    %355 = vector.extract_strided_slice %335 {offsets = [0, 8], sizes = [9, 8], strides = [1, 1]} : vector<9x32xf32> to vector<9x8xf32>
    %cst_157 = arith.constant dense<0.000000e+00> : vector<9x9xf32>
    %356 = tpu.matmul %353, %354, %cst_157 {dimension_numbers = #tpu.dot_dimension_numbers<[1], [1], [0], [0], [0, 0, 1, 0], [], []>} : vector<9x8xf32>, vector<9x8xf32>, vector<9x9xf32> -> vector<9x9xf32>
    %357 = arith.addf %356, %332 : vector<9x9xf32>
    %cst_158 = arith.constant dense<0xFF800000> : vector<9xf32>
    %358 = vector.multi_reduction <maximumf>, %357, %cst_158 [1] : vector<9x9xf32> to vector<9xf32>
    %359 = vector.shape_cast %358 : vector<9xf32> to vector<9x1xf32>
    %360 = vector.broadcast %359 : vector<9x1xf32> to vector<9x9xf32>
    %361 = arith.subf %357, %360 : vector<9x9xf32>
    %362 = math.exp %361 : vector<9x9xf32>
    %cst_159 = arith.constant dense<0.000000e+00> : vector<9xf32>
    %363 = vector.multi_reduction <add>, %362, %cst_159 [1] : vector<9x9xf32> to vector<9xf32>
    %364 = vector.shape_cast %363 : vector<9xf32> to vector<9x1xf32>
    %cst_160 = arith.constant dense<0.000000e+00> : vector<9x8xf32>
    %365 = tpu.matmul %362, %355, %cst_160 {dimension_numbers = #tpu.dot_dimension_numbers<[1], [0], [0], [1], [0, 0, 1, 1], [], []>} : vector<9x9xf32>, vector<9x8xf32>, vector<9x8xf32> -> vector<9x8xf32>
    %366 = tpu.reciprocal %364 {approx = true} : vector<9x1xf32> -> vector<9x1xf32>
    %367 = vector.broadcast %366 : vector<9x1xf32> to vector<9x8xf32>
    %368 = arith.mulf %365, %367 : vector<9x8xf32>
    %c9_161 = arith.constant 9 : index
    %c8_162 = arith.constant 8 : index
    %369 = vector.load %arg22[%c9_161, %c8_162] : memref<18x32xf32, #tpu.memory_space<vmem>>, vector<9x8xf32>
    tpu.vector_store %arg22[%c9_161, %c8_162], %368 {strides = array<i32>} : memref<18x32xf32, #tpu.memory_space<vmem>>, vector<9x8xf32>,
    %370 = vector.extract_strided_slice %333 {offsets = [0, 16], sizes = [9, 8], strides = [1, 1]} : vector<9x32xf32> to vector<9x8xf32>
    %371 = vector.extract_strided_slice %334 {offsets = [0, 16], sizes = [9, 8], strides = [1, 1]} : vector<9x32xf32> to vector<9x8xf32>
    %372 = vector.extract_strided_slice %335 {offsets = [0, 16], sizes = [9, 8], strides = [1, 1]} : vector<9x32xf32> to vector<9x8xf32>
    %cst_163 = arith.constant dense<0.000000e+00> : vector<9x9xf32>
    %373 = tpu.matmul %370, %371, %cst_163 {dimension_numbers = #tpu.dot_dimension_numbers<[1], [1], [0], [0], [0, 0, 1, 0], [], []>} : vector<9x8xf32>, vector<9x8xf32>, vector<9x9xf32> -> vector<9x9xf32>
    %374 = arith.addf %373, %332 : vector<9x9xf32>
    %cst_164 = arith.constant dense<0xFF800000> : vector<9xf32>
    %375 = vector.multi_reduction <maximumf>, %374, %cst_164 [1] : vector<9x9xf32> to vector<9xf32>
    %376 = vector.shape_cast %375 : vector<9xf32> to vector<9x1xf32>
    %377 = vector.broadcast %376 : vector<9x1xf32> to vector<9x9xf32>
    %378 = arith.subf %374, %377 : vector<9x9xf32>
    %379 = math.exp %378 : vector<9x9xf32>
    %cst_165 = arith.constant dense<0.000000e+00> : vector<9xf32>
    %380 = vector.multi_reduction <add>, %379, %cst_165 [1] : vector<9x9xf32> to vector<9xf32>
    %381 = vector.shape_cast %380 : vector<9xf32> to vector<9x1xf32>
    %cst_166 = arith.constant dense<0.000000e+00> : vector<9x8xf32>
    %382 = tpu.matmul %379, %372, %cst_166 {dimension_numbers = #tpu.dot_dimension_numbers<[1], [0], [0], [1], [0, 0, 1, 1], [], []>} : vector<9x9xf32>, vector<9x8xf32>, vector<9x8xf32> -> vector<9x8xf32>
    %383 = tpu.reciprocal %381 {approx = true} : vector<9x1xf32> -> vector<9x1xf32>
    %384 = vector.broadcast %383 : vector<9x1xf32> to vector<9x8xf32>
    %385 = arith.mulf %382, %384 : vector<9x8xf32>
    %c9_167 = arith.constant 9 : index
    %c16_168 = arith.constant 16 : index
    %386 = vector.load %arg22[%c9_167, %c16_168] : memref<18x32xf32, #tpu.memory_space<vmem>>, vector<9x8xf32>
    tpu.vector_store %arg22[%c9_167, %c16_168], %385 {strides = array<i32>} : memref<18x32xf32, #tpu.memory_space<vmem>>, vector<9x8xf32>,
    %387 = vector.extract_strided_slice %333 {offsets = [0, 24], sizes = [9, 8], strides = [1, 1]} : vector<9x32xf32> to vector<9x8xf32>
    %388 = vector.extract_strided_slice %334 {offsets = [0, 24], sizes = [9, 8], strides = [1, 1]} : vector<9x32xf32> to vector<9x8xf32>
    %389 = vector.extract_strided_slice %335 {offsets = [0, 24], sizes = [9, 8], strides = [1, 1]} : vector<9x32xf32> to vector<9x8xf32>
    %cst_169 = arith.constant dense<0.000000e+00> : vector<9x9xf32>
    %390 = tpu.matmul %387, %388, %cst_169 {dimension_numbers = #tpu.dot_dimension_numbers<[1], [1], [0], [0], [0, 0, 1, 0], [], []>} : vector<9x8xf32>, vector<9x8xf32>, vector<9x9xf32> -> vector<9x9xf32>
    %391 = arith.addf %390, %332 : vector<9x9xf32>
    %cst_170 = arith.constant dense<0xFF800000> : vector<9xf32>
    %392 = vector.multi_reduction <maximumf>, %391, %cst_170 [1] : vector<9x9xf32> to vector<9xf32>
    %393 = vector.shape_cast %392 : vector<9xf32> to vector<9x1xf32>
    %394 = vector.broadcast %393 : vector<9x1xf32> to vector<9x9xf32>
    %395 = arith.subf %391, %394 : vector<9x9xf32>
    %396 = math.exp %395 : vector<9x9xf32>
    %cst_171 = arith.constant dense<0.000000e+00> : vector<9xf32>
    %397 = vector.multi_reduction <add>, %396, %cst_171 [1] : vector<9x9xf32> to vector<9xf32>
    %398 = vector.shape_cast %397 : vector<9xf32> to vector<9x1xf32>
    %cst_172 = arith.constant dense<0.000000e+00> : vector<9x8xf32>
    %399 = tpu.matmul %396, %389, %cst_172 {dimension_numbers = #tpu.dot_dimension_numbers<[1], [0], [0], [1], [0, 0, 1, 1], [], []>} : vector<9x9xf32>, vector<9x8xf32>, vector<9x8xf32> -> vector<9x8xf32>
    %400 = tpu.reciprocal %398 {approx = true} : vector<9x1xf32> -> vector<9x1xf32>
    %401 = vector.broadcast %400 : vector<9x1xf32> to vector<9x8xf32>
    %402 = arith.mulf %399, %401 : vector<9x8xf32>
    %c9_173 = arith.constant 9 : index
    %c24_174 = arith.constant 24 : index
    %403 = vector.load %arg22[%c9_173, %c24_174] : memref<18x32xf32, #tpu.memory_space<vmem>>, vector<9x8xf32>
    tpu.vector_store %arg22[%c9_173, %c24_174], %402 {strides = array<i32>} : memref<18x32xf32, #tpu.memory_space<vmem>>, vector<9x8xf32>,
    %c0_175 = arith.constant 0 : index
    %c0_176 = arith.constant 0 : index
    %404 = vector.load %arg22[%c0_175, %c0_176] : memref<18x32xf32, #tpu.memory_space<vmem>>, vector<18x32xf32>
    %c1_177 = arith.constant 1 : index
    %c0_178 = arith.constant 0 : index
    %c0_179 = arith.constant 0 : index
    %405 = vector.load %arg9[%c1_177, %c0_178, %c0_179] : memref<2x32x32xf32, #tpu.memory_space<vmem>>, vector<1x32x32xf32>
    %406 = vector.shape_cast %405 : vector<1x32x32xf32> to vector<32x32xf32>
    %cst_180 = arith.constant dense<0.000000e+00> : vector<18x32xf32>
    %407 = tpu.matmul %404, %406, %cst_180 {dimension_numbers = #tpu.dot_dimension_numbers<[1], [0], [0], [1], [0, 0, 1, 1], [], []>} : vector<18x32xf32>, vector<32x32xf32>, vector<18x32xf32> -> vector<18x32xf32>
    %c1_181 = arith.constant 1 : index
    %c0_182 = arith.constant 0 : index
    %c0_183 = arith.constant 0 : index
    %408 = vector.load %arg10[%c1_181, %c0_182, %c0_183] : memref<2x1x32xf32, #tpu.memory_space<vmem>>, vector<1x1x32xf32>
    %409 = vector.shape_cast %408 : vector<1x1x32xf32> to vector<1x32xf32>
    %410 = vector.broadcast %409 : vector<1x32xf32> to vector<18x32xf32>
    %411 = arith.addf %407, %410 : vector<18x32xf32>
    %412 = arith.addf %245, %411 : vector<18x32xf32>
    %c1_184 = arith.constant 1 : index
    %c0_185 = arith.constant 0 : index
    %c0_186 = arith.constant 0 : index
    %413 = vector.load %arg15[%c1_184, %c0_185, %c0_186] : memref<2x1x32xf32, #tpu.memory_space<vmem>>, vector<1x1x32xf32>
    %414 = vector.shape_cast %413 : vector<1x1x32xf32> to vector<1x32xf32>
    %c1_187 = arith.constant 1 : index
    %c0_188 = arith.constant 0 : index
    %c0_189 = arith.constant 0 : index
    %415 = vector.load %arg16[%c1_187, %c0_188, %c0_189] : memref<2x1x32xf32, #tpu.memory_space<vmem>>, vector<1x1x32xf32>
    %416 = vector.shape_cast %415 : vector<1x1x32xf32> to vector<1x32xf32>
    %cst_190 = arith.constant dense<0.000000e+00> : vector<18xf32>
    %417 = vector.multi_reduction <add>, %412, %cst_190 [1] : vector<18x32xf32> to vector<18xf32>
    %418 = vector.shape_cast %417 : vector<18xf32> to vector<18x1xf32>
    %cst_191 = arith.constant 3.200000e+01 : f32
    %419 = vector.broadcast %cst_191 : f32 to vector<18x1xf32>
    %420 = arith.divf %418, %419 : vector<18x1xf32>
    %421 = vector.broadcast %420 : vector<18x1xf32> to vector<18x32xf32>
    %422 = arith.subf %412, %421 : vector<18x32xf32>
    %423 = arith.mulf %422, %422 : vector<18x32xf32>
    %cst_192 = arith.constant dense<0.000000e+00> : vector<18xf32>
    %424 = vector.multi_reduction <add>, %423, %cst_192 [1] : vector<18x32xf32> to vector<18xf32>
    %425 = vector.shape_cast %424 : vector<18xf32> to vector<18x1xf32>
    %cst_193 = arith.constant 3.200000e+01 : f32
    %426 = vector.broadcast %cst_193 : f32 to vector<18x1xf32>
    %427 = arith.divf %425, %426 : vector<18x1xf32>
    %428 = vector.broadcast %420 : vector<18x1xf32> to vector<18x32xf32>
    %429 = arith.subf %412, %428 : vector<18x32xf32>
    %cst_194 = arith.constant 9.99999974E-6 : f32
    %430 = vector.broadcast %cst_194 : f32 to vector<18x1xf32>
    %431 = arith.addf %427, %430 : vector<18x1xf32>
    %432 = math.rsqrt %431 : vector<18x1xf32>
    %433 = vector.broadcast %432 : vector<18x1xf32> to vector<18x32xf32>
    %434 = arith.mulf %429, %433 : vector<18x32xf32>
    %435 = vector.broadcast %414 : vector<1x32xf32> to vector<18x32xf32>
    %436 = arith.mulf %434, %435 : vector<18x32xf32>
    %437 = vector.broadcast %416 : vector<1x32xf32> to vector<18x32xf32>
    %438 = arith.addf %436, %437 : vector<18x32xf32>
    %c1_195 = arith.constant 1 : index
    %c0_196 = arith.constant 0 : index
    %c0_197 = arith.constant 0 : index
    %439 = vector.load %arg11[%c1_195, %c0_196, %c0_197] : memref<2x32x64xf32, #tpu.memory_space<vmem>>, vector<1x32x64xf32>
    %440 = vector.shape_cast %439 : vector<1x32x64xf32> to vector<32x64xf32>
    %cst_198 = arith.constant dense<0.000000e+00> : vector<18x64xf32>
    %441 = tpu.matmul %438, %440, %cst_198 {dimension_numbers = #tpu.dot_dimension_numbers<[1], [0], [0], [1], [0, 0, 1, 1], [], []>} : vector<18x32xf32>, vector<32x64xf32>, vector<18x64xf32> -> vector<18x64xf32>
    %c1_199 = arith.constant 1 : index
    %c0_200 = arith.constant 0 : index
    %c0_201 = arith.constant 0 : index
    %442 = vector.load %arg12[%c1_199, %c0_200, %c0_201] : memref<2x1x64xf32, #tpu.memory_space<vmem>>, vector<1x1x64xf32>
    %443 = vector.shape_cast %442 : vector<1x1x64xf32> to vector<1x64xf32>
    %444 = vector.broadcast %443 : vector<1x64xf32> to vector<18x64xf32>
    %445 = arith.addf %441, %444 : vector<18x64xf32>
    %cst_202 = arith.constant 0.000000e+00 : f32
    %446 = vector.broadcast %cst_202 : f32 to vector<18x64xf32>
    %447 = arith.maximumf %445, %446 : vector<18x64xf32>
    %c1_203 = arith.constant 1 : index
    %c0_204 = arith.constant 0 : index
    %c0_205 = arith.constant 0 : index
    %448 = vector.load %arg13[%c1_203, %c0_204, %c0_205] : memref<2x64x32xf32, #tpu.memory_space<vmem>>, vector<1x64x32xf32>
    %449 = vector.shape_cast %448 : vector<1x64x32xf32> to vector<64x32xf32>
    %cst_206 = arith.constant dense<0.000000e+00> : vector<18x32xf32>
    %450 = tpu.matmul %447, %449, %cst_206 {dimension_numbers = #tpu.dot_dimension_numbers<[1], [0], [0], [1], [0, 0, 1, 1], [], []>} : vector<18x64xf32>, vector<64x32xf32>, vector<18x32xf32> -> vector<18x32xf32>
    %c1_207 = arith.constant 1 : index
    %c0_208 = arith.constant 0 : index
    %c0_209 = arith.constant 0 : index
    %451 = vector.load %arg14[%c1_207, %c0_208, %c0_209] : memref<2x1x32xf32, #tpu.memory_space<vmem>>, vector<1x1x32xf32>
    %452 = vector.shape_cast %451 : vector<1x1x32xf32> to vector<1x32xf32>
    %453 = vector.broadcast %452 : vector<1x32xf32> to vector<18x32xf32>
    %454 = arith.addf %450, %453 : vector<18x32xf32>
    %455 = arith.addf %438, %454 : vector<18x32xf32>
    %c1_210 = arith.constant 1 : index
    %c0_211 = arith.constant 0 : index
    %c0_212 = arith.constant 0 : index
    %456 = vector.load %arg17[%c1_210, %c0_211, %c0_212] : memref<2x1x32xf32, #tpu.memory_space<vmem>>, vector<1x1x32xf32>
    %457 = vector.shape_cast %456 : vector<1x1x32xf32> to vector<1x32xf32>
    %c1_213 = arith.constant 1 : index
    %c0_214 = arith.constant 0 : index
    %c0_215 = arith.constant 0 : index
    %458 = vector.load %arg18[%c1_213, %c0_214, %c0_215] : memref<2x1x32xf32, #tpu.memory_space<vmem>>, vector<1x1x32xf32>
    %459 = vector.shape_cast %458 : vector<1x1x32xf32> to vector<1x32xf32>
    %cst_216 = arith.constant dense<0.000000e+00> : vector<18xf32>
    %460 = vector.multi_reduction <add>, %455, %cst_216 [1] : vector<18x32xf32> to vector<18xf32>
    %461 = vector.shape_cast %460 : vector<18xf32> to vector<18x1xf32>
    %cst_217 = arith.constant 3.200000e+01 : f32
    %462 = vector.broadcast %cst_217 : f32 to vector<18x1xf32>
    %463 = arith.divf %461, %462 : vector<18x1xf32>
    %464 = vector.broadcast %463 : vector<18x1xf32> to vector<18x32xf32>
    %465 = arith.subf %455, %464 : vector<18x32xf32>
    %466 = arith.mulf %465, %465 : vector<18x32xf32>
    %cst_218 = arith.constant dense<0.000000e+00> : vector<18xf32>
    %467 = vector.multi_reduction <add>, %466, %cst_218 [1] : vector<18x32xf32> to vector<18xf32>
    %468 = vector.shape_cast %467 : vector<18xf32> to vector<18x1xf32>
    %cst_219 = arith.constant 3.200000e+01 : f32
    %469 = vector.broadcast %cst_219 : f32 to vector<18x1xf32>
    %470 = arith.divf %468, %469 : vector<18x1xf32>
    %471 = vector.broadcast %463 : vector<18x1xf32> to vector<18x32xf32>
    %472 = arith.subf %455, %471 : vector<18x32xf32>
    %cst_220 = arith.constant 9.99999974E-6 : f32
    %473 = vector.broadcast %cst_220 : f32 to vector<18x1xf32>
    %474 = arith.addf %470, %473 : vector<18x1xf32>
    %475 = math.rsqrt %474 : vector<18x1xf32>
    %476 = vector.broadcast %475 : vector<18x1xf32> to vector<18x32xf32>
    %477 = arith.mulf %472, %476 : vector<18x32xf32>
    %478 = vector.broadcast %457 : vector<1x32xf32> to vector<18x32xf32>
    %479 = arith.mulf %477, %478 : vector<18x32xf32>
    %480 = vector.broadcast %459 : vector<1x32xf32> to vector<18x32xf32>
    %481 = arith.addf %479, %480 : vector<18x32xf32>
    %c0_221 = arith.constant 0 : index
    %c0_222 = arith.constant 0 : index
    %482 = vector.load %arg19[%c0_221, %c0_222] : memref<32x128xf32, #tpu.memory_space<vmem>>, vector<32x128xf32>
    %cst_223 = arith.constant dense<0.000000e+00> : vector<18x128xf32>
    %483 = tpu.matmul %481, %482, %cst_223 {dimension_numbers = #tpu.dot_dimension_numbers<[1], [0], [0], [1], [0, 0, 1, 1], [], []>} : vector<18x32xf32>, vector<32x128xf32>, vector<18x128xf32> -> vector<18x128xf32>
    %c0_224 = arith.constant 0 : index
    %c0_225 = arith.constant 0 : index
    %484 = vector.load %arg20[%c0_224, %c0_225] : memref<1x128xf32, #tpu.memory_space<vmem>>, vector<1x128xf32>
    %485 = vector.broadcast %484 : vector<1x128xf32> to vector<18x128xf32>
    %486 = arith.addf %483, %485 : vector<18x128xf32>
    %c0_226 = arith.constant 0 : index
    %c0_227 = arith.constant 0 : index
    %487 = vector.load %arg21[%c0_226, %c0_227] : memref<18x128xf32, #tpu.memory_space<vmem>>, vector<18x128xf32>
    tpu.vector_store %arg21[%c0_226, %c0_227], %486 {strides = array<i32>} : memref<18x128xf32, #tpu.memory_space<vmem>>, vector<18x128xf32>,
    return
  }
  func.func @transform_0(%arg0: i32) -> (i32, i32) {
    %c0_i32 = arith.constant 0 : i32
    %c0_i32_0 = arith.constant 0 : i32
    %c0_i32_1 = arith.constant 0 : i32
    return %c0_i32, %c0_i32_0 : i32, i32
  }
  func.func @transform_1(%arg0: i32) -> (i32, i32) {
    %c0_i32 = arith.constant 0 : i32
    %c0_i32_0 = arith.constant 0 : i32
    %c0_i32_1 = arith.constant 0 : i32
    return %c0_i32, %c0_i32_0 : i32, i32
  }
  func.func @transform_2(%arg0: i32) -> (i32, i32) {
    %c0_i32 = arith.constant 0 : i32
    %c0_i32_0 = arith.constant 0 : i32
    %c0_i32_1 = arith.constant 0 : i32
    return %c0_i32, %c0_i32_0 : i32, i32
  }
  func.func @transform_3(%arg0: i32) -> (i32, i32, i32) {
    %c0_i32 = arith.constant 0 : i32
    %c0_i32_0 = arith.constant 0 : i32
    %c0_i32_1 = arith.constant 0 : i32
    %c0_i32_2 = arith.constant 0 : i32
    return %c0_i32, %c0_i32_0, %c0_i32_1 : i32, i32, i32
  }
  func.func @transform_4(%arg0: i32) -> (i32, i32) {
    %c0_i32 = arith.constant 0 : i32
    %c0_i32_0 = arith.constant 0 : i32
    %c0_i32_1 = arith.constant 0 : i32
    return %c0_i32, %c0_i32_0 : i32, i32
  }
  func.func @transform_5(%arg0: i32) -> (i32, i32) {
    %c0_i32 = arith.constant 0 : i32
    %c0_i32_0 = arith.constant 0 : i32
    %c0_i32_1 = arith.constant 0 : i32
    return %c0_i32, %c0_i32_0 : i32, i32
  }
  func.func @transform_6(%arg0: i32) -> (i32, i32, i32) {
    %c0_i32 = arith.constant 0 : i32
    %c0_i32_0 = arith.constant 0 : i32
    %c0_i32_1 = arith.constant 0 : i32
    %c0_i32_2 = arith.constant 0 : i32
    return %c0_i32, %c0_i32_0, %c0_i32_1 : i32, i32, i32
  }
  func.func @transform_7(%arg0: i32) -> (i32, i32, i32) {
    %c0_i32 = arith.constant 0 : i32
    %c0_i32_0 = arith.constant 0 : i32
    %c0_i32_1 = arith.constant 0 : i32
    %c0_i32_2 = arith.constant 0 : i32
    return %c0_i32, %c0_i32_0, %c0_i32_1 : i32, i32, i32
  }
  func.func @transform_8(%arg0: i32) -> (i32, i32, i32) {
    %c0_i32 = arith.constant 0 : i32
    %c0_i32_0 = arith.constant 0 : i32
    %c0_i32_1 = arith.constant 0 : i32
    %c0_i32_2 = arith.constant 0 : i32
    return %c0_i32, %c0_i32_0, %c0_i32_1 : i32, i32, i32
  }
  func.func @transform_9(%arg0: i32) -> (i32, i32, i32) {
    %c0_i32 = arith.constant 0 : i32
    %c0_i32_0 = arith.constant 0 : i32
    %c0_i32_1 = arith.constant 0 : i32
    %c0_i32_2 = arith.constant 0 : i32
    return %c0_i32, %c0_i32_0, %c0_i32_1 : i32, i32, i32
  }
  func.func @transform_10(%arg0: i32) -> (i32, i32, i32) {
    %c0_i32 = arith.constant 0 : i32
    %c0_i32_0 = arith.constant 0 : i32
    %c0_i32_1 = arith.constant 0 : i32
    %c0_i32_2 = arith.constant 0 : i32
    return %c0_i32, %c0_i32_0, %c0_i32_1 : i32, i32, i32
  }
  func.func @transform_11(%arg0: i32) -> (i32, i32, i32) {
    %c0_i32 = arith.constant 0 : i32
    %c0_i32_0 = arith.constant 0 : i32
    %c0_i32_1 = arith.constant 0 : i32
    %c0_i32_2 = arith.constant 0 : i32
    return %c0_i32, %c0_i32_0, %c0_i32_1 : i32, i32, i32
  }
  func.func @transform_12(%arg0: i32) -> (i32, i32, i32) {
    %c0_i32 = arith.constant 0 : i32
    %c0_i32_0 = arith.constant 0 : i32
    %c0_i32_1 = arith.constant 0 : i32
    %c0_i32_2 = arith.constant 0 : i32
    return %c0_i32, %c0_i32_0, %c0_i32_1 : i32, i32, i32
  }
  func.func @transform_13(%arg0: i32) -> (i32, i32, i32) {
    %c0_i32 = arith.constant 0 : i32
    %c0_i32_0 = arith.constant 0 : i32
    %c0_i32_1 = arith.constant 0 : i32
    %c0_i32_2 = arith.constant 0 : i32
    return %c0_i32, %c0_i32_0, %c0_i32_1 : i32, i32, i32
  }
  func.func @transform_14(%arg0: i32) -> (i32, i32, i32) {
    %c0_i32 = arith.constant 0 : i32
    %c0_i32_0 = arith.constant 0 : i32
    %c0_i32_1 = arith.constant 0 : i32
    %c0_i32_2 = arith.constant 0 : i32
    return %c0_i32, %c0_i32_0, %c0_i32_1 : i32, i32, i32
  }
  func.func @transform_15(%arg0: i32) -> (i32, i32, i32) {
    %c0_i32 = arith.constant 0 : i32
    %c0_i32_0 = arith.constant 0 : i32
    %c0_i32_1 = arith.constant 0 : i32
    %c0_i32_2 = arith.constant 0 : i32
    return %c0_i32, %c0_i32_0, %c0_i32_1 : i32, i32, i32
  }
  func.func @transform_16(%arg0: i32) -> (i32, i32, i32) {
    %c0_i32 = arith.constant 0 : i32
    %c0_i32_0 = arith.constant 0 : i32
    %c0_i32_1 = arith.constant 0 : i32
    %c0_i32_2 = arith.constant 0 : i32
    return %c0_i32, %c0_i32_0, %c0_i32_1 : i32, i32, i32
  }
  func.func @transform_17(%arg0: i32) -> (i32, i32, i32) {
    %c0_i32 = arith.constant 0 : i32
    %c0_i32_0 = arith.constant 0 : i32
    %c0_i32_1 = arith.constant 0 : i32
    %c0_i32_2 = arith.constant 0 : i32
    return %c0_i32, %c0_i32_0, %c0_i32_1 : i32, i32, i32
  }
  func.func @transform_18(%arg0: i32) -> (i32, i32) {
    %c0_i32 = arith.constant 0 : i32
    %c0_i32_0 = arith.constant 0 : i32
    %c0_i32_1 = arith.constant 0 : i32
    return %c0_i32, %c0_i32_0 : i32, i32
  }
  func.func @transform_19(%arg0: i32) -> (i32, i32) {
    %c0_i32 = arith.constant 0 : i32
    %c0_i32_0 = arith.constant 0 : i32
    %c0_i32_1 = arith.constant 0 : i32
    return %c0_i32, %c0_i32_0 : i32, i32
  }
  func.func @transform_20(%arg0: i32) -> (i32, i32) {
    %c0_i32 = arith.constant 0 : i32
    %c0_i32_0 = arith.constant 0 : i32
    %c0_i32_1 = arith.constant 0 : i32
    return %c0_i32, %c0_i32_0 : i32, i32
  }
}

</mosaic_0001>

<llo_original>
// kernel: forward.1
$region0: #{forward.1}
  #allocation0 [shape = 'u32[]', space=smem, size = 0x4, offset = 0x4, fixed_abs, tag = 'smem constant byte address 0x4 - core index']
  #allocation1 [shape = 'u32[144,128]{1,0:T(1,128)}', space=vmem, size = 0x12000, scoped, tag = 'internal scratch']
  #allocation2 [shape = 'f32[18,32]{1,0:T(8,128)}', space=vmem, size = 0x3000, scoped, tag = 'scratch operand']
  %s0 = inlined_call_operand.vmem [shape: f32[2,48], index: 0, kind: input, shape index: {}]
  %s1 = inlined_call_operand.vmem [shape: f32[18,2], index: 1, kind: input, shape index: {}]
  %s2 = inlined_call_operand.vmem [shape: f32[18,32], index: 2, kind: input, shape index: {}]
  %s3 = inlined_call_operand.vmem [shape: f32[2,9,9], index: 3, kind: input, shape index: {}]
  %s4 = inlined_call_operand.vmem [shape: f32[48,32], index: 4, kind: input, shape index: {}]
  %s5 = inlined_call_operand.vmem [shape: f32[1,32], index: 5, kind: input, shape index: {}]
  %s6 = inlined_call_operand.vmem [shape: f32[2,32,96], index: 6, kind: input, shape index: {}]
  %s7 = inlined_call_operand.vmem [shape: f32[2,1,96], index: 7, kind: input, shape index: {}]
  %s8 = inlined_call_operand.vmem [shape: f32[2,32,32], index: 8, kind: input, shape index: {}]
  %s9 = inlined_call_operand.vmem [shape: f32[2,1,32], index: 9, kind: input, shape index: {}]
  %s10 = inlined_call_operand.vmem [shape: f32[2,32,64], index: 10, kind: input, shape index: {}]
  %s11 = inlined_call_operand.vmem [shape: f32[2,1,64], index: 11, kind: input, shape index: {}]
  %s12 = inlined_call_operand.vmem [shape: f32[2,64,32], index: 12, kind: input, shape index: {}]
  %s13 = inlined_call_operand.vmem [shape: f32[2,1,32], index: 13, kind: input, shape index: {}]
  %s14 = inlined_call_operand.vmem [shape: f32[2,1,32], index: 14, kind: input, shape index: {}]
  %s15 = inlined_call_operand.vmem [shape: f32[2,1,32], index: 15, kind: input, shape index: {}]
  %s16 = inlined_call_operand.vmem [shape: f32[2,1,32], index: 16, kind: input, shape index: {}]
  %s17 = inlined_call_operand.vmem [shape: f32[2,1,32], index: 17, kind: input, shape index: {}]
  %s18 = inlined_call_operand.vmem [shape: f32[32,128], index: 18, kind: input, shape index: {}]
  %s19 = inlined_call_operand.vmem [shape: f32[1,128], index: 19, kind: input, shape index: {}]
  %s20 = inlined_call_operand.vmem [shape: f32[18,128], index: 20, kind: output, shape index: {}]
  %s21 = sld [smem:[#allocation0]]
  $region90: #{forward.1} parent=0
    _
  %s23 = ssub.s32 1, %s21
  %s24 = scalar_select 0, %s23, %s21
  // Predicated region
  $region2: #{forward.1} parent=0 // pred_check
    _
  $region3: #{forward.1} parent=0 // pred_check_branch
    %26 = sbr.rel (0) target = $region5
  $region4: #{forward.1} parent=0 // pred_region
    _
  $region5: #{forward.1} parent=0 // pred_fallthru
    _
  // Predicated region
  $region6: #{forward.1} parent=0 // pred_check
    _
  $region7: #{forward.1} parent=0 // pred_check_branch
    %28 = sbr.rel (0) target = $region9
  $region8: #{forward.1} parent=0 // pred_region
    _
  $region9: #{forward.1} parent=0 // pred_fallthru
    _
  // Predicated region
  $region10: #{forward.1} parent=0 // pred_check
    _
  $region11: #{forward.1} parent=0 // pred_check_branch
    %30 = sbr.rel (0) target = $region13
  $region12: #{forward.1} parent=0 // pred_region
    _
  $region13: #{forward.1} parent=0 // pred_fallthru
    _
  // Predicated region
  $region14: #{forward.1} parent=0 // pred_check
    _
  $region15: #{forward.1} parent=0 // pred_check_branch
    %32 = sbr.rel (0) target = $region17
  $region16: #{forward.1} parent=0 // pred_region
    _
  $region17: #{forward.1} parent=0 // pred_fallthru
    _
  // Predicated region
  $region18: #{forward.1} parent=0 // pred_check
    _
  $region19: #{forward.1} parent=0 // pred_check_branch
    %34 = sbr.rel (0) target = $region21
  $region20: #{forward.1} parent=0 // pred_region
    _
  $region21: #{forward.1} parent=0 // pred_fallthru
    _
  // Predicated region
  $region22: #{forward.1} parent=0 // pred_check
    _
  $region23: #{forward.1} parent=0 // pred_check_branch
    %36 = sbr.rel (0) target = $region25
  $region24: #{forward.1} parent=0 // pred_region
    _
  $region25: #{forward.1} parent=0 // pred_fallthru
    _
  // Predicated region
  $region26: #{forward.1} parent=0 // pred_check
    _
  $region27: #{forward.1} parent=0 // pred_check_branch
    %38 = sbr.rel (0) target = $region29
  $region28: #{forward.1} parent=0 // pred_region
    _
  $region29: #{forward.1} parent=0 // pred_fallthru
    _
  // Predicated region
  $region30: #{forward.1} parent=0 // pred_check
    _
  $region31: #{forward.1} parent=0 // pred_check_branch
    %40 = sbr.rel (0) target = $region33
  $region32: #{forward.1} parent=0 // pred_region
    _
  $region33: #{forward.1} parent=0 // pred_fallthru
    _
  // Predicated region
  $region34: #{forward.1} parent=0 // pred_check
    _
  $region35: #{forward.1} parent=0 // pred_check_branch
    %42 = sbr.rel (0) target = $region37
  $region36: #{forward.1} parent=0 // pred_region
    _
  $region37: #{forward.1} parent=0 // pred_fallthru
    _
  // Predicated region
  $region38: #{forward.1} parent=0 // pred_check
    _
  $region39: #{forward.1} parent=0 // pred_check_branch
    %44 = sbr.rel (0) target = $region41
  $region40: #{forward.1} parent=0 // pred_region
    _
  $region41: #{forward.1} parent=0 // pred_fallthru
    _
  // Predicated region
  $region42: #{forward.1} parent=0 // pred_check
    _
  $region43: #{forward.1} parent=0 // pred_check_branch
    %46 = sbr.rel (0) target = $region45
  $region44: #{forward.1} parent=0 // pred_region
    _
  $region45: #{forward.1} parent=0 // pred_fallthru
    _
  // Predicated region
  $region46: #{forward.1} parent=0 // pred_check
    _
  $region47: #{forward.1} parent=0 // pred_check_branch
    %48 = sbr.rel (0) target = $region49
  $region48: #{forward.1} parent=0 // pred_region
    _
  $region49: #{forward.1} parent=0 // pred_fallthru
    _
  // Predicated region
  $region50: #{forward.1} parent=0 // pred_check
    _
  $region51: #{forward.1} parent=0 // pred_check_branch
    %50 = sbr.rel (0) target = $region53
  $region52: #{forward.1} parent=0 // pred_region
    _
  $region53: #{forward.1} parent=0 // pred_fallthru
    _
  // Predicated region
  $region54: #{forward.1} parent=0 // pred_check
    _
  $region55: #{forward.1} parent=0 // pred_check_branch
    %52 = sbr.rel (0) target = $region57
  $region56: #{forward.1} parent=0 // pred_region
    _
  $region57: #{forward.1} parent=0 // pred_fallthru
    _
  // Predicated region
  $region58: #{forward.1} parent=0 // pred_check
    _
  $region59: #{forward.1} parent=0 // pred_check_branch
    %54 = sbr.rel (0) target = $region61
  $region60: #{forward.1} parent=0 // pred_region
    _
  $region61: #{forward.1} parent=0 // pred_fallthru
    _
  // Predicated region
  $region62: #{forward.1} parent=0 // pred_check
    _
  $region63: #{forward.1} parent=0 // pred_check_branch
    %56 = sbr.rel (0) target = $region65
  $region64: #{forward.1} parent=0 // pred_region
    _
  $region65: #{forward.1} parent=0 // pred_fallthru
    _
  // Predicated region
  $region66: #{forward.1} parent=0 // pred_check
    _
  $region67: #{forward.1} parent=0 // pred_check_branch
    %58 = sbr.rel (0) target = $region69
  $region68: #{forward.1} parent=0 // pred_region
    _
  $region69: #{forward.1} parent=0 // pred_fallthru
    _
  // Predicated region
  $region70: #{forward.1} parent=0 // pred_check
    _
  $region71: #{forward.1} parent=0 // pred_check_branch
    %60 = sbr.rel (0) target = $region73
  $region72: #{forward.1} parent=0 // pred_region
    _
  $region73: #{forward.1} parent=0 // pred_fallthru
    _
  // Predicated region
  $region74: #{forward.1} parent=0 // pred_check
    _
  $region75: #{forward.1} parent=0 // pred_check_branch
    %62 = sbr.rel (0) target = $region77
  $region76: #{forward.1} parent=0 // pred_region
    _
  $region77: #{forward.1} parent=0 // pred_fallthru
    _
  // Predicated region
  $region78: #{forward.1} parent=0 // pred_check
    _
  $region79: #{forward.1} parent=0 // pred_check_branch
    %64 = sbr.rel (0) target = $region81
  $region80: #{forward.1} parent=0 // pred_region
    _
  $region81: #{forward.1} parent=0 // pred_fallthru
    _
  %v65 = vld [vmem:[%s0] sm:$0x3]
  %v66 = vld [vmem:[%s4] sm:$0xff]
  %v67 = vld [vmem:[%s4 + $0x8] sm:$0xff]
  %v68 = vld [vmem:[%s4 + $0x10] sm:$0xff]
  %v69 = vld [vmem:[%s4 + $0x18] sm:$0xff]
  %v70 = vld [vmem:[%s4 + $0x20] sm:$0xff]
  %v71 = vld [vmem:[%s4 + $0x28] sm:$0xff]
  %v72 = vld [vmem:[%s5] sm:$0x1]
  %v74 = vlaneseq
  %v75 = vshrl.u32 %v74, 7
  %v76 = vsub.s32 0, %v75
  %v77 = vrot.slane %v72, %v76
  %vm79 = vcmask 392192
  %v81 = vsel %vm79, %v65, 0
  %83 = vmatprep.subr.mxu0 0.0
  %84 = vmatpush1.msra.mxu0 %v66
  %85 = vmatprep.subr.mxu0 0.0
  %86 = vmatpush1.msra.mxu0 %v67
  %87 = vmatprep.subr.mxu0 0.0
  %88 = vmatpush1.msra.mxu0 %v68
  %89 = vmatprep.subr.mxu0 0.0
  %90 = vmatpush1.msra.mxu0 %v69
  %91 = vmatprep.subr.mxu0 0.0
  %92 = vmatpush1.msra.mxu0 %v70
  %93 = vmatprep.subr.mxu0 0.0
  %94 = vmatpush1.msra.mxu0 %v71
  %95 = vmatprep.subr.mxu0 0.0
  %96 = vmatpush1.msra.mxu0 0.0
  %97 = vmatprep.subr.mxu0 0.0
  %98 = vmatpush1.msra.mxu0 0.0
  %99 = vmatprep.subr.mxu0 0.0
  %100 = vmatpush1.msra.mxu0 0.0
  %101 = vmatprep.subr.mxu0 0.0
  %102 = vmatpush1.msra.mxu0 0.0
  %103 = vmatprep.subr.mxu0 0.0
  %104 = vmatpush1.msra.mxu0 0.0
  %105 = vmatprep.subr.mxu0 0.0
  %106 = vmatpush1.msra.mxu0 0.0
  %107 = vmatprep.subr.mxu0 0.0
  %108 = vmatpush1.msra.mxu0 0.0
  %109 = vmatprep.subr.mxu0 0.0
  %110 = vmatpush1.msra.mxu0 0.0
  %111 = vmatprep.subr.mxu0 0.0
  %112 = vmatpush1.msra.mxu0 0.0
  %113 = vmatprep.subr.mxu0 0.0
  %114 = vmatpush1.msra.mxu0 0.0
  %115 = vmatprep.subr.mxu0 0.0
  %116 = vmatpush1.msra.mxu0 0.0
  %117 = vmatprep.subr.mxu0 0.0
  %118 = vmatpush1.msra.mxu0 0.0
  %119 = vmatprep.subr.mxu0 0.0
  %120 = vmatpush1.msra.mxu0 0.0
  %121 = vmatprep.subr.mxu0 0.0
  %122 = vmatpush1.msra.mxu0 0.0
  %123 = vmatprep.subr.mxu0 0.0
  %124 = vmatpush1.msra.mxu0 0.0
  %125 = vmatprep.subr.mxu0 0.0
  %126 = vmatpush1.msra.mxu0 0.0
  %127 = vmatprep.subr.mxu0 0.0
  %128 = vmatpush1.msra.mxu0 0.0
  %129 = vmatprep.subr.mxu0 0.0
  %130 = vmatpush1.msra.mxu0 0.0
  %131 = vmatprep.subr.mxu0 0.0
  %132 = vmatpush1.msra.mxu0 0.0
  %133 = vmatprep.subr.mxu0 0.0
  %134 = vmatpush1.msra.mxu0 0.0
  %135 = vmatprep.subr.mxu0 0.0
  %136 = vmatpush1.msra.mxu0 0.0
  %137 = vmatprep.subr.mxu0 0.0
  %138 = vmatpush1.msra.mxu0 0.0
  %139 = vmatprep.subr.mxu0 0.0
  %140 = vmatpush1.msra.mxu0 0.0
  %141 = vmatprep.subr.mxu0 0.0
  %142 = vmatpush1.msra.mxu0 0.0
  %143 = vmatprep.subr.mxu0 0.0
  %144 = vmatpush1.msra.mxu0 0.0
  %145 = vmatprep.subr.mxu0 0.0
  %146 = vmatpush1.msra.mxu0 0.0
  %147 = vmatprep.mubr.f32.mxu0 0.0
  %148 = vmatmul.mubr.f32.gmra.mrb[0].mxu0 %v81
  %v149 = vpop.f32.mrb[0].mxu0
  %v150 = vadd.f32 %v77, %v149
  %v151 = vpop.f32.mrb[0].mxu0
  %152 = vdwg.mxu0
  %v153 = vld [vmem:[%s2] sm:$0xff]
  %v154 = vld [vmem:[%s2 + $0x8] sm:$0xff]
  %v155 = vld [vmem:[%s2 + $0x10] sm:$0x3]
  %v156 = vld [vmem:[%s1] sm:$0xff]
  %v157 = vld [vmem:[%s1 + $0x8] sm:$0xff]
  %v158 = vld [vmem:[%s1 + $0x10] sm:$0x3]
  %vm159 = vcmask 15360
  %v161 = vsel %vm159, %v156, 0
  %v164 = vsel %vm159, %v157, 0
  %v167 = vsel %vm159, %v158, 0
  %vm169 = vcmask 1041408
  %v171 = vsel %vm169, %v150, 0
  %173 = vmatprep.subr.mxu0 0.0
  %174 = vmatpush1.msra.mxu0 %v171
  %175 = vmatprep.subr.mxu0 0.0
  %176 = vmatpush1.msra.mxu0 0.0
  %177 = vmatprep.subr.mxu0 0.0
  %178 = vmatpush1.msra.mxu0 0.0
  %179 = vmatprep.subr.mxu0 0.0
  %180 = vmatpush1.msra.mxu0 0.0
  %181 = vmatprep.subr.mxu0 0.0
  %182 = vmatpush1.msra.mxu0 0.0
  %183 = vmatprep.subr.mxu0 0.0
  %184 = vmatpush1.msra.mxu0 0.0
  %185 = vmatprep.subr.mxu0 0.0
  %186 = vmatpush1.msra.mxu0 0.0
  %187 = vmatprep.subr.mxu0 0.0
  %188 = vmatpush1.msra.mxu0 0.0
  %189 = vmatprep.subr.mxu0 0.0
  %190 = vmatpush1.msra.mxu0 0.0
  %191 = vmatprep.subr.mxu0 0.0
  %192 = vmatpush1.msra.mxu0 0.0
  %193 = vmatprep.subr.mxu0 0.0
  %194 = vmatpush1.msra.mxu0 0.0
  %195 = vmatprep.subr.mxu0 0.0
  %196 = vmatpush1.msra.mxu0 0.0
  %197 = vmatprep.subr.mxu0 0.0
  %198 = vmatpush1.msra.mxu0 0.0
  %199 = vmatprep.subr.mxu0 0.0
  %200 = vmatpush1.msra.mxu0 0.0
  %201 = vmatprep.subr.mxu0 0.0
  %202 = vmatpush1.msra.mxu0 0.0
  %203 = vmatprep.subr.mxu0 0.0
  %204 = vmatpush1.msra.mxu0 0.0
  %205 = vmatprep.subr.mxu0 0.0
  %206 = vmatpush1.msra.mxu0 0.0
  %207 = vmatprep.subr.mxu0 0.0
  %208 = vmatpush1.msra.mxu0 0.0
  %209 = vmatprep.subr.mxu0 0.0
  %210 = vmatpush1.msra.mxu0 0.0
  %211 = vmatprep.subr.mxu0 0.0
  %212 = vmatpush1.msra.mxu0 0.0
  %213 = vmatprep.subr.mxu0 0.0
  %214 = vmatpush1.msra.mxu0 0.0
  %215 = vmatprep.subr.mxu0 0.0
  %216 = vmatpush1.msra.mxu0 0.0
  %217 = vmatprep.subr.mxu0 0.0
  %218 = vmatpush1.msra.mxu0 0.0
  %219 = vmatprep.subr.mxu0 0.0
  %220 = vmatpush1.msra.mxu0 0.0
  %221 = vmatprep.subr.mxu0 0.0
  %222 = vmatpush1.msra.mxu0 0.0
  %223 = vmatprep.subr.mxu0 0.0
  %224 = vmatpush1.msra.mxu0 0.0
  %225 = vmatprep.subr.mxu0 0.0
  %226 = vmatpush1.msra.mxu0 0.0
  %227 = vmatprep.subr.mxu0 0.0
  %228 = vmatpush1.msra.mxu0 0.0
  %229 = vmatprep.subr.mxu0 0.0
  %230 = vmatpush1.msra.mxu0 0.0
  %231 = vmatprep.subr.mxu0 0.0
  %232 = vmatpush1.msra.mxu0 0.0
  %233 = vmatprep.subr.mxu0 0.0
  %234 = vmatpush1.msra.mxu0 0.0
  %235 = vmatprep.subr.mxu0 0.0
  %236 = vmatpush1.msra.mxu0 0.0
  %237 = vmatprep.mubr.f32.mxu0 0.0
  %238 = vmatmul.mubr.f32.gmra.mrb[0].mxu0 %v161
  %v239 = vpop.f32.mrb[0].mxu0
  %v240 = vadd.f32 0.0, %v239
  %v241 = vpop.f32.mrb[0].mxu0
  %242 = vmatprep.mubr.f32.mxu0 0.0
  %243 = vmatmul.mubr.f32.gmra.mrb[0].mxu0 %v164
  %v244 = vpop.f32.mrb[0].mxu0
  %v245 = vadd.f32 0.0, %v244
  %v246 = vpop.f32.mrb[0].mxu0
  %247 = vmatprep.mubr.f32.mxu0 0.0
  %248 = vmatmul.mubr.f32.gmra.mrb[0].mxu0 %v167
  %v249 = vpop.f32.mrb[0].mxu0
  %v250 = vadd.f32 0.0, %v249
  %v251 = vpop.f32.mrb[0].mxu0
  %252 = vdwg.mxu0
  %v253 = vadd.f32 %v153, %v240
  %v254 = vadd.f32 %v154, %v245
  %v255 = vadd.f32 %v155, %v250
  %v256 = vld [vmem:[%s6] sm:$0xff]
  %v257 = vld [vmem:[%s6 + $0x8] sm:$0xff]
  %v258 = vld [vmem:[%s6 + $0x10] sm:$0xff]
  %v259 = vld [vmem:[%s6 + $0x18] sm:$0xff]
  %v260 = vld [vmem:[%s7] sm:$0x1]
  %v262 = vlaneseq
  %v263 = vshrl.u32 %v262, 7
  %v264 = vsub.s32 0, %v263
  %v265 = vrot.slane %v260, %v264
  %vm267 = vcmask 261120
  %v269 = vsel %vm267, %v253, 0
  %v272 = vsel %vm267, %v254, 0
  %v275 = vsel %vm267, %v255, 0
  %277 = vmatprep.subr.mxu0 0.0
  %278 = vmatpush1.msra.mxu0 %v256
  %279 = vmatprep.subr.mxu0 0.0
  %280 = vmatpush1.msra.mxu0 %v257
  %281 = vmatprep.subr.mxu0 0.0
  %282 = vmatpush1.msra.mxu0 %v258
  %283 = vmatprep.subr.mxu0 0.0
  %284 = vmatpush1.msra.mxu0 %v259
  %285 = vmatprep.subr.mxu0 0.0
  %286 = vmatpush1.msra.mxu0 0.0
  %287 = vmatprep.subr.mxu0 0.0
  %288 = vmatpush1.msra.mxu0 0.0
  %289 = vmatprep.subr.mxu0 0.0
  %290 = vmatpush1.msra.mxu0 0.0
  %291 = vmatprep.subr.mxu0 0.0
  %292 = vmatpush1.msra.mxu0 0.0
  %293 = vmatprep.subr.mxu0 0.0
  %294 = vmatpush1.msra.mxu0 0.0
  %295 = vmatprep.subr.mxu0 0.0
  %296 = vmatpush1.msra.mxu0 0.0
  %297 = vmatprep.subr.mxu0 0.0
  %298 = vmatpush1.msra.mxu0 0.0
  %299 = vmatprep.subr.mxu0 0.0
  %300 = vmatpush1.msra.mxu0 0.0
  %301 = vmatprep.subr.mxu0 0.0
  %302 = vmatpush1.msra.mxu0 0.0
  %303 = vmatprep.subr.mxu0 0.0
  %304 = vmatpush1.msra.mxu0 0.0
  %305 = vmatprep.subr.mxu0 0.0
  %306 = vmatpush1.msra.mxu0 0.0
  %307 = vmatprep.subr.mxu0 0.0
  %308 = vmatpush1.msra.mxu0 0.0
  %309 = vmatprep.subr.mxu0 0.0
  %310 = vmatpush1.msra.mxu0 0.0
  %311 = vmatprep.subr.mxu0 0.0
  %312 = vmatpush1.msra.mxu0 0.0
  %313 = vmatprep.subr.mxu0 0.0
  %314 = vmatpush1.msra.mxu0 0.0
  %315 = vmatprep.subr.mxu0 0.0
  %316 = vmatpush1.msra.mxu0 0.0
  %317 = vmatprep.subr.mxu0 0.0
  %318 = vmatpush1.msra.mxu0 0.0
  %319 = vmatprep.subr.mxu0 0.0
  %320 = vmatpush1.msra.mxu0 0.0
  %321 = vmatprep.subr.mxu0 0.0
  %322 = vmatpush1.msra.mxu0 0.0
  %323 = vmatprep.subr.mxu0 0.0
  %324 = vmatpush1.msra.mxu0 0.0
  %325 = vmatprep.subr.mxu0 0.0
  %326 = vmatpush1.msra.mxu0 0.0
  %327 = vmatprep.subr.mxu0 0.0
  %328 = vmatpush1.msra.mxu0 0.0
  %329 = vmatprep.subr.mxu0 0.0
  %330 = vmatpush1.msra.mxu0 0.0
  %331 = vmatprep.subr.mxu0 0.0
  %332 = vmatpush1.msra.mxu0 0.0
  %333 = vmatprep.subr.mxu0 0.0
  %334 = vmatpush1.msra.mxu0 0.0
  %335 = vmatprep.subr.mxu0 0.0
  %336 = vmatpush1.msra.mxu0 0.0
  %337 = vmatprep.subr.mxu0 0.0
  %338 = vmatpush1.msra.mxu0 0.0
  %339 = vmatprep.subr.mxu0 0.0
  %340 = vmatpush1.msra.mxu0 0.0
  %341 = vmatprep.mubr.f32.mxu0 0.0
  %342 = vmatmul.mubr.f32.gmra.mrb[0].mxu0 %v269
  %v343 = vpop.f32.mrb[0].mxu0
  %v344 = vadd.f32 %v265, %v343
  %v345 = vpop.f32.mrb[0].mxu0
  %346 = vmatprep.mubr.f32.mxu0 0.0
  %347 = vmatmul.mubr.f32.gmra.mrb[0].mxu0 %v272
  %v348 = vpop.f32.mrb[0].mxu0
  %v349 = vadd.f32 %v265, %v348
  %v350 = vpop.f32.mrb[0].mxu0
  %351 = vmatprep.mubr.f32.mxu0 0.0
  %352 = vmatmul.mubr.f32.gmra.mrb[0].mxu0 %v275
  %v353 = vpop.f32.mrb[0].mxu0
  %v354 = vadd.f32 %v265, %v353
  %v355 = vpop.f32.mrb[0].mxu0
  %356 = vdwg.mxu0
  %v357 = vmul.f32 %v344, 0.35355338
  %v358 = vmul.f32 %v349, 0.35355338
  %v359 = vmul.f32 %v354, 0.35355338
  %v360 = vld [vmem:[%s3] sm:$0xff]
  %v361 = vld [vmem:[%s3 + $0x8] sm:$0x1]
  %364 = vrot.lane.b32.xlu0 %v344, 96
  %v365 = vpop.permute.xlu0 %364
  %366 = vrot.lane.b32.xlu0 %v349, 96
  %v367 = vpop.permute.xlu0 %366
  %vm368 = vcmask 64512
  %v370 = vsel %vm368, %v357, 0
  %v373 = vsel %vm368, %v358, 0
  %v375 = vsel %vm368, %v365, 0
  %v377 = vsel %vm368, %v367, 0
  %379 = vmatprep.subr.mxu0 0.0
  %380 = vmatpush1.xpose.msra.mxu0 %v375
  %381 = vmatprep.subr.mxu0 0.0
  %382 = vmatpush1.xpose.msra.mxu0 %v377
  %383 = vmatprep.subr.mxu0 0.0
  %384 = vmatpush1.xpose.msra.mxu0 0.0
  %385 = vmatprep.subr.mxu0 0.0
  %386 = vmatpush1.xpose.msra.mxu0 0.0
  %387 = vmatprep.subr.mxu0 0.0
  %388 = vmatpush1.xpose.msra.mxu0 0.0
  %389 = vmatprep.subr.mxu0 0.0
  %390 = vmatpush1.xpose.msra.mxu0 0.0
  %391 = vmatprep.subr.mxu0 0.0
  %392 = vmatpush1.xpose.msra.mxu0 0.0
  %393 = vmatprep.subr.mxu0 0.0
  %394 = vmatpush1.xpose.msra.mxu0 0.0
  %395 = vmatprep.subr.mxu0 0.0
  %396 = vmatpush1.xpose.msra.mxu0 0.0
  %397 = vmatprep.subr.mxu0 0.0
  %398 = vmatpush1.xpose.msra.mxu0 0.0
  %399 = vmatprep.subr.mxu0 0.0
  %400 = vmatpush1.xpose.msra.mxu0 0.0
  %401 = vmatprep.subr.mxu0 0.0
  %402 = vmatpush1.xpose.msra.mxu0 0.0
  %403 = vmatprep.subr.mxu0 0.0
  %404 = vmatpush1.xpose.msra.mxu0 0.0
  %405 = vmatprep.subr.mxu0 0.0
  %406 = vmatpush1.xpose.msra.mxu0 0.0
  %407 = vmatprep.subr.mxu0 0.0
  %408 = vmatpush1.xpose.msra.mxu0 0.0
  %409 = vmatprep.subr.mxu0 0.0
  %410 = vmatpush1.xpose.msra.mxu0 0.0
  %411 = vmatprep.subr.mxu0 0.0
  %412 = vmatpush1.xpose.msra.mxu0 0.0
  %413 = vmatprep.subr.mxu0 0.0
  %414 = vmatpush1.xpose.msra.mxu0 0.0
  %415 = vmatprep.subr.mxu0 0.0
  %416 = vmatpush1.xpose.msra.mxu0 0.0
  %417 = vmatprep.subr.mxu0 0.0
  %418 = vmatpush1.xpose.msra.mxu0 0.0
  %419 = vmatprep.subr.mxu0 0.0
  %420 = vmatpush1.xpose.msra.mxu0 0.0
  %421 = vmatprep.subr.mxu0 0.0
  %422 = vmatpush1.xpose.msra.mxu0 0.0
  %423 = vmatprep.subr.mxu0 0.0
  %424 = vmatpush1.xpose.msra.mxu0 0.0
  %425 = vmatprep.subr.mxu0 0.0
  %426 = vmatpush1.xpose.msra.mxu0 0.0
  %427 = vmatprep.subr.mxu0 0.0
  %428 = vmatpush1.xpose.msra.mxu0 0.0
  %429 = vmatprep.subr.mxu0 0.0
  %430 = vmatpush1.xpose.msra.mxu0 0.0
  %431 = vmatprep.subr.mxu0 0.0
  %432 = vmatpush1.xpose.msra.mxu0 0.0
  %433 = vmatprep.subr.mxu0 0.0
  %434 = vmatpush1.xpose.msra.mxu0 0.0
  %435 = vmatprep.subr.mxu0 0.0
  %436 = vmatpush1.xpose.msra.mxu0 0.0
  %437 = vmatprep.subr.mxu0 0.0
  %438 = vmatpush1.xpose.msra.mxu0 0.0
  %439 = vmatprep.subr.mxu0 0.0
  %440 = vmatpush1.xpose.msra.mxu0 0.0
  %441 = vmatprep.subr.mxu0 0.0
  %442 = vmatpush1.xpose.msra.mxu0 0.0
  %443 = vmatprep.mubr.f32.mxu0 0.0
  %444 = vmatmul.mubr.f32.gmra.mrb[0].mxu0 %v370
  %v445 = vpop.f32.mrb[0].mxu0
  %v446 = vadd.f32 %v360, %v445
  %v447 = vpop.f32.mrb[0].mxu0
  %448 = vmatprep.mubr.f32.mxu0 0.0
  %449 = vmatmul.mubr.f32.gmra.mrb[0].mxu0 %v373
  %v450 = vpop.f32.mrb[0].mxu0
  %v451 = vadd.f32 %v361, %v450
  %v452 = vpop.f32.mrb[0].mxu0
  %453 = vdwg.mxu0
  %vm454 = vcmask 72704
  %v455 = vsel %vm454, %v446, -inf
  %456 = vmax.xlane.f32.xlu0 %v455
  %v457 = vpop.xlane.xlu0 %456
  %vm458 = vcmask 65536
  %v459 = vsel %vm458, %v451, -inf
  %460 = vmax.xlane.f32.xlu0 %v459
  %v461 = vpop.xlane.xlu0 %460
  %v462 = vsub.f32 %v446, %v457
  %v463 = vsub.f32 %v451, %v461
  %v464 = vmul.f32 %v462, 1.442695
  %v465 = vpow.pop %v464
  %v466 = vmul.f32 %v463, 1.442695
  %v467 = vpow.pop %v466
  %v468 = vsel %vm454, %v465, 0.0
  %469 = vadd.xlane.f32.xlu0 %v468
  %v470 = vpop.xlane.xlu0 %469
  %v471 = vsel %vm458, %v467, 0.0
  %472 = vadd.xlane.f32.xlu0 %v471
  %v473 = vpop.xlane.xlu0 %472
  %474 = vrot.lane.b32.xlu0 %v344, 64
  %v475 = vpop.permute.xlu0 %474
  %476 = vrot.lane.b32.xlu0 %v349, 64
  %v477 = vpop.permute.xlu0 %476
  %v480 = vsel %vm454, %v465, 0
  %v483 = vsel %vm454, %v467, 0
  %vm485 = vcmask 1040384
  %v486 = vsel %vm485, %v477, 0
  %488 = vmatprep.subr.mxu0 0.0
  %489 = vmatpush1.msra.mxu0 %v475
  %490 = vmatprep.subr.mxu0 0.0
  %491 = vmatpush1.msra.mxu0 %v486
  %492 = vmatprep.subr.mxu0 0.0
  %493 = vmatpush1.msra.mxu0 0.0
  %494 = vmatprep.subr.mxu0 0.0
  %495 = vmatpush1.msra.mxu0 0.0
  %496 = vmatprep.subr.mxu0 0.0
  %497 = vmatpush1.msra.mxu0 0.0
  %498 = vmatprep.subr.mxu0 0.0
  %499 = vmatpush1.msra.mxu0 0.0
  %500 = vmatprep.subr.mxu0 0.0
  %501 = vmatpush1.msra.mxu0 0.0
  %502 = vmatprep.subr.mxu0 0.0
  %503 = vmatpush1.msra.mxu0 0.0
  %504 = vmatprep.subr.mxu0 0.0
  %505 = vmatpush1.msra.mxu0 0.0
  %506 = vmatprep.subr.mxu0 0.0
  %507 = vmatpush1.msra.mxu0 0.0
  %508 = vmatprep.subr.mxu0 0.0
  %509 = vmatpush1.msra.mxu0 0.0
  %510 = vmatprep.subr.mxu0 0.0
  %511 = vmatpush1.msra.mxu0 0.0
  %512 = vmatprep.subr.mxu0 0.0
  %513 = vmatpush1.msra.mxu0 0.0
  %514 = vmatprep.subr.mxu0 0.0
  %515 = vmatpush1.msra.mxu0 0.0
  %516 = vmatprep.subr.mxu0 0.0
  %517 = vmatpush1.msra.mxu0 0.0
  %518 = vmatprep.subr.mxu0 0.0
  %519 = vmatpush1.msra.mxu0 0.0
  %520 = vmatprep.subr.mxu0 0.0
  %521 = vmatpush1.msra.mxu0 0.0
  %522 = vmatprep.subr.mxu0 0.0
  %523 = vmatpush1.msra.mxu0 0.0
  %524 = vmatprep.subr.mxu0 0.0
  %525 = vmatpush1.msra.mxu0 0.0
  %526 = vmatprep.subr.mxu0 0.0
  %527 = vmatpush1.msra.mxu0 0.0
  %528 = vmatprep.subr.mxu0 0.0
  %529 = vmatpush1.msra.mxu0 0.0
  %530 = vmatprep.subr.mxu0 0.0
  %531 = vmatpush1.msra.mxu0 0.0
  %532 = vmatprep.subr.mxu0 0.0
  %533 = vmatpush1.msra.mxu0 0.0
  %534 = vmatprep.subr.mxu0 0.0
  %535 = vmatpush1.msra.mxu0 0.0
  %536 = vmatprep.subr.mxu0 0.0
  %537 = vmatpush1.msra.mxu0 0.0
  %538 = vmatprep.subr.mxu0 0.0
  %539 = vmatpush1.msra.mxu0 0.0
  %540 = vmatprep.subr.mxu0 0.0
  %541 = vmatpush1.msra.mxu0 0.0
  %542 = vmatprep.subr.mxu0 0.0
  %543 = vmatpush1.msra.mxu0 0.0
  %544 = vmatprep.subr.mxu0 0.0
  %545 = vmatpush1.msra.mxu0 0.0
  %546 = vmatprep.subr.mxu0 0.0
  %547 = vmatpush1.msra.mxu0 0.0
  %548 = vmatprep.subr.mxu0 0.0
  %549 = vmatpush1.msra.mxu0 0.0
  %550 = vmatprep.subr.mxu0 0.0
  %551 = vmatpush1.msra.mxu0 0.0
  %552 = vmatprep.mubr.f32.mxu0 0.0
  %553 = vmatmul.mubr.f32.gmra.mrb[0].mxu0 %v480
  %v554 = vpop.f32.mrb[0].mxu0
  %v555 = vadd.f32 0.0, %v554
  %v556 = vpop.f32.mrb[0].mxu0
  %557 = vmatprep.mubr.f32.mxu0 0.0
  %558 = vmatmul.mubr.f32.gmra.mrb[0].mxu0 %v483
  %v559 = vpop.f32.mrb[0].mxu0
  %v560 = vadd.f32 0.0, %v559
  %v561 = vpop.f32.mrb[0].mxu0
  %562 = vdwg.mxu0
  %v563 = vrcp.pop %v470
  %v564 = vrcp.pop %v473
  %v565 = vmul.f32 %v555, %v563
  %v566 = vmul.f32 %v560, %v564
  %567 = vst.msk [vmem:[#allocation2] sm:$0xff] %vm368, %v565
  %vm568 = vcmask 57344
  %569 = vst.msk [vmem:[#allocation2 + $0x8] sm:$0x1] %vm568, %v566
  %570 = vrot.lane.b32.xlu0 %v357, 120
  %v571 = vpop.permute.xlu0 %570
  %572 = vrot.lane.b32.xlu0 %v358, 120
  %v573 = vpop.permute.xlu0 %572
  %574 = vrot.lane.b32.xlu0 %v344, 88
  %v575 = vpop.permute.xlu0 %574
  %576 = vrot.lane.b32.xlu0 %v349, 88
  %v577 = vpop.permute.xlu0 %576
  %v578 = vsel %vm368, %v571, 0
  %v580 = vsel %vm368, %v573, 0
  %v582 = vsel %vm368, %v575, 0
  %v584 = vsel %vm368, %v577, 0
  %586 = vmatprep.subr.mxu0 0.0
  %587 = vmatpush1.xpose.msra.mxu0 %v582
  %588 = vmatprep.subr.mxu0 0.0
  %589 = vmatpush1.xpose.msra.mxu0 %v584
  %590 = vmatprep.subr.mxu0 0.0
  %591 = vmatpush1.xpose.msra.mxu0 0.0
  %592 = vmatprep.subr.mxu0 0.0
  %593 = vmatpush1.xpose.msra.mxu0 0.0
  %594 = vmatprep.subr.mxu0 0.0
  %595 = vmatpush1.xpose.msra.mxu0 0.0
  %596 = vmatprep.subr.mxu0 0.0
  %597 = vmatpush1.xpose.msra.mxu0 0.0
  %598 = vmatprep.subr.mxu0 0.0
  %599 = vmatpush1.xpose.msra.mxu0 0.0
  %600 = vmatprep.subr.mxu0 0.0
  %601 = vmatpush1.xpose.msra.mxu0 0.0
  %602 = vmatprep.subr.mxu0 0.0
  %603 = vmatpush1.xpose.msra.mxu0 0.0
  %604 = vmatprep.subr.mxu0 0.0
  %605 = vmatpush1.xpose.msra.mxu0 0.0
  %606 = vmatprep.subr.mxu0 0.0
  %607 = vmatpush1.xpose.msra.mxu0 0.0
  %608 = vmatprep.subr.mxu0 0.0
  %609 = vmatpush1.xpose.msra.mxu0 0.0
  %610 = vmatprep.subr.mxu0 0.0
  %611 = vmatpush1.xpose.msra.mxu0 0.0
  %612 = vmatprep.subr.mxu0 0.0
  %613 = vmatpush1.xpose.msra.mxu0 0.0
  %614 = vmatprep.subr.mxu0 0.0
  %615 = vmatpush1.xpose.msra.mxu0 0.0
  %616 = vmatprep.subr.mxu0 0.0
  %617 = vmatpush1.xpose.msra.mxu0 0.0
  %618 = vmatprep.subr.mxu0 0.0
  %619 = vmatpush1.xpose.msra.mxu0 0.0
  %620 = vmatprep.subr.mxu0 0.0
  %621 = vmatpush1.xpose.msra.mxu0 0.0
  %622 = vmatprep.subr.mxu0 0.0
  %623 = vmatpush1.xpose.msra.mxu0 0.0
  %624 = vmatprep.subr.mxu0 0.0
  %625 = vmatpush1.xpose.msra.mxu0 0.0
  %626 = vmatprep.subr.mxu0 0.0
  %627 = vmatpush1.xpose.msra.mxu0 0.0
  %628 = vmatprep.subr.mxu0 0.0
  %629 = vmatpush1.xpose.msra.mxu0 0.0
  %630 = vmatprep.subr.mxu0 0.0
  %631 = vmatpush1.xpose.msra.mxu0 0.0
  %632 = vmatprep.subr.mxu0 0.0
  %633 = vmatpush1.xpose.msra.mxu0 0.0
  %634 = vmatprep.subr.mxu0 0.0
  %635 = vmatpush1.xpose.msra.mxu0 0.0
  %636 = vmatprep.subr.mxu0 0.0
  %637 = vmatpush1.xpose.msra.mxu0 0.0
  %638 = vmatprep.subr.mxu0 0.0
  %639 = vmatpush1.xpose.msra.mxu0 0.0
  %640 = vmatprep.subr.mxu0 0.0
  %641 = vmatpush1.xpose.msra.mxu0 0.0
  %642 = vmatprep.subr.mxu0 0.0
  %643 = vmatpush1.xpose.msra.mxu0 0.0
  %644 = vmatprep.subr.mxu0 0.0
  %645 = vmatpush1.xpose.msra.mxu0 0.0
  %646 = vmatprep.subr.mxu0 0.0
  %647 = vmatpush1.xpose.msra.mxu0 0.0
  %648 = vmatprep.subr.mxu0 0.0
  %649 = vmatpush1.xpose.msra.mxu0 0.0
  %650 = vmatprep.mubr.f32.mxu0 0.0
  %651 = vmatmul.mubr.f32.gmra.mrb[0].mxu0 %v578
  %v652 = vpop.f32.mrb[0].mxu0
  %v653 = vadd.f32 %v360, %v652
  %v654 = vpop.f32.mrb[0].mxu0
  %655 = vmatprep.mubr.f32.mxu0 0.0
  %656 = vmatmul.mubr.f32.gmra.mrb[0].mxu0 %v580
  %v657 = vpop.f32.mrb[0].mxu0
  %v658 = vadd.f32 %v361, %v657
  %v659 = vpop.f32.mrb[0].mxu0
  %660 = vdwg.mxu0
  %v661 = vsel %vm454, %v653, -inf
  %662 = vmax.xlane.f32.xlu0 %v661
  %v663 = vpop.xlane.xlu0 %662
  %v664 = vsel %vm458, %v658, -inf
  %665 = vmax.xlane.f32.xlu0 %v664
  %v666 = vpop.xlane.xlu0 %665
  %v667 = vsub.f32 %v653, %v663
  %v668 = vsub.f32 %v658, %v666
  %v669 = vmul.f32 %v667, 1.442695
  %v670 = vpow.pop %v669
  %v671 = vmul.f32 %v668, 1.442695
  %v672 = vpow.pop %v671
  %v673 = vsel %vm454, %v670, 0.0
  %674 = vadd.xlane.f32.xlu0 %v673
  %v675 = vpop.xlane.xlu0 %674
  %v676 = vsel %vm458, %v672, 0.0
  %677 = vadd.xlane.f32.xlu0 %v676
  %v678 = vpop.xlane.xlu0 %677
  %679 = vrot.lane.b32.xlu0 %v344, 56
  %v680 = vpop.permute.xlu0 %679
  %681 = vrot.lane.b32.xlu0 %v349, 56
  %v682 = vpop.permute.xlu0 %681
  %v685 = vsel %vm454, %v670, 0
  %v688 = vsel %vm454, %v672, 0
  %v690 = vsel %vm485, %v682, 0
  %692 = vmatprep.subr.mxu0 0.0
  %693 = vmatpush1.msra.mxu0 %v680
  %694 = vmatprep.subr.mxu0 0.0
  %695 = vmatpush1.msra.mxu0 %v690
  %696 = vmatprep.subr.mxu0 0.0
  %697 = vmatpush1.msra.mxu0 0.0
  %698 = vmatprep.subr.mxu0 0.0
  %699 = vmatpush1.msra.mxu0 0.0
  %700 = vmatprep.subr.mxu0 0.0
  %701 = vmatpush1.msra.mxu0 0.0
  %702 = vmatprep.subr.mxu0 0.0
  %703 = vmatpush1.msra.mxu0 0.0
  %704 = vmatprep.subr.mxu0 0.0
  %705 = vmatpush1.msra.mxu0 0.0
  %706 = vmatprep.subr.mxu0 0.0
  %707 = vmatpush1.msra.mxu0 0.0
  %708 = vmatprep.subr.mxu0 0.0
  %709 = vmatpush1.msra.mxu0 0.0
  %710 = vmatprep.subr.mxu0 0.0
  %711 = vmatpush1.msra.mxu0 0.0
  %712 = vmatprep.subr.mxu0 0.0
  %713 = vmatpush1.msra.mxu0 0.0
  %714 = vmatprep.subr.mxu0 0.0
  %715 = vmatpush1.msra.mxu0 0.0
  %716 = vmatprep.subr.mxu0 0.0
  %717 = vmatpush1.msra.mxu0 0.0
  %718 = vmatprep.subr.mxu0 0.0
  %719 = vmatpush1.msra.mxu0 0.0
  %720 = vmatprep.subr.mxu0 0.0
  %721 = vmatpush1.msra.mxu0 0.0
  %722 = vmatprep.subr.mxu0 0.0
  %723 = vmatpush1.msra.mxu0 0.0
  %724 = vmatprep.subr.mxu0 0.0
  %725 = vmatpush1.msra.mxu0 0.0
  %726 = vmatprep.subr.mxu0 0.0
  %727 = vmatpush1.msra.mxu0 0.0
  %728 = vmatprep.subr.mxu0 0.0
  %729 = vmatpush1.msra.mxu0 0.0
  %730 = vmatprep.subr.mxu0 0.0
  %731 = vmatpush1.msra.mxu0 0.0
  %732 = vmatprep.subr.mxu0 0.0
  %733 = vmatpush1.msra.mxu0 0.0
  %734 = vmatprep.subr.mxu0 0.0
  %735 = vmatpush1.msra.mxu0 0.0
  %736 = vmatprep.subr.mxu0 0.0
  %737 = vmatpush1.msra.mxu0 0.0
  %738 = vmatprep.subr.mxu0 0.0
  %739 = vmatpush1.msra.mxu0 0.0
  %740 = vmatprep.subr.mxu0 0.0
  %741 = vmatpush1.msra.mxu0 0.0
  %742 = vmatprep.subr.mxu0 0.0
  %743 = vmatpush1.msra.mxu0 0.0
  %744 = vmatprep.subr.mxu0 0.0
  %745 = vmatpush1.msra.mxu0 0.0
  %746 = vmatprep.subr.mxu0 0.0
  %747 = vmatpush1.msra.mxu0 0.0
  %748 = vmatprep.subr.mxu0 0.0
  %749 = vmatpush1.msra.mxu0 0.0
  %750 = vmatprep.subr.mxu0 0.0
  %751 = vmatpush1.msra.mxu0 0.0
  %752 = vmatprep.subr.mxu0 0.0
  %753 = vmatpush1.msra.mxu0 0.0
  %754 = vmatprep.subr.mxu0 0.0
  %755 = vmatpush1.msra.mxu0 0.0
  %756 = vmatprep.mubr.f32.mxu0 0.0
  %757 = vmatmul.mubr.f32.gmra.mrb[0].mxu0 %v685
  %v758 = vpop.f32.mrb[0].mxu0
  %v759 = vadd.f32 0.0, %v758
  %v760 = vpop.f32.mrb[0].mxu0
  %761 = vmatprep.mubr.f32.mxu0 0.0
  %762 = vmatmul.mubr.f32.gmra.mrb[0].mxu0 %v688
  %v763 = vpop.f32.mrb[0].mxu0
  %v764 = vadd.f32 0.0, %v763
  %v765 = vpop.f32.mrb[0].mxu0
  %766 = vdwg.mxu0
  %v767 = vrcp.pop %v675
  %v768 = vrcp.pop %v678
  %v769 = vmul.f32 %v759, %v767
  %v770 = vmul.f32 %v764, %v768
  %773 = vrot.lane.b32.xlu0 %v769, 8
  %v774 = vpop.permute.xlu0 %773
  %775 = vrot.lane.b32.xlu0 %v770, 8
  %v776 = vpop.permute.xlu0 %775
  %vm779 = vcmask 130112
  %780 = vst.msk [vmem:[#allocation2] sm:$0xff] %vm779, %v774
  %vm781 = vcmask 122944
  %782 = vst.msk [vmem:[#allocation2 + $0x8] sm:$0x1] %vm781, %v776
  %783 = vrot.lane.b32.xlu0 %v357, 112
  %v784 = vpop.permute.xlu0 %783
  %785 = vrot.lane.b32.xlu0 %v358, 112
  %v786 = vpop.permute.xlu0 %785
  %787 = vrot.lane.b32.xlu0 %v344, 80
  %v788 = vpop.permute.xlu0 %787
  %789 = vrot.lane.b32.xlu0 %v349, 80
  %v790 = vpop.permute.xlu0 %789
  %v791 = vsel %vm368, %v784, 0
  %v793 = vsel %vm368, %v786, 0
  %v795 = vsel %vm368, %v788, 0
  %v797 = vsel %vm368, %v790, 0
  %799 = vmatprep.subr.mxu0 0.0
  %800 = vmatpush1.xpose.msra.mxu0 %v795
  %801 = vmatprep.subr.mxu0 0.0
  %802 = vmatpush1.xpose.msra.mxu0 %v797
  %803 = vmatprep.subr.mxu0 0.0
  %804 = vmatpush1.xpose.msra.mxu0 0.0
  %805 = vmatprep.subr.mxu0 0.0
  %806 = vmatpush1.xpose.msra.mxu0 0.0
  %807 = vmatprep.subr.mxu0 0.0
  %808 = vmatpush1.xpose.msra.mxu0 0.0
  %809 = vmatprep.subr.mxu0 0.0
  %810 = vmatpush1.xpose.msra.mxu0 0.0
  %811 = vmatprep.subr.mxu0 0.0
  %812 = vmatpush1.xpose.msra.mxu0 0.0
  %813 = vmatprep.subr.mxu0 0.0
  %814 = vmatpush1.xpose.msra.mxu0 0.0
  %815 = vmatprep.subr.mxu0 0.0
  %816 = vmatpush1.xpose.msra.mxu0 0.0
  %817 = vmatprep.subr.mxu0 0.0
  %818 = vmatpush1.xpose.msra.mxu0 0.0
  %819 = vmatprep.subr.mxu0 0.0
  %820 = vmatpush1.xpose.msra.mxu0 0.0
  %821 = vmatprep.subr.mxu0 0.0
  %822 = vmatpush1.xpose.msra.mxu0 0.0
  %823 = vmatprep.subr.mxu0 0.0
  %824 = vmatpush1.xpose.msra.mxu0 0.0
  %825 = vmatprep.subr.mxu0 0.0
  %826 = vmatpush1.xpose.msra.mxu0 0.0
  %827 = vmatprep.subr.mxu0 0.0
  %828 = vmatpush1.xpose.msra.mxu0 0.0
  %829 = vmatprep.subr.mxu0 0.0
  %830 = vmatpush1.xpose.msra.mxu0 0.0
  %831 = vmatprep.subr.mxu0 0.0
  %832 = vmatpush1.xpose.msra.mxu0 0.0
  %833 = vmatprep.subr.mxu0 0.0
  %834 = vmatpush1.xpose.msra.mxu0 0.0
  %835 = vmatprep.subr.mxu0 0.0
  %836 = vmatpush1.xpose.msra.mxu0 0.0
  %837 = vmatprep.subr.mxu0 0.0
  %838 = vmatpush1.xpose.msra.mxu0 0.0
  %839 = vmatprep.subr.mxu0 0.0
  %840 = vmatpush1.xpose.msra.mxu0 0.0
  %841 = vmatprep.subr.mxu0 0.0
  %842 = vmatpush1.xpose.msra.mxu0 0.0
  %843 = vmatprep.subr.mxu0 0.0
  %844 = vmatpush1.xpose.msra.mxu0 0.0
  %845 = vmatprep.subr.mxu0 0.0
  %846 = vmatpush1.xpose.msra.mxu0 0.0
  %847 = vmatprep.subr.mxu0 0.0
  %848 = vmatpush1.xpose.msra.mxu0 0.0
  %849 = vmatprep.subr.mxu0 0.0
  %850 = vmatpush1.xpose.msra.mxu0 0.0
  %851 = vmatprep.subr.mxu0 0.0
  %852 = vmatpush1.xpose.msra.mxu0 0.0
  %853 = vmatprep.subr.mxu0 0.0
  %854 = vmatpush1.xpose.msra.mxu0 0.0
  %855 = vmatprep.subr.mxu0 0.0
  %856 = vmatpush1.xpose.msra.mxu0 0.0
  %857 = vmatprep.subr.mxu0 0.0
  %858 = vmatpush1.xpose.msra.mxu0 0.0
  %859 = vmatprep.subr.mxu0 0.0
  %860 = vmatpush1.xpose.msra.mxu0 0.0
  %861 = vmatprep.subr.mxu0 0.0
  %862 = vmatpush1.xpose.msra.mxu0 0.0
  %863 = vmatprep.mubr.f32.mxu0 0.0
  %864 = vmatmul.mubr.f32.gmra.mrb[0].mxu0 %v791
  %v865 = vpop.f32.mrb[0].mxu0
  %v866 = vadd.f32 %v360, %v865
  %v867 = vpop.f32.mrb[0].mxu0
  %868 = vmatprep.mubr.f32.mxu0 0.0
  %869 = vmatmul.mubr.f32.gmra.mrb[0].mxu0 %v793
  %v870 = vpop.f32.mrb[0].mxu0
  %v871 = vadd.f32 %v361, %v870
  %v872 = vpop.f32.mrb[0].mxu0
  %873 = vdwg.mxu0
  %v874 = vsel %vm454, %v866, -inf
  %875 = vmax.xlane.f32.xlu0 %v874
  %v876 = vpop.xlane.xlu0 %875
  %v877 = vsel %vm458, %v871, -inf
  %878 = vmax.xlane.f32.xlu0 %v877
  %v879 = vpop.xlane.xlu0 %878
  %v880 = vsub.f32 %v866, %v876
  %v881 = vsub.f32 %v871, %v879
  %v882 = vmul.f32 %v880, 1.442695
  %v883 = vpow.pop %v882
  %v884 = vmul.f32 %v881, 1.442695
  %v885 = vpow.pop %v884
  %v886 = vsel %vm454, %v883, 0.0
  %887 = vadd.xlane.f32.xlu0 %v886
  %v888 = vpop.xlane.xlu0 %887
  %v889 = vsel %vm458, %v885, 0.0
  %890 = vadd.xlane.f32.xlu0 %v889
  %v891 = vpop.xlane.xlu0 %890
  %892 = vrot.lane.b32.xlu0 %v344, 48
  %v893 = vpop.permute.xlu0 %892
  %894 = vrot.lane.b32.xlu0 %v349, 48
  %v895 = vpop.permute.xlu0 %894
  %v898 = vsel %vm454, %v883, 0
  %v901 = vsel %vm454, %v885, 0
  %v903 = vsel %vm485, %v895, 0
  %905 = vmatprep.subr.mxu0 0.0
  %906 = vmatpush1.msra.mxu0 %v893
  %907 = vmatprep.subr.mxu0 0.0
  %908 = vmatpush1.msra.mxu0 %v903
  %909 = vmatprep.subr.mxu0 0.0
  %910 = vmatpush1.msra.mxu0 0.0
  %911 = vmatprep.subr.mxu0 0.0
  %912 = vmatpush1.msra.mxu0 0.0
  %913 = vmatprep.subr.mxu0 0.0
  %914 = vmatpush1.msra.mxu0 0.0
  %915 = vmatprep.subr.mxu0 0.0
  %916 = vmatpush1.msra.mxu0 0.0
  %917 = vmatprep.subr.mxu0 0.0
  %918 = vmatpush1.msra.mxu0 0.0
  %919 = vmatprep.subr.mxu0 0.0
  %920 = vmatpush1.msra.mxu0 0.0
  %921 = vmatprep.subr.mxu0 0.0
  %922 = vmatpush1.msra.mxu0 0.0
  %923 = vmatprep.subr.mxu0 0.0
  %924 = vmatpush1.msra.mxu0 0.0
  %925 = vmatprep.subr.mxu0 0.0
  %926 = vmatpush1.msra.mxu0 0.0
  %927 = vmatprep.subr.mxu0 0.0
  %928 = vmatpush1.msra.mxu0 0.0
  %929 = vmatprep.subr.mxu0 0.0
  %930 = vmatpush1.msra.mxu0 0.0
  %931 = vmatprep.subr.mxu0 0.0
  %932 = vmatpush1.msra.mxu0 0.0
  %933 = vmatprep.subr.mxu0 0.0
  %934 = vmatpush1.msra.mxu0 0.0
  %935 = vmatprep.subr.mxu0 0.0
  %936 = vmatpush1.msra.mxu0 0.0
  %937 = vmatprep.subr.mxu0 0.0
  %938 = vmatpush1.msra.mxu0 0.0
  %939 = vmatprep.subr.mxu0 0.0
  %940 = vmatpush1.msra.mxu0 0.0
  %941 = vmatprep.subr.mxu0 0.0
  %942 = vmatpush1.msra.mxu0 0.0
  %943 = vmatprep.subr.mxu0 0.0
  %944 = vmatpush1.msra.mxu0 0.0
  %945 = vmatprep.subr.mxu0 0.0
  %946 = vmatpush1.msra.mxu0 0.0
  %947 = vmatprep.subr.mxu0 0.0
  %948 = vmatpush1.msra.mxu0 0.0
  %949 = vmatprep.subr.mxu0 0.0
  %950 = vmatpush1.msra.mxu0 0.0
  %951 = vmatprep.subr.mxu0 0.0
  %952 = vmatpush1.msra.mxu0 0.0
  %953 = vmatprep.subr.mxu0 0.0
  %954 = vmatpush1.msra.mxu0 0.0
  %955 = vmatprep.subr.mxu0 0.0
  %956 = vmatpush1.msra.mxu0 0.0
  %957 = vmatprep.subr.mxu0 0.0
  %958 = vmatpush1.msra.mxu0 0.0
  %959 = vmatprep.subr.mxu0 0.0
  %960 = vmatpush1.msra.mxu0 0.0
  %961 = vmatprep.subr.mxu0 0.0
  %962 = vmatpush1.msra.mxu0 0.0
  %963 = vmatprep.subr.mxu0 0.0
  %964 = vmatpush1.msra.mxu0 0.0
  %965 = vmatprep.subr.mxu0 0.0
  %966 = vmatpush1.msra.mxu0 0.0
  %967 = vmatprep.subr.mxu0 0.0
  %968 = vmatpush1.msra.mxu0 0.0
  %969 = vmatprep.mubr.f32.mxu0 0.0
  %970 = vmatmul.mubr.f32.gmra.mrb[0].mxu0 %v898
  %v971 = vpop.f32.mrb[0].mxu0
  %v972 = vadd.f32 0.0, %v971
  %v973 = vpop.f32.mrb[0].mxu0
  %974 = vmatprep.mubr.f32.mxu0 0.0
  %975 = vmatmul.mubr.f32.gmra.mrb[0].mxu0 %v901
  %v976 = vpop.f32.mrb[0].mxu0
  %v977 = vadd.f32 0.0, %v976
  %v978 = vpop.f32.mrb[0].mxu0
  %979 = vdwg.mxu0
  %v980 = vrcp.pop %v888
  %v981 = vrcp.pop %v891
  %v982 = vmul.f32 %v972, %v980
  %v983 = vmul.f32 %v977, %v981
  %986 = vrot.lane.b32.xlu0 %v982, 16
  %v987 = vpop.permute.xlu0 %986
  %988 = vrot.lane.b32.xlu0 %v983, 16
  %v989 = vpop.permute.xlu0 %988
  %vm992 = vcmask 195712
  %993 = vst.msk [vmem:[#allocation2] sm:$0xff] %vm992, %v987
  %vm994 = vcmask 188544
  %995 = vst.msk [vmem:[#allocation2 + $0x8] sm:$0x1] %vm994, %v989
  %996 = vrot.lane.b32.xlu0 %v357, 104
  %v997 = vpop.permute.xlu0 %996
  %998 = vrot.lane.b32.xlu0 %v358, 104
  %v999 = vpop.permute.xlu0 %998
  %1000 = vrot.lane.b32.xlu0 %v344, 72
  %v1001 = vpop.permute.xlu0 %1000
  %1002 = vrot.lane.b32.xlu0 %v349, 72
  %v1003 = vpop.permute.xlu0 %1002
  %v1004 = vsel %vm368, %v997, 0
  %v1006 = vsel %vm368, %v999, 0
  %v1008 = vsel %vm368, %v1001, 0
  %v1010 = vsel %vm368, %v1003, 0
  %1012 = vmatprep.subr.mxu0 0.0
  %1013 = vmatpush1.xpose.msra.mxu0 %v1008
  %1014 = vmatprep.subr.mxu0 0.0
  %1015 = vmatpush1.xpose.msra.mxu0 %v1010
  %1016 = vmatprep.subr.mxu0 0.0
  %1017 = vmatpush1.xpose.msra.mxu0 0.0
  %1018 = vmatprep.subr.mxu0 0.0
  %1019 = vmatpush1.xpose.msra.mxu0 0.0
  %1020 = vmatprep.subr.mxu0 0.0
  %1021 = vmatpush1.xpose.msra.mxu0 0.0
  %1022 = vmatprep.subr.mxu0 0.0
  %1023 = vmatpush1.xpose.msra.mxu0 0.0
  %1024 = vmatprep.subr.mxu0 0.0
  %1025 = vmatpush1.xpose.msra.mxu0 0.0
  %1026 = vmatprep.subr.mxu0 0.0
  %1027 = vmatpush1.xpose.msra.mxu0 0.0
  %1028 = vmatprep.subr.mxu0 0.0
  %1029 = vmatpush1.xpose.msra.mxu0 0.0
  %1030 = vmatprep.subr.mxu0 0.0
  %1031 = vmatpush1.xpose.msra.mxu0 0.0
  %1032 = vmatprep.subr.mxu0 0.0
  %1033 = vmatpush1.xpose.msra.mxu0 0.0
  %1034 = vmatprep.subr.mxu0 0.0
  %1035 = vmatpush1.xpose.msra.mxu0 0.0
  %1036 = vmatprep.subr.mxu0 0.0
  %1037 = vmatpush1.xpose.msra.mxu0 0.0
  %1038 = vmatprep.subr.mxu0 0.0
  %1039 = vmatpush1.xpose.msra.mxu0 0.0
  %1040 = vmatprep.subr.mxu0 0.0
  %1041 = vmatpush1.xpose.msra.mxu0 0.0
  %1042 = vmatprep.subr.mxu0 0.0
  %1043 = vmatpush1.xpose.msra.mxu0 0.0
  %1044 = vmatprep.subr.mxu0 0.0
  %1045 = vmatpush1.xpose.msra.mxu0 0.0
  %1046 = vmatprep.subr.mxu0 0.0
  %1047 = vmatpush1.xpose.msra.mxu0 0.0
  %1048 = vmatprep.subr.mxu0 0.0
  %1049 = vmatpush1.xpose.msra.mxu0 0.0
  %1050 = vmatprep.subr.mxu0 0.0
  %1051 = vmatpush1.xpose.msra.mxu0 0.0
  %1052 = vmatprep.subr.mxu0 0.0
  %1053 = vmatpush1.xpose.msra.mxu0 0.0
  %1054 = vmatprep.subr.mxu0 0.0
  %1055 = vmatpush1.xpose.msra.mxu0 0.0
  %1056 = vmatprep.subr.mxu0 0.0
  %1057 = vmatpush1.xpose.msra.mxu0 0.0
  %1058 = vmatprep.subr.mxu0 0.0
  %1059 = vmatpush1.xpose.msra.mxu0 0.0
  %1060 = vmatprep.subr.mxu0 0.0
  %1061 = vmatpush1.xpose.msra.mxu0 0.0
  %1062 = vmatprep.subr.mxu0 0.0
  %1063 = vmatpush1.xpose.msra.mxu0 0.0
  %1064 = vmatprep.subr.mxu0 0.0
  %1065 = vmatpush1.xpose.msra.mxu0 0.0
  %1066 = vmatprep.subr.mxu0 0.0
  %1067 = vmatpush1.xpose.msra.mxu0 0.0
  %1068 = vmatprep.subr.mxu0 0.0
  %1069 = vmatpush1.xpose.msra.mxu0 0.0
  %1070 = vmatprep.subr.mxu0 0.0
  %1071 = vmatpush1.xpose.msra.mxu0 0.0
  %1072 = vmatprep.subr.mxu0 0.0
  %1073 = vmatpush1.xpose.msra.mxu0 0.0
  %1074 = vmatprep.subr.mxu0 0.0
  %1075 = vmatpush1.xpose.msra.mxu0 0.0
  %1076 = vmatprep.mubr.f32.mxu0 0.0
  %1077 = vmatmul.mubr.f32.gmra.mrb[0].mxu0 %v1004
  %v1078 = vpop.f32.mrb[0].mxu0
  %v1079 = vadd.f32 %v360, %v1078
  %v1080 = vpop.f32.mrb[0].mxu0
  %1081 = vmatprep.mubr.f32.mxu0 0.0
  %1082 = vmatmul.mubr.f32.gmra.mrb[0].mxu0 %v1006
  %v1083 = vpop.f32.mrb[0].mxu0
  %v1084 = vadd.f32 %v361, %v1083
  %v1085 = vpop.f32.mrb[0].mxu0
  %1086 = vdwg.mxu0
  %v1087 = vsel %vm454, %v1079, -inf
  %1088 = vmax.xlane.f32.xlu0 %v1087
  %v1089 = vpop.xlane.xlu0 %1088
  %v1090 = vsel %vm458, %v1084, -inf
  %1091 = vmax.xlane.f32.xlu0 %v1090
  %v1092 = vpop.xlane.xlu0 %1091
  %v1093 = vsub.f32 %v1079, %v1089
  %v1094 = vsub.f32 %v1084, %v1092
  %v1095 = vmul.f32 %v1093, 1.442695
  %v1096 = vpow.pop %v1095
  %v1097 = vmul.f32 %v1094, 1.442695
  %v1098 = vpow.pop %v1097
  %v1099 = vsel %vm454, %v1096, 0.0
  %1100 = vadd.xlane.f32.xlu0 %v1099
  %v1101 = vpop.xlane.xlu0 %1100
  %v1102 = vsel %vm458, %v1098, 0.0
  %1103 = vadd.xlane.f32.xlu0 %v1102
  %v1104 = vpop.xlane.xlu0 %1103
  %1105 = vrot.lane.b32.xlu0 %v344, 40
  %v1106 = vpop.permute.xlu0 %1105
  %1107 = vrot.lane.b32.xlu0 %v349, 40
  %v1108 = vpop.permute.xlu0 %1107
  %v1111 = vsel %vm454, %v1096, 0
  %v1114 = vsel %vm454, %v1098, 0
  %v1116 = vsel %vm485, %v1108, 0
  %1118 = vmatprep.subr.mxu0 0.0
  %1119 = vmatpush1.msra.mxu0 %v1106
  %1120 = vmatprep.subr.mxu0 0.0
  %1121 = vmatpush1.msra.mxu0 %v1116
  %1122 = vmatprep.subr.mxu0 0.0
  %1123 = vmatpush1.msra.mxu0 0.0
  %1124 = vmatprep.subr.mxu0 0.0
  %1125 = vmatpush1.msra.mxu0 0.0
  %1126 = vmatprep.subr.mxu0 0.0
  %1127 = vmatpush1.msra.mxu0 0.0
  %1128 = vmatprep.subr.mxu0 0.0
  %1129 = vmatpush1.msra.mxu0 0.0
  %1130 = vmatprep.subr.mxu0 0.0
  %1131 = vmatpush1.msra.mxu0 0.0
  %1132 = vmatprep.subr.mxu0 0.0
  %1133 = vmatpush1.msra.mxu0 0.0
  %1134 = vmatprep.subr.mxu0 0.0
  %1135 = vmatpush1.msra.mxu0 0.0
  %1136 = vmatprep.subr.mxu0 0.0
  %1137 = vmatpush1.msra.mxu0 0.0
  %1138 = vmatprep.subr.mxu0 0.0
  %1139 = vmatpush1.msra.mxu0 0.0
  %1140 = vmatprep.subr.mxu0 0.0
  %1141 = vmatpush1.msra.mxu0 0.0
  %1142 = vmatprep.subr.mxu0 0.0
  %1143 = vmatpush1.msra.mxu0 0.0
  %1144 = vmatprep.subr.mxu0 0.0
  %1145 = vmatpush1.msra.mxu0 0.0
  %1146 = vmatprep.subr.mxu0 0.0
  %1147 = vmatpush1.msra.mxu0 0.0
  %1148 = vmatprep.subr.mxu0 0.0
  %1149 = vmatpush1.msra.mxu0 0.0
  %1150 = vmatprep.subr.mxu0 0.0
  %1151 = vmatpush1.msra.mxu0 0.0
  %1152 = vmatprep.subr.mxu0 0.0
  %1153 = vmatpush1.msra.mxu0 0.0
  %1154 = vmatprep.subr.mxu0 0.0
  %1155 = vmatpush1.msra.mxu0 0.0
  %1156 = vmatprep.subr.mxu0 0.0
  %1157 = vmatpush1.msra.mxu0 0.0
  %1158 = vmatprep.subr.mxu0 0.0
  %1159 = vmatpush1.msra.mxu0 0.0
  %1160 = vmatprep.subr.mxu0 0.0
  %1161 = vmatpush1.msra.mxu0 0.0
  %1162 = vmatprep.subr.mxu0 0.0
  %1163 = vmatpush1.msra.mxu0 0.0
  %1164 = vmatprep.subr.mxu0 0.0
  %1165 = vmatpush1.msra.mxu0 0.0
  %1166 = vmatprep.subr.mxu0 0.0
  %1167 = vmatpush1.msra.mxu0 0.0
  %1168 = vmatprep.subr.mxu0 0.0
  %1169 = vmatpush1.msra.mxu0 0.0
  %1170 = vmatprep.subr.mxu0 0.0
  %1171 = vmatpush1.msra.mxu0 0.0
  %1172 = vmatprep.subr.mxu0 0.0
  %1173 = vmatpush1.msra.mxu0 0.0
  %1174 = vmatprep.subr.mxu0 0.0
  %1175 = vmatpush1.msra.mxu0 0.0
  %1176 = vmatprep.subr.mxu0 0.0
  %1177 = vmatpush1.msra.mxu0 0.0
  %1178 = vmatprep.subr.mxu0 0.0
  %1179 = vmatpush1.msra.mxu0 0.0
  %1180 = vmatprep.subr.mxu0 0.0
  %1181 = vmatpush1.msra.mxu0 0.0
  %1182 = vmatprep.mubr.f32.mxu0 0.0
  %1183 = vmatmul.mubr.f32.gmra.mrb[0].mxu0 %v1111
  %v1184 = vpop.f32.mrb[0].mxu0
  %v1185 = vadd.f32 0.0, %v1184
  %v1186 = vpop.f32.mrb[0].mxu0
  %1187 = vmatprep.mubr.f32.mxu0 0.0
  %1188 = vmatmul.mubr.f32.gmra.mrb[0].mxu0 %v1114
  %v1189 = vpop.f32.mrb[0].mxu0
  %v1190 = vadd.f32 0.0, %v1189
  %v1191 = vpop.f32.mrb[0].mxu0
  %1192 = vdwg.mxu0
  %v1193 = vrcp.pop %v1101
  %v1194 = vrcp.pop %v1104
  %v1195 = vmul.f32 %v1185, %v1193
  %v1196 = vmul.f32 %v1190, %v1194
  %1199 = vrot.lane.b32.xlu0 %v1195, 24
  %v1200 = vpop.permute.xlu0 %1199
  %1201 = vrot.lane.b32.xlu0 %v1196, 24
  %v1202 = vpop.permute.xlu0 %1201
  %vm1205 = vcmask 261312
  %1206 = vst.msk [vmem:[#allocation2] sm:$0xff] %vm1205, %v1200
  %vm1207 = vcmask 254144
  %1208 = vst.msk [vmem:[#allocation2 + $0x8] sm:$0x1] %vm1207, %v1202
  %s1209 = scalar_lea.vmem %s3, 16
  %v1210 = vld [vmem:[%s1209] sm:$0xff]
  %v1211 = vld [vmem:[%s1209 + $0x8] sm:$0x1]
  %vm1213 = vcmask 1046528
  %v1214 = vrot.slane %v358, 1
  %v1215 = vrot.slane %v359, 1
  %v1216 = vsel %vm1213, %v1214, %v1215
  %v1218 = vrot.slane %v349, 1
  %v1219 = vrot.slane %v354, 1
  %v1220 = vsel %vm1213, %v1218, %v1219
  %1221 = vrot.lane.b32.xlu0 %v1220, 96
  %v1222 = vpop.permute.xlu0 %1221
  %1223 = vrot.lane.b32.xlu0 %v1219, 96
  %v1224 = vpop.permute.xlu0 %1223
  %v1225 = vsel %vm368, %v1216, 0
  %v1227 = vsel %vm368, %v1215, 0
  %v1229 = vsel %vm368, %v1222, 0
  %v1231 = vsel %vm368, %v1224, 0
  %1233 = vmatprep.subr.mxu0 0.0
  %1234 = vmatpush1.xpose.msra.mxu0 %v1229
  %1235 = vmatprep.subr.mxu0 0.0
  %1236 = vmatpush1.xpose.msra.mxu0 %v1231
  %1237 = vmatprep.subr.mxu0 0.0
  %1238 = vmatpush1.xpose.msra.mxu0 0.0
  %1239 = vmatprep.subr.mxu0 0.0
  %1240 = vmatpush1.xpose.msra.mxu0 0.0
  %1241 = vmatprep.subr.mxu0 0.0
  %1242 = vmatpush1.xpose.msra.mxu0 0.0
  %1243 = vmatprep.subr.mxu0 0.0
  %1244 = vmatpush1.xpose.msra.mxu0 0.0
  %1245 = vmatprep.subr.mxu0 0.0
  %1246 = vmatpush1.xpose.msra.mxu0 0.0
  %1247 = vmatprep.subr.mxu0 0.0
  %1248 = vmatpush1.xpose.msra.mxu0 0.0
  %1249 = vmatprep.subr.mxu0 0.0
  %1250 = vmatpush1.xpose.msra.mxu0 0.0
  %1251 = vmatprep.subr.mxu0 0.0
  %1252 = vmatpush1.xpose.msra.mxu0 0.0
  %1253 = vmatprep.subr.mxu0 0.0
  %1254 = vmatpush1.xpose.msra.mxu0 0.0
  %1255 = vmatprep.subr.mxu0 0.0
  %1256 = vmatpush1.xpose.msra.mxu0 0.0
  %1257 = vmatprep.subr.mxu0 0.0
  %1258 = vmatpush1.xpose.msra.mxu0 0.0
  %1259 = vmatprep.subr.mxu0 0.0
  %1260 = vmatpush1.xpose.msra.mxu0 0.0
  %1261 = vmatprep.subr.mxu0 0.0
  %1262 = vmatpush1.xpose.msra.mxu0 0.0
  %1263 = vmatprep.subr.mxu0 0.0
  %1264 = vmatpush1.xpose.msra.mxu0 0.0
  %1265 = vmatprep.subr.mxu0 0.0
  %1266 = vmatpush1.xpose.msra.mxu0 0.0
  %1267 = vmatprep.subr.mxu0 0.0
  %1268 = vmatpush1.xpose.msra.mxu0 0.0
  %1269 = vmatprep.subr.mxu0 0.0
  %1270 = vmatpush1.xpose.msra.mxu0 0.0
  %1271 = vmatprep.subr.mxu0 0.0
  %1272 = vmatpush1.xpose.msra.mxu0 0.0
  %1273 = vmatprep.subr.mxu0 0.0
  %1274 = vmatpush1.xpose.msra.mxu0 0.0
  %1275 = vmatprep.subr.mxu0 0.0
  %1276 = vmatpush1.xpose.msra.mxu0 0.0
  %1277 = vmatprep.subr.mxu0 0.0
  %1278 = vmatpush1.xpose.msra.mxu0 0.0
  %1279 = vmatprep.subr.mxu0 0.0
  %1280 = vmatpush1.xpose.msra.mxu0 0.0
  %1281 = vmatprep.subr.mxu0 0.0
  %1282 = vmatpush1.xpose.msra.mxu0 0.0
  %1283 = vmatprep.subr.mxu0 0.0
  %1284 = vmatpush1.xpose.msra.mxu0 0.0
  %1285 = vmatprep.subr.mxu0 0.0
  %1286 = vmatpush1.xpose.msra.mxu0 0.0
  %1287 = vmatprep.subr.mxu0 0.0
  %1288 = vmatpush1.xpose.msra.mxu0 0.0
  %1289 = vmatprep.subr.mxu0 0.0
  %1290 = vmatpush1.xpose.msra.mxu0 0.0
  %1291 = vmatprep.subr.mxu0 0.0
  %1292 = vmatpush1.xpose.msra.mxu0 0.0
  %1293 = vmatprep.subr.mxu0 0.0
  %1294 = vmatpush1.xpose.msra.mxu0 0.0
  %1295 = vmatprep.subr.mxu0 0.0
  %1296 = vmatpush1.xpose.msra.mxu0 0.0
  %1297 = vmatprep.mubr.f32.mxu0 0.0
  %1298 = vmatmul.mubr.f32.gmra.mrb[0].mxu0 %v1225
  %v1299 = vpop.f32.mrb[0].mxu0
  %v1300 = vadd.f32 %v1210, %v1299
  %v1301 = vpop.f32.mrb[0].mxu0
  %1302 = vmatprep.mubr.f32.mxu0 0.0
  %1303 = vmatmul.mubr.f32.gmra.mrb[0].mxu0 %v1227
  %v1304 = vpop.f32.mrb[0].mxu0
  %v1305 = vadd.f32 %v1211, %v1304
  %v1306 = vpop.f32.mrb[0].mxu0
  %1307 = vdwg.mxu0
  %v1308 = vsel %vm454, %v1300, -inf
  %1309 = vmax.xlane.f32.xlu0 %v1308
  %v1310 = vpop.xlane.xlu0 %1309
  %v1311 = vsel %vm458, %v1305, -inf
  %1312 = vmax.xlane.f32.xlu0 %v1311
  %v1313 = vpop.xlane.xlu0 %1312
  %v1314 = vsub.f32 %v1300, %v1310
  %v1315 = vsub.f32 %v1305, %v1313
  %v1316 = vmul.f32 %v1314, 1.442695
  %v1317 = vpow.pop %v1316
  %v1318 = vmul.f32 %v1315, 1.442695
  %v1319 = vpow.pop %v1318
  %v1320 = vsel %vm454, %v1317, 0.0
  %1321 = vadd.xlane.f32.xlu0 %v1320
  %v1322 = vpop.xlane.xlu0 %1321
  %v1323 = vsel %vm458, %v1319, 0.0
  %1324 = vadd.xlane.f32.xlu0 %v1323
  %v1325 = vpop.xlane.xlu0 %1324
  %1326 = vrot.lane.b32.xlu0 %v1220, 64
  %v1327 = vpop.permute.xlu0 %1326
  %1328 = vrot.lane.b32.xlu0 %v1219, 64
  %v1329 = vpop.permute.xlu0 %1328
  %v1332 = vsel %vm454, %v1317, 0
  %v1335 = vsel %vm454, %v1319, 0
  %v1337 = vsel %vm485, %v1329, 0
  %1339 = vmatprep.subr.mxu0 0.0
  %1340 = vmatpush1.msra.mxu0 %v1327
  %1341 = vmatprep.subr.mxu0 0.0
  %1342 = vmatpush1.msra.mxu0 %v1337
  %1343 = vmatprep.subr.mxu0 0.0
  %1344 = vmatpush1.msra.mxu0 0.0
  %1345 = vmatprep.subr.mxu0 0.0
  %1346 = vmatpush1.msra.mxu0 0.0
  %1347 = vmatprep.subr.mxu0 0.0
  %1348 = vmatpush1.msra.mxu0 0.0
  %1349 = vmatprep.subr.mxu0 0.0
  %1350 = vmatpush1.msra.mxu0 0.0
  %1351 = vmatprep.subr.mxu0 0.0
  %1352 = vmatpush1.msra.mxu0 0.0
  %1353 = vmatprep.subr.mxu0 0.0
  %1354 = vmatpush1.msra.mxu0 0.0
  %1355 = vmatprep.subr.mxu0 0.0
  %1356 = vmatpush1.msra.mxu0 0.0
  %1357 = vmatprep.subr.mxu0 0.0
  %1358 = vmatpush1.msra.mxu0 0.0
  %1359 = vmatprep.subr.mxu0 0.0
  %1360 = vmatpush1.msra.mxu0 0.0
  %1361 = vmatprep.subr.mxu0 0.0
  %1362 = vmatpush1.msra.mxu0 0.0
  %1363 = vmatprep.subr.mxu0 0.0
  %1364 = vmatpush1.msra.mxu0 0.0
  %1365 = vmatprep.subr.mxu0 0.0
  %1366 = vmatpush1.msra.mxu0 0.0
  %1367 = vmatprep.subr.mxu0 0.0
  %1368 = vmatpush1.msra.mxu0 0.0
  %1369 = vmatprep.subr.mxu0 0.0
  %1370 = vmatpush1.msra.mxu0 0.0
  %1371 = vmatprep.subr.mxu0 0.0
  %1372 = vmatpush1.msra.mxu0 0.0
  %1373 = vmatprep.subr.mxu0 0.0
  %1374 = vmatpush1.msra.mxu0 0.0
  %1375 = vmatprep.subr.mxu0 0.0
  %1376 = vmatpush1.msra.mxu0 0.0
  %1377 = vmatprep.subr.mxu0 0.0
  %1378 = vmatpush1.msra.mxu0 0.0
  %1379 = vmatprep.subr.mxu0 0.0
  %1380 = vmatpush1.msra.mxu0 0.0
  %1381 = vmatprep.subr.mxu0 0.0
  %1382 = vmatpush1.msra.mxu0 0.0
  %1383 = vmatprep.subr.mxu0 0.0
  %1384 = vmatpush1.msra.mxu0 0.0
  %1385 = vmatprep.subr.mxu0 0.0
  %1386 = vmatpush1.msra.mxu0 0.0
  %1387 = vmatprep.subr.mxu0 0.0
  %1388 = vmatpush1.msra.mxu0 0.0
  %1389 = vmatprep.subr.mxu0 0.0
  %1390 = vmatpush1.msra.mxu0 0.0
  %1391 = vmatprep.subr.mxu0 0.0
  %1392 = vmatpush1.msra.mxu0 0.0
  %1393 = vmatprep.subr.mxu0 0.0
  %1394 = vmatpush1.msra.mxu0 0.0
  %1395 = vmatprep.subr.mxu0 0.0
  %1396 = vmatpush1.msra.mxu0 0.0
  %1397 = vmatprep.subr.mxu0 0.0
  %1398 = vmatpush1.msra.mxu0 0.0
  %1399 = vmatprep.subr.mxu0 0.0
  %1400 = vmatpush1.msra.mxu0 0.0
  %1401 = vmatprep.subr.mxu0 0.0
  %1402 = vmatpush1.msra.mxu0 0.0
  %1403 = vmatprep.mubr.f32.mxu0 0.0
  %1404 = vmatmul.mubr.f32.gmra.mrb[0].mxu0 %v1332
  %v1405 = vpop.f32.mrb[0].mxu0
  %v1406 = vadd.f32 0.0, %v1405
  %v1407 = vpop.f32.mrb[0].mxu0
  %1408 = vmatprep.mubr.f32.mxu0 0.0
  %1409 = vmatmul.mubr.f32.gmra.mrb[0].mxu0 %v1335
  %v1410 = vpop.f32.mrb[0].mxu0
  %v1411 = vadd.f32 0.0, %v1410
  %v1412 = vpop.f32.mrb[0].mxu0
  %1413 = vdwg.mxu0
  %v1414 = vrcp.pop %v1322
  %v1415 = vrcp.pop %v1325
  %v1416 = vmul.f32 %v1406, %v1414
  %v1417 = vmul.f32 %v1411, %v1415
  %1418 = vst.msk [vmem:[#allocation2 + $0x9] sm:$0xff] %vm368, %v1416
  %1419 = vst.msk [vmem:[#allocation2 + $0x11] sm:$0x1] %vm568, %v1417
  %1420 = vrot.lane.b32.xlu0 %v1216, 120
  %v1421 = vpop.permute.xlu0 %1420
  %1422 = vrot.lane.b32.xlu0 %v1215, 120
  %v1423 = vpop.permute.xlu0 %1422
  %1424 = vrot.lane.b32.xlu0 %v1220, 88
  %v1425 = vpop.permute.xlu0 %1424
  %1426 = vrot.lane.b32.xlu0 %v1219, 88
  %v1427 = vpop.permute.xlu0 %1426
  %v1428 = vsel %vm368, %v1421, 0
  %v1430 = vsel %vm368, %v1423, 0
  %v1432 = vsel %vm368, %v1425, 0
  %v1434 = vsel %vm368, %v1427, 0
  %1436 = vmatprep.subr.mxu0 0.0
  %1437 = vmatpush1.xpose.msra.mxu0 %v1432
  %1438 = vmatprep.subr.mxu0 0.0
  %1439 = vmatpush1.xpose.msra.mxu0 %v1434
  %1440 = vmatprep.subr.mxu0 0.0
  %1441 = vmatpush1.xpose.msra.mxu0 0.0
  %1442 = vmatprep.subr.mxu0 0.0
  %1443 = vmatpush1.xpose.msra.mxu0 0.0
  %1444 = vmatprep.subr.mxu0 0.0
  %1445 = vmatpush1.xpose.msra.mxu0 0.0
  %1446 = vmatprep.subr.mxu0 0.0
  %1447 = vmatpush1.xpose.msra.mxu0 0.0
  %1448 = vmatprep.subr.mxu0 0.0
  %1449 = vmatpush1.xpose.msra.mxu0 0.0
  %1450 = vmatprep.subr.mxu0 0.0
  %1451 = vmatpush1.xpose.msra.mxu0 0.0
  %1452 = vmatprep.subr.mxu0 0.0
  %1453 = vmatpush1.xpose.msra.mxu0 0.0
  %1454 = vmatprep.subr.mxu0 0.0
  %1455 = vmatpush1.xpose.msra.mxu0 0.0
  %1456 = vmatprep.subr.mxu0 0.0
  %1457 = vmatpush1.xpose.msra.mxu0 0.0
  %1458 = vmatprep.subr.mxu0 0.0
  %1459 = vmatpush1.xpose.msra.mxu0 0.0
  %1460 = vmatprep.subr.mxu0 0.0
  %1461 = vmatpush1.xpose.msra.mxu0 0.0
  %1462 = vmatprep.subr.mxu0 0.0
  %1463 = vmatpush1.xpose.msra.mxu0 0.0
  %1464 = vmatprep.subr.mxu0 0.0
  %1465 = vmatpush1.xpose.msra.mxu0 0.0
  %1466 = vmatprep.subr.mxu0 0.0
  %1467 = vmatpush1.xpose.msra.mxu0 0.0
  %1468 = vmatprep.subr.mxu0 0.0
  %1469 = vmatpush1.xpose.msra.mxu0 0.0
  %1470 = vmatprep.subr.mxu0 0.0
  %1471 = vmatpush1.xpose.msra.mxu0 0.0
  %1472 = vmatprep.subr.mxu0 0.0
  %1473 = vmatpush1.xpose.msra.mxu0 0.0
  %1474 = vmatprep.subr.mxu0 0.0
  %1475 = vmatpush1.xpose.msra.mxu0 0.0
  %1476 = vmatprep.subr.mxu0 0.0
  %1477 = vmatpush1.xpose.msra.mxu0 0.0
  %1478 = vmatprep.subr.mxu0 0.0
  %1479 = vmatpush1.xpose.msra.mxu0 0.0
  %1480 = vmatprep.subr.mxu0 0.0
  %1481 = vmatpush1.xpose.msra.mxu0 0.0
  %1482 = vmatprep.subr.mxu0 0.0
  %1483 = vmatpush1.xpose.msra.mxu0 0.0
  %1484 = vmatprep.subr.mxu0 0.0
  %1485 = vmatpush1.xpose.msra.mxu0 0.0
  %1486 = vmatprep.subr.mxu0 0.0
  %1487 = vmatpush1.xpose.msra.mxu0 0.0
  %1488 = vmatprep.subr.mxu0 0.0
  %1489 = vmatpush1.xpose.msra.mxu0 0.0
  %1490 = vmatprep.subr.mxu0 0.0
  %1491 = vmatpush1.xpose.msra.mxu0 0.0
  %1492 = vmatprep.subr.mxu0 0.0
  %1493 = vmatpush1.xpose.msra.mxu0 0.0
  %1494 = vmatprep.subr.mxu0 0.0
  %1495 = vmatpush1.xpose.msra.mxu0 0.0
  %1496 = vmatprep.subr.mxu0 0.0
  %1497 = vmatpush1.xpose.msra.mxu0 0.0
  %1498 = vmatprep.subr.mxu0 0.0
  %1499 = vmatpush1.xpose.msra.mxu0 0.0
  %1500 = vmatprep.mubr.f32.mxu0 0.0
  %1501 = vmatmul.mubr.f32.gmra.mrb[0].mxu0 %v1428
  %v1502 = vpop.f32.mrb[0].mxu0
  %v1503 = vadd.f32 %v1210, %v1502
  %v1504 = vpop.f32.mrb[0].mxu0
  %1505 = vmatprep.mubr.f32.mxu0 0.0
  %1506 = vmatmul.mubr.f32.gmra.mrb[0].mxu0 %v1430
  %v1507 = vpop.f32.mrb[0].mxu0
  %v1508 = vadd.f32 %v1211, %v1507
  %v1509 = vpop.f32.mrb[0].mxu0
  %1510 = vdwg.mxu0
  %v1511 = vsel %vm454, %v1503, -inf
  %1512 = vmax.xlane.f32.xlu0 %v1511
  %v1513 = vpop.xlane.xlu0 %1512
  %v1514 = vsel %vm458, %v1508, -inf
  %1515 = vmax.xlane.f32.xlu0 %v1514
  %v1516 = vpop.xlane.xlu0 %1515
  %v1517 = vsub.f32 %v1503, %v1513
  %v1518 = vsub.f32 %v1508, %v1516
  %v1519 = vmul.f32 %v1517, 1.442695
  %v1520 = vpow.pop %v1519
  %v1521 = vmul.f32 %v1518, 1.442695
  %v1522 = vpow.pop %v1521
  %v1523 = vsel %vm454, %v1520, 0.0
  %1524 = vadd.xlane.f32.xlu0 %v1523
  %v1525 = vpop.xlane.xlu0 %1524
  %v1526 = vsel %vm458, %v1522, 0.0
  %1527 = vadd.xlane.f32.xlu0 %v1526
  %v1528 = vpop.xlane.xlu0 %1527
  %1529 = vrot.lane.b32.xlu0 %v1220, 56
  %v1530 = vpop.permute.xlu0 %1529
  %1531 = vrot.lane.b32.xlu0 %v1219, 56
  %v1532 = vpop.permute.xlu0 %1531
  %v1535 = vsel %vm454, %v1520, 0
  %v1538 = vsel %vm454, %v1522, 0
  %v1540 = vsel %vm485, %v1532, 0
  %1542 = vmatprep.subr.mxu0 0.0
  %1543 = vmatpush1.msra.mxu0 %v1530
  %1544 = vmatprep.subr.mxu0 0.0
  %1545 = vmatpush1.msra.mxu0 %v1540
  %1546 = vmatprep.subr.mxu0 0.0
  %1547 = vmatpush1.msra.mxu0 0.0
  %1548 = vmatprep.subr.mxu0 0.0
  %1549 = vmatpush1.msra.mxu0 0.0
  %1550 = vmatprep.subr.mxu0 0.0
  %1551 = vmatpush1.msra.mxu0 0.0
  %1552 = vmatprep.subr.mxu0 0.0
  %1553 = vmatpush1.msra.mxu0 0.0
  %1554 = vmatprep.subr.mxu0 0.0
  %1555 = vmatpush1.msra.mxu0 0.0
  %1556 = vmatprep.subr.mxu0 0.0
  %1557 = vmatpush1.msra.mxu0 0.0
  %1558 = vmatprep.subr.mxu0 0.0
  %1559 = vmatpush1.msra.mxu0 0.0
  %1560 = vmatprep.subr.mxu0 0.0
  %1561 = vmatpush1.msra.mxu0 0.0
  %1562 = vmatprep.subr.mxu0 0.0
  %1563 = vmatpush1.msra.mxu0 0.0
  %1564 = vmatprep.subr.mxu0 0.0
  %1565 = vmatpush1.msra.mxu0 0.0
  %1566 = vmatprep.subr.mxu0 0.0
  %1567 = vmatpush1.msra.mxu0 0.0
  %1568 = vmatprep.subr.mxu0 0.0
  %1569 = vmatpush1.msra.mxu0 0.0
  %1570 = vmatprep.subr.mxu0 0.0
  %1571 = vmatpush1.msra.mxu0 0.0
  %1572 = vmatprep.subr.mxu0 0.0
  %1573 = vmatpush1.msra.mxu0 0.0
  %1574 = vmatprep.subr.mxu0 0.0
  %1575 = vmatpush1.msra.mxu0 0.0
  %1576 = vmatprep.subr.mxu0 0.0
  %1577 = vmatpush1.msra.mxu0 0.0
  %1578 = vmatprep.subr.mxu0 0.0
  %1579 = vmatpush1.msra.mxu0 0.0
  %1580 = vmatprep.subr.mxu0 0.0
  %1581 = vmatpush1.msra.mxu0 0.0
  %1582 = vmatprep.subr.mxu0 0.0
  %1583 = vmatpush1.msra.mxu0 0.0
  %1584 = vmatprep.subr.mxu0 0.0
  %1585 = vmatpush1.msra.mxu0 0.0
  %1586 = vmatprep.subr.mxu0 0.0
  %1587 = vmatpush1.msra.mxu0 0.0
  %1588 = vmatprep.subr.mxu0 0.0
  %1589 = vmatpush1.msra.mxu0 0.0
  %1590 = vmatprep.subr.mxu0 0.0
  %1591 = vmatpush1.msra.mxu0 0.0
  %1592 = vmatprep.subr.mxu0 0.0
  %1593 = vmatpush1.msra.mxu0 0.0
  %1594 = vmatprep.subr.mxu0 0.0
  %1595 = vmatpush1.msra.mxu0 0.0
  %1596 = vmatprep.subr.mxu0 0.0
  %1597 = vmatpush1.msra.mxu0 0.0
  %1598 = vmatprep.subr.mxu0 0.0
  %1599 = vmatpush1.msra.mxu0 0.0
  %1600 = vmatprep.subr.mxu0 0.0
  %1601 = vmatpush1.msra.mxu0 0.0
  %1602 = vmatprep.subr.mxu0 0.0
  %1603 = vmatpush1.msra.mxu0 0.0
  %1604 = vmatprep.subr.mxu0 0.0
  %1605 = vmatpush1.msra.mxu0 0.0
  %1606 = vmatprep.mubr.f32.mxu0 0.0
  %1607 = vmatmul.mubr.f32.gmra.mrb[0].mxu0 %v1535
  %v1608 = vpop.f32.mrb[0].mxu0
  %v1609 = vadd.f32 0.0, %v1608
  %v1610 = vpop.f32.mrb[0].mxu0
  %1611 = vmatprep.mubr.f32.mxu0 0.0
  %1612 = vmatmul.mubr.f32.gmra.mrb[0].mxu0 %v1538
  %v1613 = vpop.f32.mrb[0].mxu0
  %v1614 = vadd.f32 0.0, %v1613
  %v1615 = vpop.f32.mrb[0].mxu0
  %1616 = vdwg.mxu0
  %v1617 = vrcp.pop %v1525
  %v1618 = vrcp.pop %v1528
  %v1619 = vmul.f32 %v1609, %v1617
  %v1620 = vmul.f32 %v1614, %v1618
  %1623 = vrot.lane.b32.xlu0 %v1619, 8
  %v1624 = vpop.permute.xlu0 %1623
  %1625 = vrot.lane.b32.xlu0 %v1620, 8
  %v1626 = vpop.permute.xlu0 %1625
  %1629 = vst.msk [vmem:[#allocation2 + $0x9] sm:$0xff] %vm779, %v1624
  %1630 = vst.msk [vmem:[#allocation2 + $0x11] sm:$0x1] %vm781, %v1626
  %1631 = vrot.lane.b32.xlu0 %v1216, 112
  %v1632 = vpop.permute.xlu0 %1631
  %1633 = vrot.lane.b32.xlu0 %v1215, 112
  %v1634 = vpop.permute.xlu0 %1633
  %1635 = vrot.lane.b32.xlu0 %v1220, 80
  %v1636 = vpop.permute.xlu0 %1635
  %1637 = vrot.lane.b32.xlu0 %v1219, 80
  %v1638 = vpop.permute.xlu0 %1637
  %v1639 = vsel %vm368, %v1632, 0
  %v1641 = vsel %vm368, %v1634, 0
  %v1643 = vsel %vm368, %v1636, 0
  %v1645 = vsel %vm368, %v1638, 0
  %1647 = vmatprep.subr.mxu0 0.0
  %1648 = vmatpush1.xpose.msra.mxu0 %v1643
  %1649 = vmatprep.subr.mxu0 0.0
  %1650 = vmatpush1.xpose.msra.mxu0 %v1645
  %1651 = vmatprep.subr.mxu0 0.0
  %1652 = vmatpush1.xpose.msra.mxu0 0.0
  %1653 = vmatprep.subr.mxu0 0.0
  %1654 = vmatpush1.xpose.msra.mxu0 0.0
  %1655 = vmatprep.subr.mxu0 0.0
  %1656 = vmatpush1.xpose.msra.mxu0 0.0
  %1657 = vmatprep.subr.mxu0 0.0
  %1658 = vmatpush1.xpose.msra.mxu0 0.0
  %1659 = vmatprep.subr.mxu0 0.0
  %1660 = vmatpush1.xpose.msra.mxu0 0.0
  %1661 = vmatprep.subr.mxu0 0.0
  %1662 = vmatpush1.xpose.msra.mxu0 0.0
  %1663 = vmatprep.subr.mxu0 0.0
  %1664 = vmatpush1.xpose.msra.mxu0 0.0
  %1665 = vmatprep.subr.mxu0 0.0
  %1666 = vmatpush1.xpose.msra.mxu0 0.0
  %1667 = vmatprep.subr.mxu0 0.0
  %1668 = vmatpush1.xpose.msra.mxu0 0.0
  %1669 = vmatprep.subr.mxu0 0.0
  %1670 = vmatpush1.xpose.msra.mxu0 0.0
  %1671 = vmatprep.subr.mxu0 0.0
  %1672 = vmatpush1.xpose.msra.mxu0 0.0
  %1673 = vmatprep.subr.mxu0 0.0
  %1674 = vmatpush1.xpose.msra.mxu0 0.0
  %1675 = vmatprep.subr.mxu0 0.0
  %1676 = vmatpush1.xpose.msra.mxu0 0.0
  %1677 = vmatprep.subr.mxu0 0.0
  %1678 = vmatpush1.xpose.msra.mxu0 0.0
  %1679 = vmatprep.subr.mxu0 0.0
  %1680 = vmatpush1.xpose.msra.mxu0 0.0
  %1681 = vmatprep.subr.mxu0 0.0
  %1682 = vmatpush1.xpose.msra.mxu0 0.0
  %1683 = vmatprep.subr.mxu0 0.0
  %1684 = vmatpush1.xpose.msra.mxu0 0.0
  %1685 = vmatprep.subr.mxu0 0.0
  %1686 = vmatpush1.xpose.msra.mxu0 0.0
  %1687 = vmatprep.subr.mxu0 0.0
  %1688 = vmatpush1.xpose.msra.mxu0 0.0
  %1689 = vmatprep.subr.mxu0 0.0
  %1690 = vmatpush1.xpose.msra.mxu0 0.0
  %1691 = vmatprep.subr.mxu0 0.0
  %1692 = vmatpush1.xpose.msra.mxu0 0.0
  %1693 = vmatprep.subr.mxu0 0.0
  %1694 = vmatpush1.xpose.msra.mxu0 0.0
  %1695 = vmatprep.subr.mxu0 0.0
  %1696 = vmatpush1.xpose.msra.mxu0 0.0
  %1697 = vmatprep.subr.mxu0 0.0
  %1698 = vmatpush1.xpose.msra.mxu0 0.0
  %1699 = vmatprep.subr.mxu0 0.0
  %1700 = vmatpush1.xpose.msra.mxu0 0.0
  %1701 = vmatprep.subr.mxu0 0.0
  %1702 = vmatpush1.xpose.msra.mxu0 0.0
  %1703 = vmatprep.subr.mxu0 0.0
  %1704 = vmatpush1.xpose.msra.mxu0 0.0
  %1705 = vmatprep.subr.mxu0 0.0
  %1706 = vmatpush1.xpose.msra.mxu0 0.0
  %1707 = vmatprep.subr.mxu0 0.0
  %1708 = vmatpush1.xpose.msra.mxu0 0.0
  %1709 = vmatprep.subr.mxu0 0.0
  %1710 = vmatpush1.xpose.msra.mxu0 0.0
  %1711 = vmatprep.mubr.f32.mxu0 0.0
  %1712 = vmatmul.mubr.f32.gmra.mrb[0].mxu0 %v1639
  %v1713 = vpop.f32.mrb[0].mxu0
  %v1714 = vadd.f32 %v1210, %v1713
  %v1715 = vpop.f32.mrb[0].mxu0
  %1716 = vmatprep.mubr.f32.mxu0 0.0
  %1717 = vmatmul.mubr.f32.gmra.mrb[0].mxu0 %v1641
  %v1718 = vpop.f32.mrb[0].mxu0
  %v1719 = vadd.f32 %v1211, %v1718
  %v1720 = vpop.f32.mrb[0].mxu0
  %1721 = vdwg.mxu0
  %v1722 = vsel %vm454, %v1714, -inf
  %1723 = vmax.xlane.f32.xlu0 %v1722
  %v1724 = vpop.xlane.xlu0 %1723
  %v1725 = vsel %vm458, %v1719, -inf
  %1726 = vmax.xlane.f32.xlu0 %v1725
  %v1727 = vpop.xlane.xlu0 %1726
  %v1728 = vsub.f32 %v1714, %v1724
  %v1729 = vsub.f32 %v1719, %v1727
  %v1730 = vmul.f32 %v1728, 1.442695
  %v1731 = vpow.pop %v1730
  %v1732 = vmul.f32 %v1729, 1.442695
  %v1733 = vpow.pop %v1732
  %v1734 = vsel %vm454, %v1731, 0.0
  %1735 = vadd.xlane.f32.xlu0 %v1734
  %v1736 = vpop.xlane.xlu0 %1735
  %v1737 = vsel %vm458, %v1733, 0.0
  %1738 = vadd.xlane.f32.xlu0 %v1737
  %v1739 = vpop.xlane.xlu0 %1738
  %1740 = vrot.lane.b32.xlu0 %v1220, 48
  %v1741 = vpop.permute.xlu0 %1740
  %1742 = vrot.lane.b32.xlu0 %v1219, 48
  %v1743 = vpop.permute.xlu0 %1742
  %v1746 = vsel %vm454, %v1731, 0
  %v1749 = vsel %vm454, %v1733, 0
  %v1751 = vsel %vm485, %v1743, 0
  %1753 = vmatprep.subr.mxu0 0.0
  %1754 = vmatpush1.msra.mxu0 %v1741
  %1755 = vmatprep.subr.mxu0 0.0
  %1756 = vmatpush1.msra.mxu0 %v1751
  %1757 = vmatprep.subr.mxu0 0.0
  %1758 = vmatpush1.msra.mxu0 0.0
  %1759 = vmatprep.subr.mxu0 0.0
  %1760 = vmatpush1.msra.mxu0 0.0
  %1761 = vmatprep.subr.mxu0 0.0
  %1762 = vmatpush1.msra.mxu0 0.0
  %1763 = vmatprep.subr.mxu0 0.0
  %1764 = vmatpush1.msra.mxu0 0.0
  %1765 = vmatprep.subr.mxu0 0.0
  %1766 = vmatpush1.msra.mxu0 0.0
  %1767 = vmatprep.subr.mxu0 0.0
  %1768 = vmatpush1.msra.mxu0 0.0
  %1769 = vmatprep.subr.mxu0 0.0
  %1770 = vmatpush1.msra.mxu0 0.0
  %1771 = vmatprep.subr.mxu0 0.0
  %1772 = vmatpush1.msra.mxu0 0.0
  %1773 = vmatprep.subr.mxu0 0.0
  %1774 = vmatpush1.msra.mxu0 0.0
  %1775 = vmatprep.subr.mxu0 0.0
  %1776 = vmatpush1.msra.mxu0 0.0
  %1777 = vmatprep.subr.mxu0 0.0
  %1778 = vmatpush1.msra.mxu0 0.0
  %1779 = vmatprep.subr.mxu0 0.0
  %1780 = vmatpush1.msra.mxu0 0.0
  %1781 = vmatprep.subr.mxu0 0.0
  %1782 = vmatpush1.msra.mxu0 0.0
  %1783 = vmatprep.subr.mxu0 0.0
  %1784 = vmatpush1.msra.mxu0 0.0
  %1785 = vmatprep.subr.mxu0 0.0
  %1786 = vmatpush1.msra.mxu0 0.0
  %1787 = vmatprep.subr.mxu0 0.0
  %1788 = vmatpush1.msra.mxu0 0.0
  %1789 = vmatprep.subr.mxu0 0.0
  %1790 = vmatpush1.msra.mxu0 0.0
  %1791 = vmatprep.subr.mxu0 0.0
  %1792 = vmatpush1.msra.mxu0 0.0
  %1793 = vmatprep.subr.mxu0 0.0
  %1794 = vmatpush1.msra.mxu0 0.0
  %1795 = vmatprep.subr.mxu0 0.0
  %1796 = vmatpush1.msra.mxu0 0.0
  %1797 = vmatprep.subr.mxu0 0.0
  %1798 = vmatpush1.msra.mxu0 0.0
  %1799 = vmatprep.subr.mxu0 0.0
  %1800 = vmatpush1.msra.mxu0 0.0
  %1801 = vmatprep.subr.mxu0 0.0
  %1802 = vmatpush1.msra.mxu0 0.0
  %1803 = vmatprep.subr.mxu0 0.0
  %1804 = vmatpush1.msra.mxu0 0.0
  %1805 = vmatprep.subr.mxu0 0.0
  %1806 = vmatpush1.msra.mxu0 0.0
  %1807 = vmatprep.subr.mxu0 0.0
  %1808 = vmatpush1.msra.mxu0 0.0
  %1809 = vmatprep.subr.mxu0 0.0
  %1810 = vmatpush1.msra.mxu0 0.0
  %1811 = vmatprep.subr.mxu0 0.0
  %1812 = vmatpush1.msra.mxu0 0.0
  %1813 = vmatprep.subr.mxu0 0.0
  %1814 = vmatpush1.msra.mxu0 0.0
  %1815 = vmatprep.subr.mxu0 0.0
  %1816 = vmatpush1.msra.mxu0 0.0
  %1817 = vmatprep.mubr.f32.mxu0 0.0
  %1818 = vmatmul.mubr.f32.gmra.mrb[0].mxu0 %v1746
  %v1819 = vpop.f32.mrb[0].mxu0
  %v1820 = vadd.f32 0.0, %v1819
  %v1821 = vpop.f32.mrb[0].mxu0
  %1822 = vmatprep.mubr.f32.mxu0 0.0
  %1823 = vmatmul.mubr.f32.gmra.mrb[0].mxu0 %v1749
  %v1824 = vpop.f32.mrb[0].mxu0
  %v1825 = vadd.f32 0.0, %v1824
  %v1826 = vpop.f32.mrb[0].mxu0
  %1827 = vdwg.mxu0
  %v1828 = vrcp.pop %v1736
  %v1829 = vrcp.pop %v1739
  %v1830 = vmul.f32 %v1820, %v1828
  %v1831 = vmul.f32 %v1825, %v1829
  %1834 = vrot.lane.b32.xlu0 %v1830, 16
  %v1835 = vpop.permute.xlu0 %1834
  %1836 = vrot.lane.b32.xlu0 %v1831, 16
  %v1837 = vpop.permute.xlu0 %1836
  %1840 = vst.msk [vmem:[#allocation2 + $0x9] sm:$0xff] %vm992, %v1835
  %1841 = vst.msk [vmem:[#allocation2 + $0x11] sm:$0x1] %vm994, %v1837
  %1842 = vrot.lane.b32.xlu0 %v1216, 104
  %v1843 = vpop.permute.xlu0 %1842
  %1844 = vrot.lane.b32.xlu0 %v1215, 104
  %v1845 = vpop.permute.xlu0 %1844
  %1846 = vrot.lane.b32.xlu0 %v1220, 72
  %v1847 = vpop.permute.xlu0 %1846
  %1848 = vrot.lane.b32.xlu0 %v1219, 72
  %v1849 = vpop.permute.xlu0 %1848
  %v1850 = vsel %vm368, %v1843, 0
  %v1852 = vsel %vm368, %v1845, 0
  %v1854 = vsel %vm368, %v1847, 0
  %v1856 = vsel %vm368, %v1849, 0
  %1858 = vmatprep.subr.mxu0 0.0
  %1859 = vmatpush1.xpose.msra.mxu0 %v1854
  %1860 = vmatprep.subr.mxu0 0.0
  %1861 = vmatpush1.xpose.msra.mxu0 %v1856
  %1862 = vmatprep.subr.mxu0 0.0
  %1863 = vmatpush1.xpose.msra.mxu0 0.0
  %1864 = vmatprep.subr.mxu0 0.0
  %1865 = vmatpush1.xpose.msra.mxu0 0.0
  %1866 = vmatprep.subr.mxu0 0.0
  %1867 = vmatpush1.xpose.msra.mxu0 0.0
  %1868 = vmatprep.subr.mxu0 0.0
  %1869 = vmatpush1.xpose.msra.mxu0 0.0
  %1870 = vmatprep.subr.mxu0 0.0
  %1871 = vmatpush1.xpose.msra.mxu0 0.0
  %1872 = vmatprep.subr.mxu0 0.0
  %1873 = vmatpush1.xpose.msra.mxu0 0.0
  %1874 = vmatprep.subr.mxu0 0.0
  %1875 = vmatpush1.xpose.msra.mxu0 0.0
  %1876 = vmatprep.subr.mxu0 0.0
  %1877 = vmatpush1.xpose.msra.mxu0 0.0
  %1878 = vmatprep.subr.mxu0 0.0
  %1879 = vmatpush1.xpose.msra.mxu0 0.0
  %1880 = vmatprep.subr.mxu0 0.0
  %1881 = vmatpush1.xpose.msra.mxu0 0.0
  %1882 = vmatprep.subr.mxu0 0.0
  %1883 = vmatpush1.xpose.msra.mxu0 0.0
  %1884 = vmatprep.subr.mxu0 0.0
  %1885 = vmatpush1.xpose.msra.mxu0 0.0
  %1886 = vmatprep.subr.mxu0 0.0
  %1887 = vmatpush1.xpose.msra.mxu0 0.0
  %1888 = vmatprep.subr.mxu0 0.0
  %1889 = vmatpush1.xpose.msra.mxu0 0.0
  %1890 = vmatprep.subr.mxu0 0.0
  %1891 = vmatpush1.xpose.msra.mxu0 0.0
  %1892 = vmatprep.subr.mxu0 0.0
  %1893 = vmatpush1.xpose.msra.mxu0 0.0
  %1894 = vmatprep.subr.mxu0 0.0
  %1895 = vmatpush1.xpose.msra.mxu0 0.0
  %1896 = vmatprep.subr.mxu0 0.0
  %1897 = vmatpush1.xpose.msra.mxu0 0.0
  %1898 = vmatprep.subr.mxu0 0.0
  %1899 = vmatpush1.xpose.msra.mxu0 0.0
  %1900 = vmatprep.subr.mxu0 0.0
  %1901 = vmatpush1.xpose.msra.mxu0 0.0
  %1902 = vmatprep.subr.mxu0 0.0
  %1903 = vmatpush1.xpose.msra.mxu0 0.0
  %1904 = vmatprep.subr.mxu0 0.0
  %1905 = vmatpush1.xpose.msra.mxu0 0.0
  %1906 = vmatprep.subr.mxu0 0.0
  %1907 = vmatpush1.xpose.msra.mxu0 0.0
  %1908 = vmatprep.subr.mxu0 0.0
  %1909 = vmatpush1.xpose.msra.mxu0 0.0
  %1910 = vmatprep.subr.mxu0 0.0
  %1911 = vmatpush1.xpose.msra.mxu0 0.0
  %1912 = vmatprep.subr.mxu0 0.0
  %1913 = vmatpush1.xpose.msra.mxu0 0.0
  %1914 = vmatprep.subr.mxu0 0.0
  %1915 = vmatpush1.xpose.msra.mxu0 0.0
  %1916 = vmatprep.subr.mxu0 0.0
  %1917 = vmatpush1.xpose.msra.mxu0 0.0
  %1918 = vmatprep.subr.mxu0 0.0
  %1919 = vmatpush1.xpose.msra.mxu0 0.0
  %1920 = vmatprep.subr.mxu0 0.0
  %1921 = vmatpush1.xpose.msra.mxu0 0.0
  %1922 = vmatprep.mubr.f32.mxu0 0.0
  %1923 = vmatmul.mubr.f32.gmra.mrb[0].mxu0 %v1850
  %v1924 = vpop.f32.mrb[0].mxu0
  %v1925 = vadd.f32 %v1210, %v1924
  %v1926 = vpop.f32.mrb[0].mxu0
  %1927 = vmatprep.mubr.f32.mxu0 0.0
  %1928 = vmatmul.mubr.f32.gmra.mrb[0].mxu0 %v1852
  %v1929 = vpop.f32.mrb[0].mxu0
  %v1930 = vadd.f32 %v1211, %v1929
  %v1931 = vpop.f32.mrb[0].mxu0
  %1932 = vdwg.mxu0
  %v1933 = vsel %vm454, %v1925, -inf
  %1934 = vmax.xlane.f32.xlu0 %v1933
  %v1935 = vpop.xlane.xlu0 %1934
  %v1936 = vsel %vm458, %v1930, -inf
  %1937 = vmax.xlane.f32.xlu0 %v1936
  %v1938 = vpop.xlane.xlu0 %1937
  %v1939 = vsub.f32 %v1925, %v1935
  %v1940 = vsub.f32 %v1930, %v1938
  %v1941 = vmul.f32 %v1939, 1.442695
  %v1942 = vpow.pop %v1941
  %v1943 = vmul.f32 %v1940, 1.442695
  %v1944 = vpow.pop %v1943
  %v1945 = vsel %vm454, %v1942, 0.0
  %1946 = vadd.xlane.f32.xlu0 %v1945
  %v1947 = vpop.xlane.xlu0 %1946
  %v1948 = vsel %vm458, %v1944, 0.0
  %1949 = vadd.xlane.f32.xlu0 %v1948
  %v1950 = vpop.xlane.xlu0 %1949
  %1951 = vrot.lane.b32.xlu0 %v1220, 40
  %v1952 = vpop.permute.xlu0 %1951
  %1953 = vrot.lane.b32.xlu0 %v1219, 40
  %v1954 = vpop.permute.xlu0 %1953
  %v1957 = vsel %vm454, %v1942, 0
  %v1960 = vsel %vm454, %v1944, 0
  %v1962 = vsel %vm485, %v1954, 0
  %1964 = vmatprep.subr.mxu0 0.0
  %1965 = vmatpush1.msra.mxu0 %v1952
  %1966 = vmatprep.subr.mxu0 0.0
  %1967 = vmatpush1.msra.mxu0 %v1962
  %1968 = vmatprep.subr.mxu0 0.0
  %1969 = vmatpush1.msra.mxu0 0.0
  %1970 = vmatprep.subr.mxu0 0.0
  %1971 = vmatpush1.msra.mxu0 0.0
  %1972 = vmatprep.subr.mxu0 0.0
  %1973 = vmatpush1.msra.mxu0 0.0
  %1974 = vmatprep.subr.mxu0 0.0
  %1975 = vmatpush1.msra.mxu0 0.0
  %1976 = vmatprep.subr.mxu0 0.0
  %1977 = vmatpush1.msra.mxu0 0.0
  %1978 = vmatprep.subr.mxu0 0.0
  %1979 = vmatpush1.msra.mxu0 0.0
  %1980 = vmatprep.subr.mxu0 0.0
  %1981 = vmatpush1.msra.mxu0 0.0
  %1982 = vmatprep.subr.mxu0 0.0
  %1983 = vmatpush1.msra.mxu0 0.0
  %1984 = vmatprep.subr.mxu0 0.0
  %1985 = vmatpush1.msra.mxu0 0.0
  %1986 = vmatprep.subr.mxu0 0.0
  %1987 = vmatpush1.msra.mxu0 0.0
  %1988 = vmatprep.subr.mxu0 0.0
  %1989 = vmatpush1.msra.mxu0 0.0
  %1990 = vmatprep.subr.mxu0 0.0
  %1991 = vmatpush1.msra.mxu0 0.0
  %1992 = vmatprep.subr.mxu0 0.0
  %1993 = vmatpush1.msra.mxu0 0.0
  %1994 = vmatprep.subr.mxu0 0.0
  %1995 = vmatpush1.msra.mxu0 0.0
  %1996 = vmatprep.subr.mxu0 0.0
  %1997 = vmatpush1.msra.mxu0 0.0
  %1998 = vmatprep.subr.mxu0 0.0
  %1999 = vmatpush1.msra.mxu0 0.0
  %2000 = vmatprep.subr.mxu0 0.0
  %2001 = vmatpush1.msra.mxu0 0.0
  %2002 = vmatprep.subr.mxu0 0.0
  %2003 = vmatpush1.msra.mxu0 0.0
  %2004 = vmatprep.subr.mxu0 0.0
  %2005 = vmatpush1.msra.mxu0 0.0
  %2006 = vmatprep.subr.mxu0 0.0
  %2007 = vmatpush1.msra.mxu0 0.0
  %2008 = vmatprep.subr.mxu0 0.0
  %2009 = vmatpush1.msra.mxu0 0.0
  %2010 = vmatprep.subr.mxu0 0.0
  %2011 = vmatpush1.msra.mxu0 0.0
  %2012 = vmatprep.subr.mxu0 0.0
  %2013 = vmatpush1.msra.mxu0 0.0
  %2014 = vmatprep.subr.mxu0 0.0
  %2015 = vmatpush1.msra.mxu0 0.0
  %2016 = vmatprep.subr.mxu0 0.0
  %2017 = vmatpush1.msra.mxu0 0.0
  %2018 = vmatprep.subr.mxu0 0.0
  %2019 = vmatpush1.msra.mxu0 0.0
  %2020 = vmatprep.subr.mxu0 0.0
  %2021 = vmatpush1.msra.mxu0 0.0
  %2022 = vmatprep.subr.mxu0 0.0
  %2023 = vmatpush1.msra.mxu0 0.0
  %2024 = vmatprep.subr.mxu0 0.0
  %2025 = vmatpush1.msra.mxu0 0.0
  %2026 = vmatprep.subr.mxu0 0.0
  %2027 = vmatpush1.msra.mxu0 0.0
  %2028 = vmatprep.mubr.f32.mxu0 0.0
  %2029 = vmatmul.mubr.f32.gmra.mrb[0].mxu0 %v1957
  %v2030 = vpop.f32.mrb[0].mxu0
  %v2031 = vadd.f32 0.0, %v2030
  %v2032 = vpop.f32.mrb[0].mxu0
  %2033 = vmatprep.mubr.f32.mxu0 0.0
  %2034 = vmatmul.mubr.f32.gmra.mrb[0].mxu0 %v1960
  %v2035 = vpop.f32.mrb[0].mxu0
  %v2036 = vadd.f32 0.0, %v2035
  %v2037 = vpop.f32.mrb[0].mxu0
  %2038 = vdwg.mxu0
  %v2039 = vrcp.pop %v1947
  %v2040 = vrcp.pop %v1950
  %v2041 = vmul.f32 %v2031, %v2039
  %v2042 = vmul.f32 %v2036, %v2040
  %2045 = vrot.lane.b32.xlu0 %v2041, 24
  %v2046 = vpop.permute.xlu0 %2045
  %2047 = vrot.lane.b32.xlu0 %v2042, 24
  %v2048 = vpop.permute.xlu0 %2047
  %2051 = vst.msk [vmem:[#allocation2 + $0x9] sm:$0xff] %vm1205, %v2046
  %2052 = vst.msk [vmem:[#allocation2 + $0x11] sm:$0x1] %vm1207, %v2048
  %v2053 = vld [vmem:[#allocation2] sm:$0xff]
  %v2054 = vld [vmem:[#allocation2 + $0x8] sm:$0xff]
  %v2055 = vld [vmem:[#allocation2 + $0x10] sm:$0x3]
  %v2056 = vld [vmem:[%s8] sm:$0xff]
  %v2057 = vld [vmem:[%s8 + $0x8] sm:$0xff]
  %v2058 = vld [vmem:[%s8 + $0x10] sm:$0xff]
  %v2059 = vld [vmem:[%s8 + $0x18] sm:$0xff]
  %v2060 = vld [vmem:[%s9] sm:$0x1]
  %v2062 = vlaneseq
  %v2063 = vshrl.u32 %v2062, 7
  %v2064 = vsub.s32 0, %v2063
  %v2065 = vrot.slane %v2060, %v2064
  %v2068 = vsel %vm267, %v2053, 0
  %v2071 = vsel %vm267, %v2054, 0
  %v2074 = vsel %vm267, %v2055, 0
  %2076 = vmatprep.subr.mxu0 0.0
  %2077 = vmatpush1.msra.mxu0 %v2056
  %2078 = vmatprep.subr.mxu0 0.0
  %2079 = vmatpush1.msra.mxu0 %v2057
  %2080 = vmatprep.subr.mxu0 0.0
  %2081 = vmatpush1.msra.mxu0 %v2058
  %2082 = vmatprep.subr.mxu0 0.0
  %2083 = vmatpush1.msra.mxu0 %v2059
  %2084 = vmatprep.subr.mxu0 0.0
  %2085 = vmatpush1.msra.mxu0 0.0
  %2086 = vmatprep.subr.mxu0 0.0
  %2087 = vmatpush1.msra.mxu0 0.0
  %2088 = vmatprep.subr.mxu0 0.0
  %2089 = vmatpush1.msra.mxu0 0.0
  %2090 = vmatprep.subr.mxu0 0.0
  %2091 = vmatpush1.msra.mxu0 0.0
  %2092 = vmatprep.subr.mxu0 0.0
  %2093 = vmatpush1.msra.mxu0 0.0
  %2094 = vmatprep.subr.mxu0 0.0
  %2095 = vmatpush1.msra.mxu0 0.0
  %2096 = vmatprep.subr.mxu0 0.0
  %2097 = vmatpush1.msra.mxu0 0.0
  %2098 = vmatprep.subr.mxu0 0.0
  %2099 = vmatpush1.msra.mxu0 0.0
  %2100 = vmatprep.subr.mxu0 0.0
  %2101 = vmatpush1.msra.mxu0 0.0
  %2102 = vmatprep.subr.mxu0 0.0
  %2103 = vmatpush1.msra.mxu0 0.0
  %2104 = vmatprep.subr.mxu0 0.0
  %2105 = vmatpush1.msra.mxu0 0.0
  %2106 = vmatprep.subr.mxu0 0.0
  %2107 = vmatpush1.msra.mxu0 0.0
  %2108 = vmatprep.subr.mxu0 0.0
  %2109 = vmatpush1.msra.mxu0 0.0
  %2110 = vmatprep.subr.mxu0 0.0
  %2111 = vmatpush1.msra.mxu0 0.0
  %2112 = vmatprep.subr.mxu0 0.0
  %2113 = vmatpush1.msra.mxu0 0.0
  %2114 = vmatprep.subr.mxu0 0.0
  %2115 = vmatpush1.msra.mxu0 0.0
  %2116 = vmatprep.subr.mxu0 0.0
  %2117 = vmatpush1.msra.mxu0 0.0
  %2118 = vmatprep.subr.mxu0 0.0
  %2119 = vmatpush1.msra.mxu0 0.0
  %2120 = vmatprep.subr.mxu0 0.0
  %2121 = vmatpush1.msra.mxu0 0.0
  %2122 = vmatprep.subr.mxu0 0.0
  %2123 = vmatpush1.msra.mxu0 0.0
  %2124 = vmatprep.subr.mxu0 0.0
  %2125 = vmatpush1.msra.mxu0 0.0
  %2126 = vmatprep.subr.mxu0 0.0
  %2127 = vmatpush1.msra.mxu0 0.0
  %2128 = vmatprep.subr.mxu0 0.0
  %2129 = vmatpush1.msra.mxu0 0.0
  %2130 = vmatprep.subr.mxu0 0.0
  %2131 = vmatpush1.msra.mxu0 0.0
  %2132 = vmatprep.subr.mxu0 0.0
  %2133 = vmatpush1.msra.mxu0 0.0
  %2134 = vmatprep.subr.mxu0 0.0
  %2135 = vmatpush1.msra.mxu0 0.0
  %2136 = vmatprep.subr.mxu0 0.0
  %2137 = vmatpush1.msra.mxu0 0.0
  %2138 = vmatprep.subr.mxu0 0.0
  %2139 = vmatpush1.msra.mxu0 0.0
  %2140 = vmatprep.mubr.f32.mxu0 0.0
  %2141 = vmatmul.mubr.f32.gmra.mrb[0].mxu0 %v2068
  %v2142 = vpop.f32.mrb[0].mxu0
  %v2143 = vadd.f32 %v2065, %v2142
  %v2144 = vpop.f32.mrb[0].mxu0
  %2145 = vmatprep.mubr.f32.mxu0 0.0
  %2146 = vmatmul.mubr.f32.gmra.mrb[0].mxu0 %v2071
  %v2147 = vpop.f32.mrb[0].mxu0
  %v2148 = vadd.f32 %v2065, %v2147
  %v2149 = vpop.f32.mrb[0].mxu0
  %2150 = vmatprep.mubr.f32.mxu0 0.0
  %2151 = vmatmul.mubr.f32.gmra.mrb[0].mxu0 %v2074
  %v2152 = vpop.f32.mrb[0].mxu0
  %v2153 = vadd.f32 %v2065, %v2152
  %v2154 = vpop.f32.mrb[0].mxu0
  %2155 = vdwg.mxu0
  %v2156 = vadd.f32 %v253, %v2143
  %v2157 = vadd.f32 %v254, %v2148
  %v2158 = vadd.f32 %v255, %v2153
  %v2159 = vld [vmem:[%s14] sm:$0x1]
  %v2160 = vld [vmem:[%s15] sm:$0x1]
  %v2161 = vsel %vm267, %v2156, 0.0
  %2162 = vadd.xlane.f32.xlu0 %v2161
  %v2163 = vpop.xlane.xlu0 %2162
  %v2164 = vsel %vm267, %v2157, 0.0
  %2165 = vadd.xlane.f32.xlu0 %v2164
  %v2166 = vpop.xlane.xlu0 %2165
  %vm2167 = vcmask 254976
  %v2168 = vsel %vm2167, %v2158, 0.0
  %2169 = vadd.xlane.f32.xlu0 %v2168
  %v2170 = vpop.xlane.xlu0 %2169
  %v2171 = vrcp.pop 32.0
  %v2172 = vmul.f32 %v2163, %v2171
  %v2173 = vmul.f32 %v2166, %v2171
  %v2174 = vmul.f32 %v2170, %v2171
  %v2175 = vsub.f32 %v2156, %v2172
  %v2176 = vsub.f32 %v2157, %v2173
  %v2177 = vsub.f32 %v2158, %v2174
  %v2178 = vmul.f32 %v2175, %v2175
  %v2179 = vmul.f32 %v2176, %v2176
  %v2180 = vmul.f32 %v2177, %v2177
  %v2181 = vsel %vm267, %v2178, 0.0
  %2182 = vadd.xlane.f32.xlu0 %v2181
  %v2183 = vpop.xlane.xlu0 %2182
  %v2184 = vsel %vm267, %v2179, 0.0
  %2185 = vadd.xlane.f32.xlu0 %v2184
  %v2186 = vpop.xlane.xlu0 %2185
  %v2187 = vsel %vm2167, %v2180, 0.0
  %2188 = vadd.xlane.f32.xlu0 %v2187
  %v2189 = vpop.xlane.xlu0 %2188
  %v2190 = vmul.f32 %v2183, %v2171
  %v2191 = vmul.f32 %v2186, %v2171
  %v2192 = vmul.f32 %v2189, %v2171
  %v2193 = vadd.f32 %v2190, 1e-05
  %v2194 = vadd.f32 %v2191, 1e-05
  %v2195 = vadd.f32 %v2192, 1e-05
  %v2196 = vrsqrt.pop %v2193
  %v2197 = vrsqrt.pop %v2194
  %v2198 = vrsqrt.pop %v2195
  %v2199 = vmul.f32 %v2175, %v2196
  %v2200 = vmul.f32 %v2176, %v2197
  %v2201 = vmul.f32 %v2177, %v2198
  %v2203 = vlaneseq
  %v2204 = vshrl.u32 %v2203, 7
  %v2205 = vsub.s32 0, %v2204
  %v2206 = vrot.slane %v2159, %v2205
  %v2208 = vmul.f32 %v2199, %v2206
  %v2209 = vmul.f32 %v2200, %v2206
  %v2210 = vmul.f32 %v2201, %v2206
  %v2212 = vlaneseq
  %v2213 = vshrl.u32 %v2212, 7
  %v2214 = vsub.s32 0, %v2213
  %v2215 = vrot.slane %v2160, %v2214
  %v2217 = vadd.f32 %v2208, %v2215
  %v2218 = vadd.f32 %v2209, %v2215
  %v2219 = vadd.f32 %v2210, %v2215
  %v2220 = vld [vmem:[%s10] sm:$0xff]
  %v2221 = vld [vmem:[%s10 + $0x8] sm:$0xff]
  %v2222 = vld [vmem:[%s10 + $0x10] sm:$0xff]
  %v2223 = vld [vmem:[%s10 + $0x18] sm:$0xff]
  %v2224 = vld [vmem:[%s11] sm:$0x1]
  %v2226 = vlaneseq
  %v2227 = vshrl.u32 %v2226, 7
  %v2228 = vsub.s32 0, %v2227
  %v2229 = vrot.slane %v2224, %v2228
  %v2232 = vsel %vm267, %v2217, 0
  %v2235 = vsel %vm267, %v2218, 0
  %v2238 = vsel %vm267, %v2219, 0
  %2240 = vmatprep.subr.mxu0 0.0
  %2241 = vmatpush1.msra.mxu0 %v2220
  %2242 = vmatprep.subr.mxu0 0.0
  %2243 = vmatpush1.msra.mxu0 %v2221
  %2244 = vmatprep.subr.mxu0 0.0
  %2245 = vmatpush1.msra.mxu0 %v2222
  %2246 = vmatprep.subr.mxu0 0.0
  %2247 = vmatpush1.msra.mxu0 %v2223
  %2248 = vmatprep.subr.mxu0 0.0
  %2249 = vmatpush1.msra.mxu0 0.0
  %2250 = vmatprep.subr.mxu0 0.0
  %2251 = vmatpush1.msra.mxu0 0.0
  %2252 = vmatprep.subr.mxu0 0.0
  %2253 = vmatpush1.msra.mxu0 0.0
  %2254 = vmatprep.subr.mxu0 0.0
  %2255 = vmatpush1.msra.mxu0 0.0
  %2256 = vmatprep.subr.mxu0 0.0
  %2257 = vmatpush1.msra.mxu0 0.0
  %2258 = vmatprep.subr.mxu0 0.0
  %2259 = vmatpush1.msra.mxu0 0.0
  %2260 = vmatprep.subr.mxu0 0.0
  %2261 = vmatpush1.msra.mxu0 0.0
  %2262 = vmatprep.subr.mxu0 0.0
  %2263 = vmatpush1.msra.mxu0 0.0
  %2264 = vmatprep.subr.mxu0 0.0
  %2265 = vmatpush1.msra.mxu0 0.0
  %2266 = vmatprep.subr.mxu0 0.0
  %2267 = vmatpush1.msra.mxu0 0.0
  %2268 = vmatprep.subr.mxu0 0.0
  %2269 = vmatpush1.msra.mxu0 0.0
  %2270 = vmatprep.subr.mxu0 0.0
  %2271 = vmatpush1.msra.mxu0 0.0
  %2272 = vmatprep.subr.mxu0 0.0
  %2273 = vmatpush1.msra.mxu0 0.0
  %2274 = vmatprep.subr.mxu0 0.0
  %2275 = vmatpush1.msra.mxu0 0.0
  %2276 = vmatprep.subr.mxu0 0.0
  %2277 = vmatpush1.msra.mxu0 0.0
  %2278 = vmatprep.subr.mxu0 0.0
  %2279 = vmatpush1.msra.mxu0 0.0
  %2280 = vmatprep.subr.mxu0 0.0
  %2281 = vmatpush1.msra.mxu0 0.0
  %2282 = vmatprep.subr.mxu0 0.0
  %2283 = vmatpush1.msra.mxu0 0.0
  %2284 = vmatprep.subr.mxu0 0.0
  %2285 = vmatpush1.msra.mxu0 0.0
  %2286 = vmatprep.subr.mxu0 0.0
  %2287 = vmatpush1.msra.mxu0 0.0
  %2288 = vmatprep.subr.mxu0 0.0
  %2289 = vmatpush1.msra.mxu0 0.0
  %2290 = vmatprep.subr.mxu0 0.0
  %2291 = vmatpush1.msra.mxu0 0.0
  %2292 = vmatprep.subr.mxu0 0.0
  %2293 = vmatpush1.msra.mxu0 0.0
  %2294 = vmatprep.subr.mxu0 0.0
  %2295 = vmatpush1.msra.mxu0 0.0
  %2296 = vmatprep.subr.mxu0 0.0
  %2297 = vmatpush1.msra.mxu0 0.0
  %2298 = vmatprep.subr.mxu0 0.0
  %2299 = vmatpush1.msra.mxu0 0.0
  %2300 = vmatprep.subr.mxu0 0.0
  %2301 = vmatpush1.msra.mxu0 0.0
  %2302 = vmatprep.subr.mxu0 0.0
  %2303 = vmatpush1.msra.mxu0 0.0
  %2304 = vmatprep.mubr.f32.mxu0 0.0
  %2305 = vmatmul.mubr.f32.gmra.mrb[0].mxu0 %v2232
  %v2306 = vpop.f32.mrb[0].mxu0
  %v2307 = vadd.f32 %v2229, %v2306
  %v2308 = vpop.f32.mrb[0].mxu0
  %2309 = vmatprep.mubr.f32.mxu0 0.0
  %2310 = vmatmul.mubr.f32.gmra.mrb[0].mxu0 %v2235
  %v2311 = vpop.f32.mrb[0].mxu0
  %v2312 = vadd.f32 %v2229, %v2311
  %v2313 = vpop.f32.mrb[0].mxu0
  %2314 = vmatprep.mubr.f32.mxu0 0.0
  %2315 = vmatmul.mubr.f32.gmra.mrb[0].mxu0 %v2238
  %v2316 = vpop.f32.mrb[0].mxu0
  %v2317 = vadd.f32 %v2229, %v2316
  %v2318 = vpop.f32.mrb[0].mxu0
  %2319 = vdwg.mxu0
  %v2320 = vmax.f32 %v2307, 0.0
  %v2321 = vmax.f32 %v2312, 0.0
  %v2322 = vmax.f32 %v2317, 0.0
  %v2323 = vld [vmem:[%s12] sm:$0xff]
  %v2324 = vld [vmem:[%s12 + $0x8] sm:$0xff]
  %v2325 = vld [vmem:[%s12 + $0x10] sm:$0xff]
  %v2326 = vld [vmem:[%s12 + $0x18] sm:$0xff]
  %v2327 = vld [vmem:[%s12 + $0x20] sm:$0xff]
  %v2328 = vld [vmem:[%s12 + $0x28] sm:$0xff]
  %v2329 = vld [vmem:[%s12 + $0x30] sm:$0xff]
  %v2330 = vld [vmem:[%s12 + $0x38] sm:$0xff]
  %v2331 = vld [vmem:[%s13] sm:$0x1]
  %v2333 = vlaneseq
  %v2334 = vshrl.u32 %v2333, 7
  %v2335 = vsub.s32 0, %v2334
  %v2336 = vrot.slane %v2331, %v2335
  %vm2338 = vcmask 523264
  %v2340 = vsel %vm2338, %v2320, 0
  %v2343 = vsel %vm2338, %v2321, 0
  %v2346 = vsel %vm2338, %v2322, 0
  %2348 = vmatprep.subr.mxu0 0.0
  %2349 = vmatpush1.msra.mxu0 %v2323
  %2350 = vmatprep.subr.mxu0 0.0
  %2351 = vmatpush1.msra.mxu0 %v2324
  %2352 = vmatprep.subr.mxu0 0.0
  %2353 = vmatpush1.msra.mxu0 %v2325
  %2354 = vmatprep.subr.mxu0 0.0
  %2355 = vmatpush1.msra.mxu0 %v2326
  %2356 = vmatprep.subr.mxu0 0.0
  %2357 = vmatpush1.msra.mxu0 %v2327
  %2358 = vmatprep.subr.mxu0 0.0
  %2359 = vmatpush1.msra.mxu0 %v2328
  %2360 = vmatprep.subr.mxu0 0.0
  %2361 = vmatpush1.msra.mxu0 %v2329
  %2362 = vmatprep.subr.mxu0 0.0
  %2363 = vmatpush1.msra.mxu0 %v2330
  %2364 = vmatprep.subr.mxu0 0.0
  %2365 = vmatpush1.msra.mxu0 0.0
  %2366 = vmatprep.subr.mxu0 0.0
  %2367 = vmatpush1.msra.mxu0 0.0
  %2368 = vmatprep.subr.mxu0 0.0
  %2369 = vmatpush1.msra.mxu0 0.0
  %2370 = vmatprep.subr.mxu0 0.0
  %2371 = vmatpush1.msra.mxu0 0.0
  %2372 = vmatprep.subr.mxu0 0.0
  %2373 = vmatpush1.msra.mxu0 0.0
  %2374 = vmatprep.subr.mxu0 0.0
  %2375 = vmatpush1.msra.mxu0 0.0
  %2376 = vmatprep.subr.mxu0 0.0
  %2377 = vmatpush1.msra.mxu0 0.0
  %2378 = vmatprep.subr.mxu0 0.0
  %2379 = vmatpush1.msra.mxu0 0.0
  %2380 = vmatprep.subr.mxu0 0.0
  %2381 = vmatpush1.msra.mxu0 0.0
  %2382 = vmatprep.subr.mxu0 0.0
  %2383 = vmatpush1.msra.mxu0 0.0
  %2384 = vmatprep.subr.mxu0 0.0
  %2385 = vmatpush1.msra.mxu0 0.0
  %2386 = vmatprep.subr.mxu0 0.0
  %2387 = vmatpush1.msra.mxu0 0.0
  %2388 = vmatprep.subr.mxu0 0.0
  %2389 = vmatpush1.msra.mxu0 0.0
  %2390 = vmatprep.subr.mxu0 0.0
  %2391 = vmatpush1.msra.mxu0 0.0
  %2392 = vmatprep.subr.mxu0 0.0
  %2393 = vmatpush1.msra.mxu0 0.0
  %2394 = vmatprep.subr.mxu0 0.0
  %2395 = vmatpush1.msra.mxu0 0.0
  %2396 = vmatprep.subr.mxu0 0.0
  %2397 = vmatpush1.msra.mxu0 0.0
  %2398 = vmatprep.subr.mxu0 0.0
  %2399 = vmatpush1.msra.mxu0 0.0
  %2400 = vmatprep.subr.mxu0 0.0
  %2401 = vmatpush1.msra.mxu0 0.0
  %2402 = vmatprep.subr.mxu0 0.0
  %2403 = vmatpush1.msra.mxu0 0.0
  %2404 = vmatprep.subr.mxu0 0.0
  %2405 = vmatpush1.msra.mxu0 0.0
  %2406 = vmatprep.subr.mxu0 0.0
  %2407 = vmatpush1.msra.mxu0 0.0
  %2408 = vmatprep.subr.mxu0 0.0
  %2409 = vmatpush1.msra.mxu0 0.0
  %2410 = vmatprep.subr.mxu0 0.0
  %2411 = vmatpush1.msra.mxu0 0.0
  %2412 = vmatprep.mubr.f32.mxu0 0.0
  %2413 = vmatmul.mubr.f32.gmra.mrb[0].mxu0 %v2340
  %v2414 = vpop.f32.mrb[0].mxu0
  %v2415 = vadd.f32 %v2336, %v2414
  %v2416 = vpop.f32.mrb[0].mxu0
  %2417 = vmatprep.mubr.f32.mxu0 0.0
  %2418 = vmatmul.mubr.f32.gmra.mrb[0].mxu0 %v2343
  %v2419 = vpop.f32.mrb[0].mxu0
  %v2420 = vadd.f32 %v2336, %v2419
  %v2421 = vpop.f32.mrb[0].mxu0
  %2422 = vmatprep.mubr.f32.mxu0 0.0
  %2423 = vmatmul.mubr.f32.gmra.mrb[0].mxu0 %v2346
  %v2424 = vpop.f32.mrb[0].mxu0
  %v2425 = vadd.f32 %v2336, %v2424
  %v2426 = vpop.f32.mrb[0].mxu0
  %2427 = vdwg.mxu0
  %v2428 = vadd.f32 %v2217, %v2415
  %v2429 = vadd.f32 %v2218, %v2420
  %v2430 = vadd.f32 %v2219, %v2425
  %v2431 = vld [vmem:[%s16] sm:$0x1]
  %v2432 = vld [vmem:[%s17] sm:$0x1]
  %v2433 = vsel %vm267, %v2428, 0.0
  %2434 = vadd.xlane.f32.xlu0 %v2433
  %v2435 = vpop.xlane.xlu0 %2434
  %v2436 = vsel %vm267, %v2429, 0.0
  %2437 = vadd.xlane.f32.xlu0 %v2436
  %v2438 = vpop.xlane.xlu0 %2437
  %v2439 = vsel %vm2167, %v2430, 0.0
  %2440 = vadd.xlane.f32.xlu0 %v2439
  %v2441 = vpop.xlane.xlu0 %2440
  %v2442 = vmul.f32 %v2435, %v2171
  %v2443 = vmul.f32 %v2438, %v2171
  %v2444 = vmul.f32 %v2441, %v2171
  %v2445 = vsub.f32 %v2428, %v2442
  %v2446 = vsub.f32 %v2429, %v2443
  %v2447 = vsub.f32 %v2430, %v2444
  %v2448 = vmul.f32 %v2445, %v2445
  %v2449 = vmul.f32 %v2446, %v2446
  %v2450 = vmul.f32 %v2447, %v2447
  %v2451 = vsel %vm267, %v2448, 0.0
  %2452 = vadd.xlane.f32.xlu0 %v2451
  %v2453 = vpop.xlane.xlu0 %2452
  %v2454 = vsel %vm267, %v2449, 0.0
  %2455 = vadd.xlane.f32.xlu0 %v2454
  %v2456 = vpop.xlane.xlu0 %2455
  %v2457 = vsel %vm2167, %v2450, 0.0
  %2458 = vadd.xlane.f32.xlu0 %v2457
  %v2459 = vpop.xlane.xlu0 %2458
  %v2460 = vmul.f32 %v2453, %v2171
  %v2461 = vmul.f32 %v2456, %v2171
  %v2462 = vmul.f32 %v2459, %v2171
  %v2463 = vadd.f32 %v2460, 1e-05
  %v2464 = vadd.f32 %v2461, 1e-05
  %v2465 = vadd.f32 %v2462, 1e-05
  %v2466 = vrsqrt.pop %v2463
  %v2467 = vrsqrt.pop %v2464
  %v2468 = vrsqrt.pop %v2465
  %v2469 = vmul.f32 %v2445, %v2466
  %v2470 = vmul.f32 %v2446, %v2467
  %v2471 = vmul.f32 %v2447, %v2468
  %v2473 = vlaneseq
  %v2474 = vshrl.u32 %v2473, 7
  %v2475 = vsub.s32 0, %v2474
  %v2476 = vrot.slane %v2431, %v2475
  %v2478 = vmul.f32 %v2469, %v2476
  %v2479 = vmul.f32 %v2470, %v2476
  %v2480 = vmul.f32 %v2471, %v2476
  %v2482 = vlaneseq
  %v2483 = vshrl.u32 %v2482, 7
  %v2484 = vsub.s32 0, %v2483
  %v2485 = vrot.slane %v2432, %v2484
  %v2487 = vadd.f32 %v2478, %v2485
  %v2488 = vadd.f32 %v2479, %v2485
  %v2489 = vadd.f32 %v2480, %v2485
  %s2490 = scalar_lea.vmem %s6, 32
  %v2491 = vld [vmem:[%s2490] sm:$0xff]
  %v2492 = vld [vmem:[%s2490 + $0x8] sm:$0xff]
  %v2493 = vld [vmem:[%s2490 + $0x10] sm:$0xff]
  %v2494 = vld [vmem:[%s2490 + $0x18] sm:$0xff]
  %s2495 = scalar_lea.vmem %s7, 1
  %v2496 = vld [vmem:[%s2495] sm:$0x1]
  %v2498 = vlaneseq
  %v2499 = vshrl.u32 %v2498, 7
  %v2500 = vsub.s32 0, %v2499
  %v2501 = vrot.slane %v2496, %v2500
  %v2504 = vsel %vm267, %v2487, 0
  %v2507 = vsel %vm267, %v2488, 0
  %v2510 = vsel %vm267, %v2489, 0
  %2512 = vmatprep.subr.mxu0 0.0
  %2513 = vmatpush1.msra.mxu0 %v2491
  %2514 = vmatprep.subr.mxu0 0.0
  %2515 = vmatpush1.msra.mxu0 %v2492
  %2516 = vmatprep.subr.mxu0 0.0
  %2517 = vmatpush1.msra.mxu0 %v2493
  %2518 = vmatprep.subr.mxu0 0.0
  %2519 = vmatpush1.msra.mxu0 %v2494
  %2520 = vmatprep.subr.mxu0 0.0
  %2521 = vmatpush1.msra.mxu0 0.0
  %2522 = vmatprep.subr.mxu0 0.0
  %2523 = vmatpush1.msra.mxu0 0.0
  %2524 = vmatprep.subr.mxu0 0.0
  %2525 = vmatpush1.msra.mxu0 0.0
  %2526 = vmatprep.subr.mxu0 0.0
  %2527 = vmatpush1.msra.mxu0 0.0
  %2528 = vmatprep.subr.mxu0 0.0
  %2529 = vmatpush1.msra.mxu0 0.0
  %2530 = vmatprep.subr.mxu0 0.0
  %2531 = vmatpush1.msra.mxu0 0.0
  %2532 = vmatprep.subr.mxu0 0.0
  %2533 = vmatpush1.msra.mxu0 0.0
  %2534 = vmatprep.subr.mxu0 0.0
  %2535 = vmatpush1.msra.mxu0 0.0
  %2536 = vmatprep.subr.mxu0 0.0
  %2537 = vmatpush1.msra.mxu0 0.0
  %2538 = vmatprep.subr.mxu0 0.0
  %2539 = vmatpush1.msra.mxu0 0.0
  %2540 = vmatprep.subr.mxu0 0.0
  %2541 = vmatpush1.msra.mxu0 0.0
  %2542 = vmatprep.subr.mxu0 0.0
  %2543 = vmatpush1.msra.mxu0 0.0
  %2544 = vmatprep.subr.mxu0 0.0
  %2545 = vmatpush1.msra.mxu0 0.0
  %2546 = vmatprep.subr.mxu0 0.0
  %2547 = vmatpush1.msra.mxu0 0.0
  %2548 = vmatprep.subr.mxu0 0.0
  %2549 = vmatpush1.msra.mxu0 0.0
  %2550 = vmatprep.subr.mxu0 0.0
  %2551 = vmatpush1.msra.mxu0 0.0
  %2552 = vmatprep.subr.mxu0 0.0
  %2553 = vmatpush1.msra.mxu0 0.0
  %2554 = vmatprep.subr.mxu0 0.0
  %2555 = vmatpush1.msra.mxu0 0.0
  %2556 = vmatprep.subr.mxu0 0.0
  %2557 = vmatpush1.msra.mxu0 0.0
  %2558 = vmatprep.subr.mxu0 0.0
  %2559 = vmatpush1.msra.mxu0 0.0
  %2560 = vmatprep.subr.mxu0 0.0
  %2561 = vmatpush1.msra.mxu0 0.0
  %2562 = vmatprep.subr.mxu0 0.0
  %2563 = vmatpush1.msra.mxu0 0.0
  %2564 = vmatprep.subr.mxu0 0.0
  %2565 = vmatpush1.msra.mxu0 0.0
  %2566 = vmatprep.subr.mxu0 0.0
  %2567 = vmatpush1.msra.mxu0 0.0
  %2568 = vmatprep.subr.mxu0 0.0
  %2569 = vmatpush1.msra.mxu0 0.0
  %2570 = vmatprep.subr.mxu0 0.0
  %2571 = vmatpush1.msra.mxu0 0.0
  %2572 = vmatprep.subr.mxu0 0.0
  %2573 = vmatpush1.msra.mxu0 0.0
  %2574 = vmatprep.subr.mxu0 0.0
  %2575 = vmatpush1.msra.mxu0 0.0
  %2576 = vmatprep.mubr.f32.mxu0 0.0
  %2577 = vmatmul.mubr.f32.gmra.mrb[0].mxu0 %v2504
  %v2578 = vpop.f32.mrb[0].mxu0
  %v2579 = vadd.f32 %v2501, %v2578
  %v2580 = vpop.f32.mrb[0].mxu0
  %2581 = vmatprep.mubr.f32.mxu0 0.0
  %2582 = vmatmul.mubr.f32.gmra.mrb[0].mxu0 %v2507
  %v2583 = vpop.f32.mrb[0].mxu0
  %v2584 = vadd.f32 %v2501, %v2583
  %v2585 = vpop.f32.mrb[0].mxu0
  %2586 = vmatprep.mubr.f32.mxu0 0.0
  %2587 = vmatmul.mubr.f32.gmra.mrb[0].mxu0 %v2510
  %v2588 = vpop.f32.mrb[0].mxu0
  %v2589 = vadd.f32 %v2501, %v2588
  %v2590 = vpop.f32.mrb[0].mxu0
  %2591 = vdwg.mxu0
  %v2592 = vmul.f32 %v2579, 0.35355338
  %v2593 = vmul.f32 %v2584, 0.35355338
  %v2594 = vmul.f32 %v2589, 0.35355338
  %v2595 = vld [vmem:[%s3] sm:$0xff]
  %v2596 = vld [vmem:[%s3 + $0x8] sm:$0x1]
  %2599 = vrot.lane.b32.xlu0 %v2579, 96
  %v2600 = vpop.permute.xlu0 %2599
  %2601 = vrot.lane.b32.xlu0 %v2584, 96
  %v2602 = vpop.permute.xlu0 %2601
  %v2604 = vsel %vm368, %v2592, 0
  %v2607 = vsel %vm368, %v2593, 0
  %v2609 = vsel %vm368, %v2600, 0
  %v2611 = vsel %vm368, %v2602, 0
  %2613 = vmatprep.subr.mxu0 0.0
  %2614 = vmatpush1.xpose.msra.mxu0 %v2609
  %2615 = vmatprep.subr.mxu0 0.0
  %2616 = vmatpush1.xpose.msra.mxu0 %v2611
  %2617 = vmatprep.subr.mxu0 0.0
  %2618 = vmatpush1.xpose.msra.mxu0 0.0
  %2619 = vmatprep.subr.mxu0 0.0
  %2620 = vmatpush1.xpose.msra.mxu0 0.0
  %2621 = vmatprep.subr.mxu0 0.0
  %2622 = vmatpush1.xpose.msra.mxu0 0.0
  %2623 = vmatprep.subr.mxu0 0.0
  %2624 = vmatpush1.xpose.msra.mxu0 0.0
  %2625 = vmatprep.subr.mxu0 0.0
  %2626 = vmatpush1.xpose.msra.mxu0 0.0
  %2627 = vmatprep.subr.mxu0 0.0
  %2628 = vmatpush1.xpose.msra.mxu0 0.0
  %2629 = vmatprep.subr.mxu0 0.0
  %2630 = vmatpush1.xpose.msra.mxu0 0.0
  %2631 = vmatprep.subr.mxu0 0.0
  %2632 = vmatpush1.xpose.msra.mxu0 0.0
  %2633 = vmatprep.subr.mxu0 0.0
  %2634 = vmatpush1.xpose.msra.mxu0 0.0
  %2635 = vmatprep.subr.mxu0 0.0
  %2636 = vmatpush1.xpose.msra.mxu0 0.0
  %2637 = vmatprep.subr.mxu0 0.0
  %2638 = vmatpush1.xpose.msra.mxu0 0.0
  %2639 = vmatprep.subr.mxu0 0.0
  %2640 = vmatpush1.xpose.msra.mxu0 0.0
  %2641 = vmatprep.subr.mxu0 0.0
  %2642 = vmatpush1.xpose.msra.mxu0 0.0
  %2643 = vmatprep.subr.mxu0 0.0
  %2644 = vmatpush1.xpose.msra.mxu0 0.0
  %2645 = vmatprep.subr.mxu0 0.0
  %2646 = vmatpush1.xpose.msra.mxu0 0.0
  %2647 = vmatprep.subr.mxu0 0.0
  %2648 = vmatpush1.xpose.msra.mxu0 0.0
  %2649 = vmatprep.subr.mxu0 0.0
  %2650 = vmatpush1.xpose.msra.mxu0 0.0
  %2651 = vmatprep.subr.mxu0 0.0
  %2652 = vmatpush1.xpose.msra.mxu0 0.0
  %2653 = vmatprep.subr.mxu0 0.0
  %2654 = vmatpush1.xpose.msra.mxu0 0.0
  %2655 = vmatprep.subr.mxu0 0.0
  %2656 = vmatpush1.xpose.msra.mxu0 0.0
  %2657 = vmatprep.subr.mxu0 0.0
  %2658 = vmatpush1.xpose.msra.mxu0 0.0
  %2659 = vmatprep.subr.mxu0 0.0
  %2660 = vmatpush1.xpose.msra.mxu0 0.0
  %2661 = vmatprep.subr.mxu0 0.0
  %2662 = vmatpush1.xpose.msra.mxu0 0.0
  %2663 = vmatprep.subr.mxu0 0.0
  %2664 = vmatpush1.xpose.msra.mxu0 0.0
  %2665 = vmatprep.subr.mxu0 0.0
  %2666 = vmatpush1.xpose.msra.mxu0 0.0
  %2667 = vmatprep.subr.mxu0 0.0
  %2668 = vmatpush1.xpose.msra.mxu0 0.0
  %2669 = vmatprep.subr.mxu0 0.0
  %2670 = vmatpush1.xpose.msra.mxu0 0.0
  %2671 = vmatprep.subr.mxu0 0.0
  %2672 = vmatpush1.xpose.msra.mxu0 0.0
  %2673 = vmatprep.subr.mxu0 0.0
  %2674 = vmatpush1.xpose.msra.mxu0 0.0
  %2675 = vmatprep.subr.mxu0 0.0
  %2676 = vmatpush1.xpose.msra.mxu0 0.0
  %2677 = vmatprep.mubr.f32.mxu0 0.0
  %2678 = vmatmul.mubr.f32.gmra.mrb[0].mxu0 %v2604
  %v2679 = vpop.f32.mrb[0].mxu0
  %v2680 = vadd.f32 %v2595, %v2679
  %v2681 = vpop.f32.mrb[0].mxu0
  %2682 = vmatprep.mubr.f32.mxu0 0.0
  %2683 = vmatmul.mubr.f32.gmra.mrb[0].mxu0 %v2607
  %v2684 = vpop.f32.mrb[0].mxu0
  %v2685 = vadd.f32 %v2596, %v2684
  %v2686 = vpop.f32.mrb[0].mxu0
  %2687 = vdwg.mxu0
  %v2688 = vsel %vm454, %v2680, -inf
  %2689 = vmax.xlane.f32.xlu0 %v2688
  %v2690 = vpop.xlane.xlu0 %2689
  %v2691 = vsel %vm458, %v2685, -inf
  %2692 = vmax.xlane.f32.xlu0 %v2691
  %v2693 = vpop.xlane.xlu0 %2692
  %v2694 = vsub.f32 %v2680, %v2690
  %v2695 = vsub.f32 %v2685, %v2693
  %v2696 = vmul.f32 %v2694, 1.442695
  %v2697 = vpow.pop %v2696
  %v2698 = vmul.f32 %v2695, 1.442695
  %v2699 = vpow.pop %v2698
  %v2700 = vsel %vm454, %v2697, 0.0
  %2701 = vadd.xlane.f32.xlu0 %v2700
  %v2702 = vpop.xlane.xlu0 %2701
  %v2703 = vsel %vm458, %v2699, 0.0
  %2704 = vadd.xlane.f32.xlu0 %v2703
  %v2705 = vpop.xlane.xlu0 %2704
  %2706 = vrot.lane.b32.xlu0 %v2579, 64
  %v2707 = vpop.permute.xlu0 %2706
  %2708 = vrot.lane.b32.xlu0 %v2584, 64
  %v2709 = vpop.permute.xlu0 %2708
  %v2712 = vsel %vm454, %v2697, 0
  %v2715 = vsel %vm454, %v2699, 0
  %v2717 = vsel %vm485, %v2709, 0
  %2719 = vmatprep.subr.mxu0 0.0
  %2720 = vmatpush1.msra.mxu0 %v2707
  %2721 = vmatprep.subr.mxu0 0.0
  %2722 = vmatpush1.msra.mxu0 %v2717
  %2723 = vmatprep.subr.mxu0 0.0
  %2724 = vmatpush1.msra.mxu0 0.0
  %2725 = vmatprep.subr.mxu0 0.0
  %2726 = vmatpush1.msra.mxu0 0.0
  %2727 = vmatprep.subr.mxu0 0.0
  %2728 = vmatpush1.msra.mxu0 0.0
  %2729 = vmatprep.subr.mxu0 0.0
  %2730 = vmatpush1.msra.mxu0 0.0
  %2731 = vmatprep.subr.mxu0 0.0
  %2732 = vmatpush1.msra.mxu0 0.0
  %2733 = vmatprep.subr.mxu0 0.0
  %2734 = vmatpush1.msra.mxu0 0.0
  %2735 = vmatprep.subr.mxu0 0.0
  %2736 = vmatpush1.msra.mxu0 0.0
  %2737 = vmatprep.subr.mxu0 0.0
  %2738 = vmatpush1.msra.mxu0 0.0
  %2739 = vmatprep.subr.mxu0 0.0
  %2740 = vmatpush1.msra.mxu0 0.0
  %2741 = vmatprep.subr.mxu0 0.0
  %2742 = vmatpush1.msra.mxu0 0.0
  %2743 = vmatprep.subr.mxu0 0.0
  %2744 = vmatpush1.msra.mxu0 0.0
  %2745 = vmatprep.subr.mxu0 0.0
  %2746 = vmatpush1.msra.mxu0 0.0
  %2747 = vmatprep.subr.mxu0 0.0
  %2748 = vmatpush1.msra.mxu0 0.0
  %2749 = vmatprep.subr.mxu0 0.0
  %2750 = vmatpush1.msra.mxu0 0.0
  %2751 = vmatprep.subr.mxu0 0.0
  %2752 = vmatpush1.msra.mxu0 0.0
  %2753 = vmatprep.subr.mxu0 0.0
  %2754 = vmatpush1.msra.mxu0 0.0
  %2755 = vmatprep.subr.mxu0 0.0
  %2756 = vmatpush1.msra.mxu0 0.0
  %2757 = vmatprep.subr.mxu0 0.0
  %2758 = vmatpush1.msra.mxu0 0.0
  %2759 = vmatprep.subr.mxu0 0.0
  %2760 = vmatpush1.msra.mxu0 0.0
  %2761 = vmatprep.subr.mxu0 0.0
  %2762 = vmatpush1.msra.mxu0 0.0
  %2763 = vmatprep.subr.mxu0 0.0
  %2764 = vmatpush1.msra.mxu0 0.0
  %2765 = vmatprep.subr.mxu0 0.0
  %2766 = vmatpush1.msra.mxu0 0.0
  %2767 = vmatprep.subr.mxu0 0.0
  %2768 = vmatpush1.msra.mxu0 0.0
  %2769 = vmatprep.subr.mxu0 0.0
  %2770 = vmatpush1.msra.mxu0 0.0
  %2771 = vmatprep.subr.mxu0 0.0
  %2772 = vmatpush1.msra.mxu0 0.0
  %2773 = vmatprep.subr.mxu0 0.0
  %2774 = vmatpush1.msra.mxu0 0.0
  %2775 = vmatprep.subr.mxu0 0.0
  %2776 = vmatpush1.msra.mxu0 0.0
  %2777 = vmatprep.subr.mxu0 0.0
  %2778 = vmatpush1.msra.mxu0 0.0
  %2779 = vmatprep.subr.mxu0 0.0
  %2780 = vmatpush1.msra.mxu0 0.0
  %2781 = vmatprep.subr.mxu0 0.0
  %2782 = vmatpush1.msra.mxu0 0.0
  %2783 = vmatprep.mubr.f32.mxu0 0.0
  %2784 = vmatmul.mubr.f32.gmra.mrb[0].mxu0 %v2712
  %v2785 = vpop.f32.mrb[0].mxu0
  %v2786 = vadd.f32 0.0, %v2785
  %v2787 = vpop.f32.mrb[0].mxu0
  %2788 = vmatprep.mubr.f32.mxu0 0.0
  %2789 = vmatmul.mubr.f32.gmra.mrb[0].mxu0 %v2715
  %v2790 = vpop.f32.mrb[0].mxu0
  %v2791 = vadd.f32 0.0, %v2790
  %v2792 = vpop.f32.mrb[0].mxu0
  %2793 = vdwg.mxu0
  %v2794 = vrcp.pop %v2702
  %v2795 = vrcp.pop %v2705
  %v2796 = vmul.f32 %v2786, %v2794
  %v2797 = vmul.f32 %v2791, %v2795
  %2798 = vst.msk [vmem:[#allocation2] sm:$0xff] %vm368, %v2796
  %2799 = vst.msk [vmem:[#allocation2 + $0x8] sm:$0x1] %vm568, %v2797
  %2800 = vrot.lane.b32.xlu0 %v2592, 120
  %v2801 = vpop.permute.xlu0 %2800
  %2802 = vrot.lane.b32.xlu0 %v2593, 120
  %v2803 = vpop.permute.xlu0 %2802
  %2804 = vrot.lane.b32.xlu0 %v2579, 88
  %v2805 = vpop.permute.xlu0 %2804
  %2806 = vrot.lane.b32.xlu0 %v2584, 88
  %v2807 = vpop.permute.xlu0 %2806
  %v2808 = vsel %vm368, %v2801, 0
  %v2810 = vsel %vm368, %v2803, 0
  %v2812 = vsel %vm368, %v2805, 0
  %v2814 = vsel %vm368, %v2807, 0
  %2816 = vmatprep.subr.mxu0 0.0
  %2817 = vmatpush1.xpose.msra.mxu0 %v2812
  %2818 = vmatprep.subr.mxu0 0.0
  %2819 = vmatpush1.xpose.msra.mxu0 %v2814
  %2820 = vmatprep.subr.mxu0 0.0
  %2821 = vmatpush1.xpose.msra.mxu0 0.0
  %2822 = vmatprep.subr.mxu0 0.0
  %2823 = vmatpush1.xpose.msra.mxu0 0.0
  %2824 = vmatprep.subr.mxu0 0.0
  %2825 = vmatpush1.xpose.msra.mxu0 0.0
  %2826 = vmatprep.subr.mxu0 0.0
  %2827 = vmatpush1.xpose.msra.mxu0 0.0
  %2828 = vmatprep.subr.mxu0 0.0
  %2829 = vmatpush1.xpose.msra.mxu0 0.0
  %2830 = vmatprep.subr.mxu0 0.0
  %2831 = vmatpush1.xpose.msra.mxu0 0.0
  %2832 = vmatprep.subr.mxu0 0.0
  %2833 = vmatpush1.xpose.msra.mxu0 0.0
  %2834 = vmatprep.subr.mxu0 0.0
  %2835 = vmatpush1.xpose.msra.mxu0 0.0
  %2836 = vmatprep.subr.mxu0 0.0
  %2837 = vmatpush1.xpose.msra.mxu0 0.0
  %2838 = vmatprep.subr.mxu0 0.0
  %2839 = vmatpush1.xpose.msra.mxu0 0.0
  %2840 = vmatprep.subr.mxu0 0.0
  %2841 = vmatpush1.xpose.msra.mxu0 0.0
  %2842 = vmatprep.subr.mxu0 0.0
  %2843 = vmatpush1.xpose.msra.mxu0 0.0
  %2844 = vmatprep.subr.mxu0 0.0
  %2845 = vmatpush1.xpose.msra.mxu0 0.0
  %2846 = vmatprep.subr.mxu0 0.0
  %2847 = vmatpush1.xpose.msra.mxu0 0.0
  %2848 = vmatprep.subr.mxu0 0.0
  %2849 = vmatpush1.xpose.msra.mxu0 0.0
  %2850 = vmatprep.subr.mxu0 0.0
  %2851 = vmatpush1.xpose.msra.mxu0 0.0
  %2852 = vmatprep.subr.mxu0 0.0
  %2853 = vmatpush1.xpose.msra.mxu0 0.0
  %2854 = vmatprep.subr.mxu0 0.0
  %2855 = vmatpush1.xpose.msra.mxu0 0.0
  %2856 = vmatprep.subr.mxu0 0.0
  %2857 = vmatpush1.xpose.msra.mxu0 0.0
  %2858 = vmatprep.subr.mxu0 0.0
  %2859 = vmatpush1.xpose.msra.mxu0 0.0
  %2860 = vmatprep.subr.mxu0 0.0
  %2861 = vmatpush1.xpose.msra.mxu0 0.0
  %2862 = vmatprep.subr.mxu0 0.0
  %2863 = vmatpush1.xpose.msra.mxu0 0.0
  %2864 = vmatprep.subr.mxu0 0.0
  %2865 = vmatpush1.xpose.msra.mxu0 0.0
  %2866 = vmatprep.subr.mxu0 0.0
  %2867 = vmatpush1.xpose.msra.mxu0 0.0
  %2868 = vmatprep.subr.mxu0 0.0
  %2869 = vmatpush1.xpose.msra.mxu0 0.0
  %2870 = vmatprep.subr.mxu0 0.0
  %2871 = vmatpush1.xpose.msra.mxu0 0.0
  %2872 = vmatprep.subr.mxu0 0.0
  %2873 = vmatpush1.xpose.msra.mxu0 0.0
  %2874 = vmatprep.subr.mxu0 0.0
  %2875 = vmatpush1.xpose.msra.mxu0 0.0
  %2876 = vmatprep.subr.mxu0 0.0
  %2877 = vmatpush1.xpose.msra.mxu0 0.0
  %2878 = vmatprep.subr.mxu0 0.0
  %2879 = vmatpush1.xpose.msra.mxu0 0.0
  %2880 = vmatprep.mubr.f32.mxu0 0.0
  %2881 = vmatmul.mubr.f32.gmra.mrb[0].mxu0 %v2808
  %v2882 = vpop.f32.mrb[0].mxu0
  %v2883 = vadd.f32 %v2595, %v2882
  %v2884 = vpop.f32.mrb[0].mxu0
  %2885 = vmatprep.mubr.f32.mxu0 0.0
  %2886 = vmatmul.mubr.f32.gmra.mrb[0].mxu0 %v2810
  %v2887 = vpop.f32.mrb[0].mxu0
  %v2888 = vadd.f32 %v2596, %v2887
  %v2889 = vpop.f32.mrb[0].mxu0
  %2890 = vdwg.mxu0
  %v2891 = vsel %vm454, %v2883, -inf
  %2892 = vmax.xlane.f32.xlu0 %v2891
  %v2893 = vpop.xlane.xlu0 %2892
  %v2894 = vsel %vm458, %v2888, -inf
  %2895 = vmax.xlane.f32.xlu0 %v2894
  %v2896 = vpop.xlane.xlu0 %2895
  %v2897 = vsub.f32 %v2883, %v2893
  %v2898 = vsub.f32 %v2888, %v2896
  %v2899 = vmul.f32 %v2897, 1.442695
  %v2900 = vpow.pop %v2899
  %v2901 = vmul.f32 %v2898, 1.442695
  %v2902 = vpow.pop %v2901
  %v2903 = vsel %vm454, %v2900, 0.0
  %2904 = vadd.xlane.f32.xlu0 %v2903
  %v2905 = vpop.xlane.xlu0 %2904
  %v2906 = vsel %vm458, %v2902, 0.0
  %2907 = vadd.xlane.f32.xlu0 %v2906
  %v2908 = vpop.xlane.xlu0 %2907
  %2909 = vrot.lane.b32.xlu0 %v2579, 56
  %v2910 = vpop.permute.xlu0 %2909
  %2911 = vrot.lane.b32.xlu0 %v2584, 56
  %v2912 = vpop.permute.xlu0 %2911
  %v2915 = vsel %vm454, %v2900, 0
  %v2918 = vsel %vm454, %v2902, 0
  %v2920 = vsel %vm485, %v2912, 0
  %2922 = vmatprep.subr.mxu0 0.0
  %2923 = vmatpush1.msra.mxu0 %v2910
  %2924 = vmatprep.subr.mxu0 0.0
  %2925 = vmatpush1.msra.mxu0 %v2920
  %2926 = vmatprep.subr.mxu0 0.0
  %2927 = vmatpush1.msra.mxu0 0.0
  %2928 = vmatprep.subr.mxu0 0.0
  %2929 = vmatpush1.msra.mxu0 0.0
  %2930 = vmatprep.subr.mxu0 0.0
  %2931 = vmatpush1.msra.mxu0 0.0
  %2932 = vmatprep.subr.mxu0 0.0
  %2933 = vmatpush1.msra.mxu0 0.0
  %2934 = vmatprep.subr.mxu0 0.0
  %2935 = vmatpush1.msra.mxu0 0.0
  %2936 = vmatprep.subr.mxu0 0.0
  %2937 = vmatpush1.msra.mxu0 0.0
  %2938 = vmatprep.subr.mxu0 0.0
  %2939 = vmatpush1.msra.mxu0 0.0
  %2940 = vmatprep.subr.mxu0 0.0
  %2941 = vmatpush1.msra.mxu0 0.0
  %2942 = vmatprep.subr.mxu0 0.0
  %2943 = vmatpush1.msra.mxu0 0.0
  %2944 = vmatprep.subr.mxu0 0.0
  %2945 = vmatpush1.msra.mxu0 0.0
  %2946 = vmatprep.subr.mxu0 0.0
  %2947 = vmatpush1.msra.mxu0 0.0
  %2948 = vmatprep.subr.mxu0 0.0
  %2949 = vmatpush1.msra.mxu0 0.0
  %2950 = vmatprep.subr.mxu0 0.0
  %2951 = vmatpush1.msra.mxu0 0.0
  %2952 = vmatprep.subr.mxu0 0.0
  %2953 = vmatpush1.msra.mxu0 0.0
  %2954 = vmatprep.subr.mxu0 0.0
  %2955 = vmatpush1.msra.mxu0 0.0
  %2956 = vmatprep.subr.mxu0 0.0
  %2957 = vmatpush1.msra.mxu0 0.0
  %2958 = vmatprep.subr.mxu0 0.0
  %2959 = vmatpush1.msra.mxu0 0.0
  %2960 = vmatprep.subr.mxu0 0.0
  %2961 = vmatpush1.msra.mxu0 0.0
  %2962 = vmatprep.subr.mxu0 0.0
  %2963 = vmatpush1.msra.mxu0 0.0
  %2964 = vmatprep.subr.mxu0 0.0
  %2965 = vmatpush1.msra.mxu0 0.0
  %2966 = vmatprep.subr.mxu0 0.0
  %2967 = vmatpush1.msra.mxu0 0.0
  %2968 = vmatprep.subr.mxu0 0.0
  %2969 = vmatpush1.msra.mxu0 0.0
  %2970 = vmatprep.subr.mxu0 0.0
  %2971 = vmatpush1.msra.mxu0 0.0
  %2972 = vmatprep.subr.mxu0 0.0
  %2973 = vmatpush1.msra.mxu0 0.0
  %2974 = vmatprep.subr.mxu0 0.0
  %2975 = vmatpush1.msra.mxu0 0.0
  %2976 = vmatprep.subr.mxu0 0.0
  %2977 = vmatpush1.msra.mxu0 0.0
  %2978 = vmatprep.subr.mxu0 0.0
  %2979 = vmatpush1.msra.mxu0 0.0
  %2980 = vmatprep.subr.mxu0 0.0
  %2981 = vmatpush1.msra.mxu0 0.0
  %2982 = vmatprep.subr.mxu0 0.0
  %2983 = vmatpush1.msra.mxu0 0.0
  %2984 = vmatprep.subr.mxu0 0.0
  %2985 = vmatpush1.msra.mxu0 0.0
  %2986 = vmatprep.mubr.f32.mxu0 0.0
  %2987 = vmatmul.mubr.f32.gmra.mrb[0].mxu0 %v2915
  %v2988 = vpop.f32.mrb[0].mxu0
  %v2989 = vadd.f32 0.0, %v2988
  %v2990 = vpop.f32.mrb[0].mxu0
  %2991 = vmatprep.mubr.f32.mxu0 0.0
  %2992 = vmatmul.mubr.f32.gmra.mrb[0].mxu0 %v2918
  %v2993 = vpop.f32.mrb[0].mxu0
  %v2994 = vadd.f32 0.0, %v2993
  %v2995 = vpop.f32.mrb[0].mxu0
  %2996 = vdwg.mxu0
  %v2997 = vrcp.pop %v2905
  %v2998 = vrcp.pop %v2908
  %v2999 = vmul.f32 %v2989, %v2997
  %v3000 = vmul.f32 %v2994, %v2998
  %3003 = vrot.lane.b32.xlu0 %v2999, 8
  %v3004 = vpop.permute.xlu0 %3003
  %3005 = vrot.lane.b32.xlu0 %v3000, 8
  %v3006 = vpop.permute.xlu0 %3005
  %3009 = vst.msk [vmem:[#allocation2] sm:$0xff] %vm779, %v3004
  %3010 = vst.msk [vmem:[#allocation2 + $0x8] sm:$0x1] %vm781, %v3006
  %3011 = vrot.lane.b32.xlu0 %v2592, 112
  %v3012 = vpop.permute.xlu0 %3011
  %3013 = vrot.lane.b32.xlu0 %v2593, 112
  %v3014 = vpop.permute.xlu0 %3013
  %3015 = vrot.lane.b32.xlu0 %v2579, 80
  %v3016 = vpop.permute.xlu0 %3015
  %3017 = vrot.lane.b32.xlu0 %v2584, 80
  %v3018 = vpop.permute.xlu0 %3017
  %v3019 = vsel %vm368, %v3012, 0
  %v3021 = vsel %vm368, %v3014, 0
  %v3023 = vsel %vm368, %v3016, 0
  %v3025 = vsel %vm368, %v3018, 0
  %3027 = vmatprep.subr.mxu0 0.0
  %3028 = vmatpush1.xpose.msra.mxu0 %v3023
  %3029 = vmatprep.subr.mxu0 0.0
  %3030 = vmatpush1.xpose.msra.mxu0 %v3025
  %3031 = vmatprep.subr.mxu0 0.0
  %3032 = vmatpush1.xpose.msra.mxu0 0.0
  %3033 = vmatprep.subr.mxu0 0.0
  %3034 = vmatpush1.xpose.msra.mxu0 0.0
  %3035 = vmatprep.subr.mxu0 0.0
  %3036 = vmatpush1.xpose.msra.mxu0 0.0
  %3037 = vmatprep.subr.mxu0 0.0
  %3038 = vmatpush1.xpose.msra.mxu0 0.0
  %3039 = vmatprep.subr.mxu0 0.0
  %3040 = vmatpush1.xpose.msra.mxu0 0.0
  %3041 = vmatprep.subr.mxu0 0.0
  %3042 = vmatpush1.xpose.msra.mxu0 0.0
  %3043 = vmatprep.subr.mxu0 0.0
  %3044 = vmatpush1.xpose.msra.mxu0 0.0
  %3045 = vmatprep.subr.mxu0 0.0
  %3046 = vmatpush1.xpose.msra.mxu0 0.0
  %3047 = vmatprep.subr.mxu0 0.0
  %3048 = vmatpush1.xpose.msra.mxu0 0.0
  %3049 = vmatprep.subr.mxu0 0.0
  %3050 = vmatpush1.xpose.msra.mxu0 0.0
  %3051 = vmatprep.subr.mxu0 0.0
  %3052 = vmatpush1.xpose.msra.mxu0 0.0
  %3053 = vmatprep.subr.mxu0 0.0
  %3054 = vmatpush1.xpose.msra.mxu0 0.0
  %3055 = vmatprep.subr.mxu0 0.0
  %3056 = vmatpush1.xpose.msra.mxu0 0.0
  %3057 = vmatprep.subr.mxu0 0.0
  %3058 = vmatpush1.xpose.msra.mxu0 0.0
  %3059 = vmatprep.subr.mxu0 0.0
  %3060 = vmatpush1.xpose.msra.mxu0 0.0
  %3061 = vmatprep.subr.mxu0 0.0
  %3062 = vmatpush1.xpose.msra.mxu0 0.0
  %3063 = vmatprep.subr.mxu0 0.0
  %3064 = vmatpush1.xpose.msra.mxu0 0.0
  %3065 = vmatprep.subr.mxu0 0.0
  %3066 = vmatpush1.xpose.msra.mxu0 0.0
  %3067 = vmatprep.subr.mxu0 0.0
  %3068 = vmatpush1.xpose.msra.mxu0 0.0
  %3069 = vmatprep.subr.mxu0 0.0
  %3070 = vmatpush1.xpose.msra.mxu0 0.0
  %3071 = vmatprep.subr.mxu0 0.0
  %3072 = vmatpush1.xpose.msra.mxu0 0.0
  %3073 = vmatprep.subr.mxu0 0.0
  %3074 = vmatpush1.xpose.msra.mxu0 0.0
  %3075 = vmatprep.subr.mxu0 0.0
  %3076 = vmatpush1.xpose.msra.mxu0 0.0
  %3077 = vmatprep.subr.mxu0 0.0
  %3078 = vmatpush1.xpose.msra.mxu0 0.0
  %3079 = vmatprep.subr.mxu0 0.0
  %3080 = vmatpush1.xpose.msra.mxu0 0.0
  %3081 = vmatprep.subr.mxu0 0.0
  %3082 = vmatpush1.xpose.msra.mxu0 0.0
  %3083 = vmatprep.subr.mxu0 0.0
  %3084 = vmatpush1.xpose.msra.mxu0 0.0
  %3085 = vmatprep.subr.mxu0 0.0
  %3086 = vmatpush1.xpose.msra.mxu0 0.0
  %3087 = vmatprep.subr.mxu0 0.0
  %3088 = vmatpush1.xpose.msra.mxu0 0.0
  %3089 = vmatprep.subr.mxu0 0.0
  %3090 = vmatpush1.xpose.msra.mxu0 0.0
  %3091 = vmatprep.mubr.f32.mxu0 0.0
  %3092 = vmatmul.mubr.f32.gmra.mrb[0].mxu0 %v3019
  %v3093 = vpop.f32.mrb[0].mxu0
  %v3094 = vadd.f32 %v2595, %v3093
  %v3095 = vpop.f32.mrb[0].mxu0
  %3096 = vmatprep.mubr.f32.mxu0 0.0
  %3097 = vmatmul.mubr.f32.gmra.mrb[0].mxu0 %v3021
  %v3098 = vpop.f32.mrb[0].mxu0
  %v3099 = vadd.f32 %v2596, %v3098
  %v3100 = vpop.f32.mrb[0].mxu0
  %3101 = vdwg.mxu0
  %v3102 = vsel %vm454, %v3094, -inf
  %3103 = vmax.xlane.f32.xlu0 %v3102
  %v3104 = vpop.xlane.xlu0 %3103
  %v3105 = vsel %vm458, %v3099, -inf
  %3106 = vmax.xlane.f32.xlu0 %v3105
  %v3107 = vpop.xlane.xlu0 %3106
  %v3108 = vsub.f32 %v3094, %v3104
  %v3109 = vsub.f32 %v3099, %v3107
  %v3110 = vmul.f32 %v3108, 1.442695
  %v3111 = vpow.pop %v3110
  %v3112 = vmul.f32 %v3109, 1.442695
  %v3113 = vpow.pop %v3112
  %v3114 = vsel %vm454, %v3111, 0.0
  %3115 = vadd.xlane.f32.xlu0 %v3114
  %v3116 = vpop.xlane.xlu0 %3115
  %v3117 = vsel %vm458, %v3113, 0.0
  %3118 = vadd.xlane.f32.xlu0 %v3117
  %v3119 = vpop.xlane.xlu0 %3118
  %3120 = vrot.lane.b32.xlu0 %v2579, 48
  %v3121 = vpop.permute.xlu0 %3120
  %3122 = vrot.lane.b32.xlu0 %v2584, 48
  %v3123 = vpop.permute.xlu0 %3122
  %v3126 = vsel %vm454, %v3111, 0
  %v3129 = vsel %vm454, %v3113, 0
  %v3131 = vsel %vm485, %v3123, 0
  %3133 = vmatprep.subr.mxu0 0.0
  %3134 = vmatpush1.msra.mxu0 %v3121
  %3135 = vmatprep.subr.mxu0 0.0
  %3136 = vmatpush1.msra.mxu0 %v3131
  %3137 = vmatprep.subr.mxu0 0.0
  %3138 = vmatpush1.msra.mxu0 0.0
  %3139 = vmatprep.subr.mxu0 0.0
  %3140 = vmatpush1.msra.mxu0 0.0
  %3141 = vmatprep.subr.mxu0 0.0
  %3142 = vmatpush1.msra.mxu0 0.0
  %3143 = vmatprep.subr.mxu0 0.0
  %3144 = vmatpush1.msra.mxu0 0.0
  %3145 = vmatprep.subr.mxu0 0.0
  %3146 = vmatpush1.msra.mxu0 0.0
  %3147 = vmatprep.subr.mxu0 0.0
  %3148 = vmatpush1.msra.mxu0 0.0
  %3149 = vmatprep.subr.mxu0 0.0
  %3150 = vmatpush1.msra.mxu0 0.0
  %3151 = vmatprep.subr.mxu0 0.0
  %3152 = vmatpush1.msra.mxu0 0.0
  %3153 = vmatprep.subr.mxu0 0.0
  %3154 = vmatpush1.msra.mxu0 0.0
  %3155 = vmatprep.subr.mxu0 0.0
  %3156 = vmatpush1.msra.mxu0 0.0
  %3157 = vmatprep.subr.mxu0 0.0
  %3158 = vmatpush1.msra.mxu0 0.0
  %3159 = vmatprep.subr.mxu0 0.0
  %3160 = vmatpush1.msra.mxu0 0.0
  %3161 = vmatprep.subr.mxu0 0.0
  %3162 = vmatpush1.msra.mxu0 0.0
  %3163 = vmatprep.subr.mxu0 0.0
  %3164 = vmatpush1.msra.mxu0 0.0
  %3165 = vmatprep.subr.mxu0 0.0
  %3166 = vmatpush1.msra.mxu0 0.0
  %3167 = vmatprep.subr.mxu0 0.0
  %3168 = vmatpush1.msra.mxu0 0.0
  %3169 = vmatprep.subr.mxu0 0.0
  %3170 = vmatpush1.msra.mxu0 0.0
  %3171 = vmatprep.subr.mxu0 0.0
  %3172 = vmatpush1.msra.mxu0 0.0
  %3173 = vmatprep.subr.mxu0 0.0
  %3174 = vmatpush1.msra.mxu0 0.0
  %3175 = vmatprep.subr.mxu0 0.0
  %3176 = vmatpush1.msra.mxu0 0.0
  %3177 = vmatprep.subr.mxu0 0.0
  %3178 = vmatpush1.msra.mxu0 0.0
  %3179 = vmatprep.subr.mxu0 0.0
  %3180 = vmatpush1.msra.mxu0 0.0
  %3181 = vmatprep.subr.mxu0 0.0
  %3182 = vmatpush1.msra.mxu0 0.0
  %3183 = vmatprep.subr.mxu0 0.0
  %3184 = vmatpush1.msra.mxu0 0.0
  %3185 = vmatprep.subr.mxu0 0.0
  %3186 = vmatpush1.msra.mxu0 0.0
  %3187 = vmatprep.subr.mxu0 0.0
  %3188 = vmatpush1.msra.mxu0 0.0
  %3189 = vmatprep.subr.mxu0 0.0
  %3190 = vmatpush1.msra.mxu0 0.0
  %3191 = vmatprep.subr.mxu0 0.0
  %3192 = vmatpush1.msra.mxu0 0.0
  %3193 = vmatprep.subr.mxu0 0.0
  %3194 = vmatpush1.msra.mxu0 0.0
  %3195 = vmatprep.subr.mxu0 0.0
  %3196 = vmatpush1.msra.mxu0 0.0
  %3197 = vmatprep.mubr.f32.mxu0 0.0
  %3198 = vmatmul.mubr.f32.gmra.mrb[0].mxu0 %v3126
  %v3199 = vpop.f32.mrb[0].mxu0
  %v3200 = vadd.f32 0.0, %v3199
  %v3201 = vpop.f32.mrb[0].mxu0
  %3202 = vmatprep.mubr.f32.mxu0 0.0
  %3203 = vmatmul.mubr.f32.gmra.mrb[0].mxu0 %v3129
  %v3204 = vpop.f32.mrb[0].mxu0
  %v3205 = vadd.f32 0.0, %v3204
  %v3206 = vpop.f32.mrb[0].mxu0
  %3207 = vdwg.mxu0
  %v3208 = vrcp.pop %v3116
  %v3209 = vrcp.pop %v3119
  %v3210 = vmul.f32 %v3200, %v3208
  %v3211 = vmul.f32 %v3205, %v3209
  %3214 = vrot.lane.b32.xlu0 %v3210, 16
  %v3215 = vpop.permute.xlu0 %3214
  %3216 = vrot.lane.b32.xlu0 %v3211, 16
  %v3217 = vpop.permute.xlu0 %3216
  %3220 = vst.msk [vmem:[#allocation2] sm:$0xff] %vm992, %v3215
  %3221 = vst.msk [vmem:[#allocation2 + $0x8] sm:$0x1] %vm994, %v3217
  %3222 = vrot.lane.b32.xlu0 %v2592, 104
  %v3223 = vpop.permute.xlu0 %3222
  %3224 = vrot.lane.b32.xlu0 %v2593, 104
  %v3225 = vpop.permute.xlu0 %3224
  %3226 = vrot.lane.b32.xlu0 %v2579, 72
  %v3227 = vpop.permute.xlu0 %3226
  %3228 = vrot.lane.b32.xlu0 %v2584, 72
  %v3229 = vpop.permute.xlu0 %3228
  %v3230 = vsel %vm368, %v3223, 0
  %v3232 = vsel %vm368, %v3225, 0
  %v3234 = vsel %vm368, %v3227, 0
  %v3236 = vsel %vm368, %v3229, 0
  %3238 = vmatprep.subr.mxu0 0.0
  %3239 = vmatpush1.xpose.msra.mxu0 %v3234
  %3240 = vmatprep.subr.mxu0 0.0
  %3241 = vmatpush1.xpose.msra.mxu0 %v3236
  %3242 = vmatprep.subr.mxu0 0.0
  %3243 = vmatpush1.xpose.msra.mxu0 0.0
  %3244 = vmatprep.subr.mxu0 0.0
  %3245 = vmatpush1.xpose.msra.mxu0 0.0
  %3246 = vmatprep.subr.mxu0 0.0
  %3247 = vmatpush1.xpose.msra.mxu0 0.0
  %3248 = vmatprep.subr.mxu0 0.0
  %3249 = vmatpush1.xpose.msra.mxu0 0.0
  %3250 = vmatprep.subr.mxu0 0.0
  %3251 = vmatpush1.xpose.msra.mxu0 0.0
  %3252 = vmatprep.subr.mxu0 0.0
  %3253 = vmatpush1.xpose.msra.mxu0 0.0
  %3254 = vmatprep.subr.mxu0 0.0
  %3255 = vmatpush1.xpose.msra.mxu0 0.0
  %3256 = vmatprep.subr.mxu0 0.0
  %3257 = vmatpush1.xpose.msra.mxu0 0.0
  %3258 = vmatprep.subr.mxu0 0.0
  %3259 = vmatpush1.xpose.msra.mxu0 0.0
  %3260 = vmatprep.subr.mxu0 0.0
  %3261 = vmatpush1.xpose.msra.mxu0 0.0
  %3262 = vmatprep.subr.mxu0 0.0
  %3263 = vmatpush1.xpose.msra.mxu0 0.0
  %3264 = vmatprep.subr.mxu0 0.0
  %3265 = vmatpush1.xpose.msra.mxu0 0.0
  %3266 = vmatprep.subr.mxu0 0.0
  %3267 = vmatpush1.xpose.msra.mxu0 0.0
  %3268 = vmatprep.subr.mxu0 0.0
  %3269 = vmatpush1.xpose.msra.mxu0 0.0
  %3270 = vmatprep.subr.mxu0 0.0
  %3271 = vmatpush1.xpose.msra.mxu0 0.0
  %3272 = vmatprep.subr.mxu0 0.0
  %3273 = vmatpush1.xpose.msra.mxu0 0.0
  %3274 = vmatprep.subr.mxu0 0.0
  %3275 = vmatpush1.xpose.msra.mxu0 0.0
  %3276 = vmatprep.subr.mxu0 0.0
  %3277 = vmatpush1.xpose.msra.mxu0 0.0
  %3278 = vmatprep.subr.mxu0 0.0
  %3279 = vmatpush1.xpose.msra.mxu0 0.0
  %3280 = vmatprep.subr.mxu0 0.0
  %3281 = vmatpush1.xpose.msra.mxu0 0.0
  %3282 = vmatprep.subr.mxu0 0.0
  %3283 = vmatpush1.xpose.msra.mxu0 0.0
  %3284 = vmatprep.subr.mxu0 0.0
  %3285 = vmatpush1.xpose.msra.mxu0 0.0
  %3286 = vmatprep.subr.mxu0 0.0
  %3287 = vmatpush1.xpose.msra.mxu0 0.0
  %3288 = vmatprep.subr.mxu0 0.0
  %3289 = vmatpush1.xpose.msra.mxu0 0.0
  %3290 = vmatprep.subr.mxu0 0.0
  %3291 = vmatpush1.xpose.msra.mxu0 0.0
  %3292 = vmatprep.subr.mxu0 0.0
  %3293 = vmatpush1.xpose.msra.mxu0 0.0
  %3294 = vmatprep.subr.mxu0 0.0
  %3295 = vmatpush1.xpose.msra.mxu0 0.0
  %3296 = vmatprep.subr.mxu0 0.0
  %3297 = vmatpush1.xpose.msra.mxu0 0.0
  %3298 = vmatprep.subr.mxu0 0.0
  %3299 = vmatpush1.xpose.msra.mxu0 0.0
  %3300 = vmatprep.subr.mxu0 0.0
  %3301 = vmatpush1.xpose.msra.mxu0 0.0
  %3302 = vmatprep.mubr.f32.mxu0 0.0
  %3303 = vmatmul.mubr.f32.gmra.mrb[0].mxu0 %v3230
  %v3304 = vpop.f32.mrb[0].mxu0
  %v3305 = vadd.f32 %v2595, %v3304
  %v3306 = vpop.f32.mrb[0].mxu0
  %3307 = vmatprep.mubr.f32.mxu0 0.0
  %3308 = vmatmul.mubr.f32.gmra.mrb[0].mxu0 %v3232
  %v3309 = vpop.f32.mrb[0].mxu0
  %v3310 = vadd.f32 %v2596, %v3309
  %v3311 = vpop.f32.mrb[0].mxu0
  %3312 = vdwg.mxu0
  %v3313 = vsel %vm454, %v3305, -inf
  %3314 = vmax.xlane.f32.xlu0 %v3313
  %v3315 = vpop.xlane.xlu0 %3314
  %v3316 = vsel %vm458, %v3310, -inf
  %3317 = vmax.xlane.f32.xlu0 %v3316
  %v3318 = vpop.xlane.xlu0 %3317
  %v3319 = vsub.f32 %v3305, %v3315
  %v3320 = vsub.f32 %v3310, %v3318
  %v3321 = vmul.f32 %v3319, 1.442695
  %v3322 = vpow.pop %v3321
  %v3323 = vmul.f32 %v3320, 1.442695
  %v3324 = vpow.pop %v3323
  %v3325 = vsel %vm454, %v3322, 0.0
  %3326 = vadd.xlane.f32.xlu0 %v3325
  %v3327 = vpop.xlane.xlu0 %3326
  %v3328 = vsel %vm458, %v3324, 0.0
  %3329 = vadd.xlane.f32.xlu0 %v3328
  %v3330 = vpop.xlane.xlu0 %3329
  %3331 = vrot.lane.b32.xlu0 %v2579, 40
  %v3332 = vpop.permute.xlu0 %3331
  %3333 = vrot.lane.b32.xlu0 %v2584, 40
  %v3334 = vpop.permute.xlu0 %3333
  %v3337 = vsel %vm454, %v3322, 0
  %v3340 = vsel %vm454, %v3324, 0
  %v3342 = vsel %vm485, %v3334, 0
  %3344 = vmatprep.subr.mxu0 0.0
  %3345 = vmatpush1.msra.mxu0 %v3332
  %3346 = vmatprep.subr.mxu0 0.0
  %3347 = vmatpush1.msra.mxu0 %v3342
  %3348 = vmatprep.subr.mxu0 0.0
  %3349 = vmatpush1.msra.mxu0 0.0
  %3350 = vmatprep.subr.mxu0 0.0
  %3351 = vmatpush1.msra.mxu0 0.0
  %3352 = vmatprep.subr.mxu0 0.0
  %3353 = vmatpush1.msra.mxu0 0.0
  %3354 = vmatprep.subr.mxu0 0.0
  %3355 = vmatpush1.msra.mxu0 0.0
  %3356 = vmatprep.subr.mxu0 0.0
  %3357 = vmatpush1.msra.mxu0 0.0
  %3358 = vmatprep.subr.mxu0 0.0
  %3359 = vmatpush1.msra.mxu0 0.0
  %3360 = vmatprep.subr.mxu0 0.0
  %3361 = vmatpush1.msra.mxu0 0.0
  %3362 = vmatprep.subr.mxu0 0.0
  %3363 = vmatpush1.msra.mxu0 0.0
  %3364 = vmatprep.subr.mxu0 0.0
  %3365 = vmatpush1.msra.mxu0 0.0
  %3366 = vmatprep.subr.mxu0 0.0
  %3367 = vmatpush1.msra.mxu0 0.0
  %3368 = vmatprep.subr.mxu0 0.0
  %3369 = vmatpush1.msra.mxu0 0.0
  %3370 = vmatprep.subr.mxu0 0.0
  %3371 = vmatpush1.msra.mxu0 0.0
  %3372 = vmatprep.subr.mxu0 0.0
  %3373 = vmatpush1.msra.mxu0 0.0
  %3374 = vmatprep.subr.mxu0 0.0
  %3375 = vmatpush1.msra.mxu0 0.0
  %3376 = vmatprep.subr.mxu0 0.0
  %3377 = vmatpush1.msra.mxu0 0.0
  %3378 = vmatprep.subr.mxu0 0.0
  %3379 = vmatpush1.msra.mxu0 0.0
  %3380 = vmatprep.subr.mxu0 0.0
  %3381 = vmatpush1.msra.mxu0 0.0
  %3382 = vmatprep.subr.mxu0 0.0
  %3383 = vmatpush1.msra.mxu0 0.0
  %3384 = vmatprep.subr.mxu0 0.0
  %3385 = vmatpush1.msra.mxu0 0.0
  %3386 = vmatprep.subr.mxu0 0.0
  %3387 = vmatpush1.msra.mxu0 0.0
  %3388 = vmatprep.subr.mxu0 0.0
  %3389 = vmatpush1.msra.mxu0 0.0
  %3390 = vmatprep.subr.mxu0 0.0
  %3391 = vmatpush1.msra.mxu0 0.0
  %3392 = vmatprep.subr.mxu0 0.0
  %3393 = vmatpush1.msra.mxu0 0.0
  %3394 = vmatprep.subr.mxu0 0.0
  %3395 = vmatpush1.msra.mxu0 0.0
  %3396 = vmatprep.subr.mxu0 0.0
  %3397 = vmatpush1.msra.mxu0 0.0
  %3398 = vmatprep.subr.mxu0 0.0
  %3399 = vmatpush1.msra.mxu0 0.0
  %3400 = vmatprep.subr.mxu0 0.0
  %3401 = vmatpush1.msra.mxu0 0.0
  %3402 = vmatprep.subr.mxu0 0.0
  %3403 = vmatpush1.msra.mxu0 0.0
  %3404 = vmatprep.subr.mxu0 0.0
  %3405 = vmatpush1.msra.mxu0 0.0
  %3406 = vmatprep.subr.mxu0 0.0
  %3407 = vmatpush1.msra.mxu0 0.0
  %3408 = vmatprep.mubr.f32.mxu0 0.0
  %3409 = vmatmul.mubr.f32.gmra.mrb[0].mxu0 %v3337
  %v3410 = vpop.f32.mrb[0].mxu0
  %v3411 = vadd.f32 0.0, %v3410
  %v3412 = vpop.f32.mrb[0].mxu0
  %3413 = vmatprep.mubr.f32.mxu0 0.0
  %3414 = vmatmul.mubr.f32.gmra.mrb[0].mxu0 %v3340
  %v3415 = vpop.f32.mrb[0].mxu0
  %v3416 = vadd.f32 0.0, %v3415
  %v3417 = vpop.f32.mrb[0].mxu0
  %3418 = vdwg.mxu0
  %v3419 = vrcp.pop %v3327
  %v3420 = vrcp.pop %v3330
  %v3421 = vmul.f32 %v3411, %v3419
  %v3422 = vmul.f32 %v3416, %v3420
  %3425 = vrot.lane.b32.xlu0 %v3421, 24
  %v3426 = vpop.permute.xlu0 %3425
  %3427 = vrot.lane.b32.xlu0 %v3422, 24
  %v3428 = vpop.permute.xlu0 %3427
  %3431 = vst.msk [vmem:[#allocation2] sm:$0xff] %vm1205, %v3426
  %3432 = vst.msk [vmem:[#allocation2 + $0x8] sm:$0x1] %vm1207, %v3428
  %v3433 = vld [vmem:[%s1209] sm:$0xff]
  %v3434 = vld [vmem:[%s1209 + $0x8] sm:$0x1]
  %v3436 = vrot.slane %v2593, 1
  %v3437 = vrot.slane %v2594, 1
  %v3438 = vsel %vm1213, %v3436, %v3437
  %v3440 = vrot.slane %v2584, 1
  %v3441 = vrot.slane %v2589, 1
  %v3442 = vsel %vm1213, %v3440, %v3441
  %3443 = vrot.lane.b32.xlu0 %v3442, 96
  %v3444 = vpop.permute.xlu0 %3443
  %3445 = vrot.lane.b32.xlu0 %v3441, 96
  %v3446 = vpop.permute.xlu0 %3445
  %v3447 = vsel %vm368, %v3438, 0
  %v3449 = vsel %vm368, %v3437, 0
  %v3451 = vsel %vm368, %v3444, 0
  %v3453 = vsel %vm368, %v3446, 0
  %3455 = vmatprep.subr.mxu0 0.0
  %3456 = vmatpush1.xpose.msra.mxu0 %v3451
  %3457 = vmatprep.subr.mxu0 0.0
  %3458 = vmatpush1.xpose.msra.mxu0 %v3453
  %3459 = vmatprep.subr.mxu0 0.0
  %3460 = vmatpush1.xpose.msra.mxu0 0.0
  %3461 = vmatprep.subr.mxu0 0.0
  %3462 = vmatpush1.xpose.msra.mxu0 0.0
  %3463 = vmatprep.subr.mxu0 0.0
  %3464 = vmatpush1.xpose.msra.mxu0 0.0
  %3465 = vmatprep.subr.mxu0 0.0
  %3466 = vmatpush1.xpose.msra.mxu0 0.0
  %3467 = vmatprep.subr.mxu0 0.0
  %3468 = vmatpush1.xpose.msra.mxu0 0.0
  %3469 = vmatprep.subr.mxu0 0.0
  %3470 = vmatpush1.xpose.msra.mxu0 0.0
  %3471 = vmatprep.subr.mxu0 0.0
  %3472 = vmatpush1.xpose.msra.mxu0 0.0
  %3473 = vmatprep.subr.mxu0 0.0
  %3474 = vmatpush1.xpose.msra.mxu0 0.0
  %3475 = vmatprep.subr.mxu0 0.0
  %3476 = vmatpush1.xpose.msra.mxu0 0.0
  %3477 = vmatprep.subr.mxu0 0.0
  %3478 = vmatpush1.xpose.msra.mxu0 0.0
  %3479 = vmatprep.subr.mxu0 0.0
  %3480 = vmatpush1.xpose.msra.mxu0 0.0
  %3481 = vmatprep.subr.mxu0 0.0
  %3482 = vmatpush1.xpose.msra.mxu0 0.0
  %3483 = vmatprep.subr.mxu0 0.0
  %3484 = vmatpush1.xpose.msra.mxu0 0.0
  %3485 = vmatprep.subr.mxu0 0.0
  %3486 = vmatpush1.xpose.msra.mxu0 0.0
  %3487 = vmatprep.subr.mxu0 0.0
  %3488 = vmatpush1.xpose.msra.mxu0 0.0
  %3489 = vmatprep.subr.mxu0 0.0
  %3490 = vmatpush1.xpose.msra.mxu0 0.0
  %3491 = vmatprep.subr.mxu0 0.0
  %3492 = vmatpush1.xpose.msra.mxu0 0.0
  %3493 = vmatprep.subr.mxu0 0.0
  %3494 = vmatpush1.xpose.msra.mxu0 0.0
  %3495 = vmatprep.subr.mxu0 0.0
  %3496 = vmatpush1.xpose.msra.mxu0 0.0
  %3497 = vmatprep.subr.mxu0 0.0
  %3498 = vmatpush1.xpose.msra.mxu0 0.0
  %3499 = vmatprep.subr.mxu0 0.0
  %3500 = vmatpush1.xpose.msra.mxu0 0.0
  %3501 = vmatprep.subr.mxu0 0.0
  %3502 = vmatpush1.xpose.msra.mxu0 0.0
  %3503 = vmatprep.subr.mxu0 0.0
  %3504 = vmatpush1.xpose.msra.mxu0 0.0
  %3505 = vmatprep.subr.mxu0 0.0
  %3506 = vmatpush1.xpose.msra.mxu0 0.0
  %3507 = vmatprep.subr.mxu0 0.0
  %3508 = vmatpush1.xpose.msra.mxu0 0.0
  %3509 = vmatprep.subr.mxu0 0.0
  %3510 = vmatpush1.xpose.msra.mxu0 0.0
  %3511 = vmatprep.subr.mxu0 0.0
  %3512 = vmatpush1.xpose.msra.mxu0 0.0
  %3513 = vmatprep.subr.mxu0 0.0
  %3514 = vmatpush1.xpose.msra.mxu0 0.0
  %3515 = vmatprep.subr.mxu0 0.0
  %3516 = vmatpush1.xpose.msra.mxu0 0.0
  %3517 = vmatprep.subr.mxu0 0.0
  %3518 = vmatpush1.xpose.msra.mxu0 0.0
  %3519 = vmatprep.mubr.f32.mxu0 0.0
  %3520 = vmatmul.mubr.f32.gmra.mrb[0].mxu0 %v3447
  %v3521 = vpop.f32.mrb[0].mxu0
  %v3522 = vadd.f32 %v3433, %v3521
  %v3523 = vpop.f32.mrb[0].mxu0
  %3524 = vmatprep.mubr.f32.mxu0 0.0
  %3525 = vmatmul.mubr.f32.gmra.mrb[0].mxu0 %v3449
  %v3526 = vpop.f32.mrb[0].mxu0
  %v3527 = vadd.f32 %v3434, %v3526
  %v3528 = vpop.f32.mrb[0].mxu0
  %3529 = vdwg.mxu0
  %v3530 = vsel %vm454, %v3522, -inf
  %3531 = vmax.xlane.f32.xlu0 %v3530
  %v3532 = vpop.xlane.xlu0 %3531
  %v3533 = vsel %vm458, %v3527, -inf
  %3534 = vmax.xlane.f32.xlu0 %v3533
  %v3535 = vpop.xlane.xlu0 %3534
  %v3536 = vsub.f32 %v3522, %v3532
  %v3537 = vsub.f32 %v3527, %v3535
  %v3538 = vmul.f32 %v3536, 1.442695
  %v3539 = vpow.pop %v3538
  %v3540 = vmul.f32 %v3537, 1.442695
  %v3541 = vpow.pop %v3540
  %v3542 = vsel %vm454, %v3539, 0.0
  %3543 = vadd.xlane.f32.xlu0 %v3542
  %v3544 = vpop.xlane.xlu0 %3543
  %v3545 = vsel %vm458, %v3541, 0.0
  %3546 = vadd.xlane.f32.xlu0 %v3545
  %v3547 = vpop.xlane.xlu0 %3546
  %3548 = vrot.lane.b32.xlu0 %v3442, 64
  %v3549 = vpop.permute.xlu0 %3548
  %3550 = vrot.lane.b32.xlu0 %v3441, 64
  %v3551 = vpop.permute.xlu0 %3550
  %v3554 = vsel %vm454, %v3539, 0
  %v3557 = vsel %vm454, %v3541, 0
  %v3559 = vsel %vm485, %v3551, 0
  %3561 = vmatprep.subr.mxu0 0.0
  %3562 = vmatpush1.msra.mxu0 %v3549
  %3563 = vmatprep.subr.mxu0 0.0
  %3564 = vmatpush1.msra.mxu0 %v3559
  %3565 = vmatprep.subr.mxu0 0.0
  %3566 = vmatpush1.msra.mxu0 0.0
  %3567 = vmatprep.subr.mxu0 0.0
  %3568 = vmatpush1.msra.mxu0 0.0
  %3569 = vmatprep.subr.mxu0 0.0
  %3570 = vmatpush1.msra.mxu0 0.0
  %3571 = vmatprep.subr.mxu0 0.0
  %3572 = vmatpush1.msra.mxu0 0.0
  %3573 = vmatprep.subr.mxu0 0.0
  %3574 = vmatpush1.msra.mxu0 0.0
  %3575 = vmatprep.subr.mxu0 0.0
  %3576 = vmatpush1.msra.mxu0 0.0
  %3577 = vmatprep.subr.mxu0 0.0
  %3578 = vmatpush1.msra.mxu0 0.0
  %3579 = vmatprep.subr.mxu0 0.0
  %3580 = vmatpush1.msra.mxu0 0.0
  %3581 = vmatprep.subr.mxu0 0.0
  %3582 = vmatpush1.msra.mxu0 0.0
  %3583 = vmatprep.subr.mxu0 0.0
  %3584 = vmatpush1.msra.mxu0 0.0
  %3585 = vmatprep.subr.mxu0 0.0
  %3586 = vmatpush1.msra.mxu0 0.0
  %3587 = vmatprep.subr.mxu0 0.0
  %3588 = vmatpush1.msra.mxu0 0.0
  %3589 = vmatprep.subr.mxu0 0.0
  %3590 = vmatpush1.msra.mxu0 0.0
  %3591 = vmatprep.subr.mxu0 0.0
  %3592 = vmatpush1.msra.mxu0 0.0
  %3593 = vmatprep.subr.mxu0 0.0
  %3594 = vmatpush1.msra.mxu0 0.0
  %3595 = vmatprep.subr.mxu0 0.0
  %3596 = vmatpush1.msra.mxu0 0.0
  %3597 = vmatprep.subr.mxu0 0.0
  %3598 = vmatpush1.msra.mxu0 0.0
  %3599 = vmatprep.subr.mxu0 0.0
  %3600 = vmatpush1.msra.mxu0 0.0
  %3601 = vmatprep.subr.mxu0 0.0
  %3602 = vmatpush1.msra.mxu0 0.0
  %3603 = vmatprep.subr.mxu0 0.0
  %3604 = vmatpush1.msra.mxu0 0.0
  %3605 = vmatprep.subr.mxu0 0.0
  %3606 = vmatpush1.msra.mxu0 0.0
  %3607 = vmatprep.subr.mxu0 0.0
  %3608 = vmatpush1.msra.mxu0 0.0
  %3609 = vmatprep.subr.mxu0 0.0
  %3610 = vmatpush1.msra.mxu0 0.0
  %3611 = vmatprep.subr.mxu0 0.0
  %3612 = vmatpush1.msra.mxu0 0.0
  %3613 = vmatprep.subr.mxu0 0.0
  %3614 = vmatpush1.msra.mxu0 0.0
  %3615 = vmatprep.subr.mxu0 0.0
  %3616 = vmatpush1.msra.mxu0 0.0
  %3617 = vmatprep.subr.mxu0 0.0
  %3618 = vmatpush1.msra.mxu0 0.0
  %3619 = vmatprep.subr.mxu0 0.0
  %3620 = vmatpush1.msra.mxu0 0.0
  %3621 = vmatprep.subr.mxu0 0.0
  %3622 = vmatpush1.msra.mxu0 0.0
  %3623 = vmatprep.subr.mxu0 0.0
  %3624 = vmatpush1.msra.mxu0 0.0
  %3625 = vmatprep.mubr.f32.mxu0 0.0
  %3626 = vmatmul.mubr.f32.gmra.mrb[0].mxu0 %v3554
  %v3627 = vpop.f32.mrb[0].mxu0
  %v3628 = vadd.f32 0.0, %v3627
  %v3629 = vpop.f32.mrb[0].mxu0
  %3630 = vmatprep.mubr.f32.mxu0 0.0
  %3631 = vmatmul.mubr.f32.gmra.mrb[0].mxu0 %v3557
  %v3632 = vpop.f32.mrb[0].mxu0
  %v3633 = vadd.f32 0.0, %v3632
  %v3634 = vpop.f32.mrb[0].mxu0
  %3635 = vdwg.mxu0
  %v3636 = vrcp.pop %v3544
  %v3637 = vrcp.pop %v3547
  %v3638 = vmul.f32 %v3628, %v3636
  %v3639 = vmul.f32 %v3633, %v3637
  %3640 = vst.msk [vmem:[#allocation2 + $0x9] sm:$0xff] %vm368, %v3638
  %3641 = vst.msk [vmem:[#allocation2 + $0x11] sm:$0x1] %vm568, %v3639
  %3642 = vrot.lane.b32.xlu0 %v3438, 120
  %v3643 = vpop.permute.xlu0 %3642
  %3644 = vrot.lane.b32.xlu0 %v3437, 120
  %v3645 = vpop.permute.xlu0 %3644
  %3646 = vrot.lane.b32.xlu0 %v3442, 88
  %v3647 = vpop.permute.xlu0 %3646
  %3648 = vrot.lane.b32.xlu0 %v3441, 88
  %v3649 = vpop.permute.xlu0 %3648
  %v3650 = vsel %vm368, %v3643, 0
  %v3652 = vsel %vm368, %v3645, 0
  %v3654 = vsel %vm368, %v3647, 0
  %v3656 = vsel %vm368, %v3649, 0
  %3658 = vmatprep.subr.mxu0 0.0
  %3659 = vmatpush1.xpose.msra.mxu0 %v3654
  %3660 = vmatprep.subr.mxu0 0.0
  %3661 = vmatpush1.xpose.msra.mxu0 %v3656
  %3662 = vmatprep.subr.mxu0 0.0
  %3663 = vmatpush1.xpose.msra.mxu0 0.0
  %3664 = vmatprep.subr.mxu0 0.0
  %3665 = vmatpush1.xpose.msra.mxu0 0.0
  %3666 = vmatprep.subr.mxu0 0.0
  %3667 = vmatpush1.xpose.msra.mxu0 0.0
  %3668 = vmatprep.subr.mxu0 0.0
  %3669 = vmatpush1.xpose.msra.mxu0 0.0
  %3670 = vmatprep.subr.mxu0 0.0
  %3671 = vmatpush1.xpose.msra.mxu0 0.0
  %3672 = vmatprep.subr.mxu0 0.0
  %3673 = vmatpush1.xpose.msra.mxu0 0.0
  %3674 = vmatprep.subr.mxu0 0.0
  %3675 = vmatpush1.xpose.msra.mxu0 0.0
  %3676 = vmatprep.subr.mxu0 0.0
  %3677 = vmatpush1.xpose.msra.mxu0 0.0
  %3678 = vmatprep.subr.mxu0 0.0
  %3679 = vmatpush1.xpose.msra.mxu0 0.0
  %3680 = vmatprep.subr.mxu0 0.0
  %3681 = vmatpush1.xpose.msra.mxu0 0.0
  %3682 = vmatprep.subr.mxu0 0.0
  %3683 = vmatpush1.xpose.msra.mxu0 0.0
  %3684 = vmatprep.subr.mxu0 0.0
  %3685 = vmatpush1.xpose.msra.mxu0 0.0
  %3686 = vmatprep.subr.mxu0 0.0
  %3687 = vmatpush1.xpose.msra.mxu0 0.0
  %3688 = vmatprep.subr.mxu0 0.0
  %3689 = vmatpush1.xpose.msra.mxu0 0.0
  %3690 = vmatprep.subr.mxu0 0.0
  %3691 = vmatpush1.xpose.msra.mxu0 0.0
  %3692 = vmatprep.subr.mxu0 0.0
  %3693 = vmatpush1.xpose.msra.mxu0 0.0
  %3694 = vmatprep.subr.mxu0 0.0
  %3695 = vmatpush1.xpose.msra.mxu0 0.0
  %3696 = vmatprep.subr.mxu0 0.0
  %3697 = vmatpush1.xpose.msra.mxu0 0.0
  %3698 = vmatprep.subr.mxu0 0.0
  %3699 = vmatpush1.xpose.msra.mxu0 0.0
  %3700 = vmatprep.subr.mxu0 0.0
  %3701 = vmatpush1.xpose.msra.mxu0 0.0
  %3702 = vmatprep.subr.mxu0 0.0
  %3703 = vmatpush1.xpose.msra.mxu0 0.0
  %3704 = vmatprep.subr.mxu0 0.0
  %3705 = vmatpush1.xpose.msra.mxu0 0.0
  %3706 = vmatprep.subr.mxu0 0.0
  %3707 = vmatpush1.xpose.msra.mxu0 0.0
  %3708 = vmatprep.subr.mxu0 0.0
  %3709 = vmatpush1.xpose.msra.mxu0 0.0
  %3710 = vmatprep.subr.mxu0 0.0
  %3711 = vmatpush1.xpose.msra.mxu0 0.0
  %3712 = vmatprep.subr.mxu0 0.0
  %3713 = vmatpush1.xpose.msra.mxu0 0.0
  %3714 = vmatprep.subr.mxu0 0.0
  %3715 = vmatpush1.xpose.msra.mxu0 0.0
  %3716 = vmatprep.subr.mxu0 0.0
  %3717 = vmatpush1.xpose.msra.mxu0 0.0
  %3718 = vmatprep.subr.mxu0 0.0
  %3719 = vmatpush1.xpose.msra.mxu0 0.0
  %3720 = vmatprep.subr.mxu0 0.0
  %3721 = vmatpush1.xpose.msra.mxu0 0.0
  %3722 = vmatprep.mubr.f32.mxu0 0.0
  %3723 = vmatmul.mubr.f32.gmra.mrb[0].mxu0 %v3650
  %v3724 = vpop.f32.mrb[0].mxu0
  %v3725 = vadd.f32 %v3433, %v3724
  %v3726 = vpop.f32.mrb[0].mxu0
  %3727 = vmatprep.mubr.f32.mxu0 0.0
  %3728 = vmatmul.mubr.f32.gmra.mrb[0].mxu0 %v3652
  %v3729 = vpop.f32.mrb[0].mxu0
  %v3730 = vadd.f32 %v3434, %v3729
  %v3731 = vpop.f32.mrb[0].mxu0
  %3732 = vdwg.mxu0
  %v3733 = vsel %vm454, %v3725, -inf
  %3734 = vmax.xlane.f32.xlu0 %v3733
  %v3735 = vpop.xlane.xlu0 %3734
  %v3736 = vsel %vm458, %v3730, -inf
  %3737 = vmax.xlane.f32.xlu0 %v3736
  %v3738 = vpop.xlane.xlu0 %3737
  %v3739 = vsub.f32 %v3725, %v3735
  %v3740 = vsub.f32 %v3730, %v3738
  %v3741 = vmul.f32 %v3739, 1.442695
  %v3742 = vpow.pop %v3741
  %v3743 = vmul.f32 %v3740, 1.442695
  %v3744 = vpow.pop %v3743
  %v3745 = vsel %vm454, %v3742, 0.0
  %3746 = vadd.xlane.f32.xlu0 %v3745
  %v3747 = vpop.xlane.xlu0 %3746
  %v3748 = vsel %vm458, %v3744, 0.0
  %3749 = vadd.xlane.f32.xlu0 %v3748
  %v3750 = vpop.xlane.xlu0 %3749
  %3751 = vrot.lane.b32.xlu0 %v3442, 56
  %v3752 = vpop.permute.xlu0 %3751
  %3753 = vrot.lane.b32.xlu0 %v3441, 56
  %v3754 = vpop.permute.xlu0 %3753
  %v3757 = vsel %vm454, %v3742, 0
  %v3760 = vsel %vm454, %v3744, 0
  %v3762 = vsel %vm485, %v3754, 0
  %3764 = vmatprep.subr.mxu0 0.0
  %3765 = vmatpush1.msra.mxu0 %v3752
  %3766 = vmatprep.subr.mxu0 0.0
  %3767 = vmatpush1.msra.mxu0 %v3762
  %3768 = vmatprep.subr.mxu0 0.0
  %3769 = vmatpush1.msra.mxu0 0.0
  %3770 = vmatprep.subr.mxu0 0.0
  %3771 = vmatpush1.msra.mxu0 0.0
  %3772 = vmatprep.subr.mxu0 0.0
  %3773 = vmatpush1.msra.mxu0 0.0
  %3774 = vmatprep.subr.mxu0 0.0
  %3775 = vmatpush1.msra.mxu0 0.0
  %3776 = vmatprep.subr.mxu0 0.0
  %3777 = vmatpush1.msra.mxu0 0.0
  %3778 = vmatprep.subr.mxu0 0.0
  %3779 = vmatpush1.msra.mxu0 0.0
  %3780 = vmatprep.subr.mxu0 0.0
  %3781 = vmatpush1.msra.mxu0 0.0
  %3782 = vmatprep.subr.mxu0 0.0
  %3783 = vmatpush1.msra.mxu0 0.0
  %3784 = vmatprep.subr.mxu0 0.0
  %3785 = vmatpush1.msra.mxu0 0.0
  %3786 = vmatprep.subr.mxu0 0.0
  %3787 = vmatpush1.msra.mxu0 0.0
  %3788 = vmatprep.subr.mxu0 0.0
  %3789 = vmatpush1.msra.mxu0 0.0
  %3790 = vmatprep.subr.mxu0 0.0
  %3791 = vmatpush1.msra.mxu0 0.0
  %3792 = vmatprep.subr.mxu0 0.0
  %3793 = vmatpush1.msra.mxu0 0.0
  %3794 = vmatprep.subr.mxu0 0.0
  %3795 = vmatpush1.msra.mxu0 0.0
  %3796 = vmatprep.subr.mxu0 0.0
  %3797 = vmatpush1.msra.mxu0 0.0
  %3798 = vmatprep.subr.mxu0 0.0
  %3799 = vmatpush1.msra.mxu0 0.0
  %3800 = vmatprep.subr.mxu0 0.0
  %3801 = vmatpush1.msra.mxu0 0.0
  %3802 = vmatprep.subr.mxu0 0.0
  %3803 = vmatpush1.msra.mxu0 0.0
  %3804 = vmatprep.subr.mxu0 0.0
  %3805 = vmatpush1.msra.mxu0 0.0
  %3806 = vmatprep.subr.mxu0 0.0
  %3807 = vmatpush1.msra.mxu0 0.0
  %3808 = vmatprep.subr.mxu0 0.0
  %3809 = vmatpush1.msra.mxu0 0.0
  %3810 = vmatprep.subr.mxu0 0.0
  %3811 = vmatpush1.msra.mxu0 0.0
  %3812 = vmatprep.subr.mxu0 0.0
  %3813 = vmatpush1.msra.mxu0 0.0
  %3814 = vmatprep.subr.mxu0 0.0
  %3815 = vmatpush1.msra.mxu0 0.0
  %3816 = vmatprep.subr.mxu0 0.0
  %3817 = vmatpush1.msra.mxu0 0.0
  %3818 = vmatprep.subr.mxu0 0.0
  %3819 = vmatpush1.msra.mxu0 0.0
  %3820 = vmatprep.subr.mxu0 0.0
  %3821 = vmatpush1.msra.mxu0 0.0
  %3822 = vmatprep.subr.mxu0 0.0
  %3823 = vmatpush1.msra.mxu0 0.0
  %3824 = vmatprep.subr.mxu0 0.0
  %3825 = vmatpush1.msra.mxu0 0.0
  %3826 = vmatprep.subr.mxu0 0.0
  %3827 = vmatpush1.msra.mxu0 0.0
  %3828 = vmatprep.mubr.f32.mxu0 0.0
  %3829 = vmatmul.mubr.f32.gmra.mrb[0].mxu0 %v3757
  %v3830 = vpop.f32.mrb[0].mxu0
  %v3831 = vadd.f32 0.0, %v3830
  %v3832 = vpop.f32.mrb[0].mxu0
  %3833 = vmatprep.mubr.f32.mxu0 0.0
  %3834 = vmatmul.mubr.f32.gmra.mrb[0].mxu0 %v3760
  %v3835 = vpop.f32.mrb[0].mxu0
  %v3836 = vadd.f32 0.0, %v3835
  %v3837 = vpop.f32.mrb[0].mxu0
  %3838 = vdwg.mxu0
  %v3839 = vrcp.pop %v3747
  %v3840 = vrcp.pop %v3750
  %v3841 = vmul.f32 %v3831, %v3839
  %v3842 = vmul.f32 %v3836, %v3840
  %3845 = vrot.lane.b32.xlu0 %v3841, 8
  %v3846 = vpop.permute.xlu0 %3845
  %3847 = vrot.lane.b32.xlu0 %v3842, 8
  %v3848 = vpop.permute.xlu0 %3847
  %3851 = vst.msk [vmem:[#allocation2 + $0x9] sm:$0xff] %vm779, %v3846
  %3852 = vst.msk [vmem:[#allocation2 + $0x11] sm:$0x1] %vm781, %v3848
  %3853 = vrot.lane.b32.xlu0 %v3438, 112
  %v3854 = vpop.permute.xlu0 %3853
  %3855 = vrot.lane.b32.xlu0 %v3437, 112
  %v3856 = vpop.permute.xlu0 %3855
  %3857 = vrot.lane.b32.xlu0 %v3442, 80
  %v3858 = vpop.permute.xlu0 %3857
  %3859 = vrot.lane.b32.xlu0 %v3441, 80
  %v3860 = vpop.permute.xlu0 %3859
  %v3861 = vsel %vm368, %v3854, 0
  %v3863 = vsel %vm368, %v3856, 0
  %v3865 = vsel %vm368, %v3858, 0
  %v3867 = vsel %vm368, %v3860, 0
  %3869 = vmatprep.subr.mxu0 0.0
  %3870 = vmatpush1.xpose.msra.mxu0 %v3865
  %3871 = vmatprep.subr.mxu0 0.0
  %3872 = vmatpush1.xpose.msra.mxu0 %v3867
  %3873 = vmatprep.subr.mxu0 0.0
  %3874 = vmatpush1.xpose.msra.mxu0 0.0
  %3875 = vmatprep.subr.mxu0 0.0
  %3876 = vmatpush1.xpose.msra.mxu0 0.0
  %3877 = vmatprep.subr.mxu0 0.0
  %3878 = vmatpush1.xpose.msra.mxu0 0.0
  %3879 = vmatprep.subr.mxu0 0.0
  %3880 = vmatpush1.xpose.msra.mxu0 0.0
  %3881 = vmatprep.subr.mxu0 0.0
  %3882 = vmatpush1.xpose.msra.mxu0 0.0
  %3883 = vmatprep.subr.mxu0 0.0
  %3884 = vmatpush1.xpose.msra.mxu0 0.0
  %3885 = vmatprep.subr.mxu0 0.0
  %3886 = vmatpush1.xpose.msra.mxu0 0.0
  %3887 = vmatprep.subr.mxu0 0.0
  %3888 = vmatpush1.xpose.msra.mxu0 0.0
  %3889 = vmatprep.subr.mxu0 0.0
  %3890 = vmatpush1.xpose.msra.mxu0 0.0
  %3891 = vmatprep.subr.mxu0 0.0
  %3892 = vmatpush1.xpose.msra.mxu0 0.0
  %3893 = vmatprep.subr.mxu0 0.0
  %3894 = vmatpush1.xpose.msra.mxu0 0.0
  %3895 = vmatprep.subr.mxu0 0.0
  %3896 = vmatpush1.xpose.msra.mxu0 0.0
  %3897 = vmatprep.subr.mxu0 0.0
  %3898 = vmatpush1.xpose.msra.mxu0 0.0
  %3899 = vmatprep.subr.mxu0 0.0
  %3900 = vmatpush1.xpose.msra.mxu0 0.0
  %3901 = vmatprep.subr.mxu0 0.0
  %3902 = vmatpush1.xpose.msra.mxu0 0.0
  %3903 = vmatprep.subr.mxu0 0.0
  %3904 = vmatpush1.xpose.msra.mxu0 0.0
  %3905 = vmatprep.subr.mxu0 0.0
  %3906 = vmatpush1.xpose.msra.mxu0 0.0
  %3907 = vmatprep.subr.mxu0 0.0
  %3908 = vmatpush1.xpose.msra.mxu0 0.0
  %3909 = vmatprep.subr.mxu0 0.0
  %3910 = vmatpush1.xpose.msra.mxu0 0.0
  %3911 = vmatprep.subr.mxu0 0.0
  %3912 = vmatpush1.xpose.msra.mxu0 0.0
  %3913 = vmatprep.subr.mxu0 0.0
  %3914 = vmatpush1.xpose.msra.mxu0 0.0
  %3915 = vmatprep.subr.mxu0 0.0
  %3916 = vmatpush1.xpose.msra.mxu0 0.0
  %3917 = vmatprep.subr.mxu0 0.0
  %3918 = vmatpush1.xpose.msra.mxu0 0.0
  %3919 = vmatprep.subr.mxu0 0.0
  %3920 = vmatpush1.xpose.msra.mxu0 0.0
  %3921 = vmatprep.subr.mxu0 0.0
  %3922 = vmatpush1.xpose.msra.mxu0 0.0
  %3923 = vmatprep.subr.mxu0 0.0
  %3924 = vmatpush1.xpose.msra.mxu0 0.0
  %3925 = vmatprep.subr.mxu0 0.0
  %3926 = vmatpush1.xpose.msra.mxu0 0.0
  %3927 = vmatprep.subr.mxu0 0.0
  %3928 = vmatpush1.xpose.msra.mxu0 0.0
  %3929 = vmatprep.subr.mxu0 0.0
  %3930 = vmatpush1.xpose.msra.mxu0 0.0
  %3931 = vmatprep.subr.mxu0 0.0
  %3932 = vmatpush1.xpose.msra.mxu0 0.0
  %3933 = vmatprep.mubr.f32.mxu0 0.0
  %3934 = vmatmul.mubr.f32.gmra.mrb[0].mxu0 %v3861
  %v3935 = vpop.f32.mrb[0].mxu0
  %v3936 = vadd.f32 %v3433, %v3935
  %v3937 = vpop.f32.mrb[0].mxu0
  %3938 = vmatprep.mubr.f32.mxu0 0.0
  %3939 = vmatmul.mubr.f32.gmra.mrb[0].mxu0 %v3863
  %v3940 = vpop.f32.mrb[0].mxu0
  %v3941 = vadd.f32 %v3434, %v3940
  %v3942 = vpop.f32.mrb[0].mxu0
  %3943 = vdwg.mxu0
  %v3944 = vsel %vm454, %v3936, -inf
  %3945 = vmax.xlane.f32.xlu0 %v3944
  %v3946 = vpop.xlane.xlu0 %3945
  %v3947 = vsel %vm458, %v3941, -inf
  %3948 = vmax.xlane.f32.xlu0 %v3947
  %v3949 = vpop.xlane.xlu0 %3948
  %v3950 = vsub.f32 %v3936, %v3946
  %v3951 = vsub.f32 %v3941, %v3949
  %v3952 = vmul.f32 %v3950, 1.442695
  %v3953 = vpow.pop %v3952
  %v3954 = vmul.f32 %v3951, 1.442695
  %v3955 = vpow.pop %v3954
  %v3956 = vsel %vm454, %v3953, 0.0
  %3957 = vadd.xlane.f32.xlu0 %v3956
  %v3958 = vpop.xlane.xlu0 %3957
  %v3959 = vsel %vm458, %v3955, 0.0
  %3960 = vadd.xlane.f32.xlu0 %v3959
  %v3961 = vpop.xlane.xlu0 %3960
  %3962 = vrot.lane.b32.xlu0 %v3442, 48
  %v3963 = vpop.permute.xlu0 %3962
  %3964 = vrot.lane.b32.xlu0 %v3441, 48
  %v3965 = vpop.permute.xlu0 %3964
  %v3968 = vsel %vm454, %v3953, 0
  %v3971 = vsel %vm454, %v3955, 0
  %v3973 = vsel %vm485, %v3965, 0
  %3975 = vmatprep.subr.mxu0 0.0
  %3976 = vmatpush1.msra.mxu0 %v3963
  %3977 = vmatprep.subr.mxu0 0.0
  %3978 = vmatpush1.msra.mxu0 %v3973
  %3979 = vmatprep.subr.mxu0 0.0
  %3980 = vmatpush1.msra.mxu0 0.0
  %3981 = vmatprep.subr.mxu0 0.0
  %3982 = vmatpush1.msra.mxu0 0.0
  %3983 = vmatprep.subr.mxu0 0.0
  %3984 = vmatpush1.msra.mxu0 0.0
  %3985 = vmatprep.subr.mxu0 0.0
  %3986 = vmatpush1.msra.mxu0 0.0
  %3987 = vmatprep.subr.mxu0 0.0
  %3988 = vmatpush1.msra.mxu0 0.0
  %3989 = vmatprep.subr.mxu0 0.0
  %3990 = vmatpush1.msra.mxu0 0.0
  %3991 = vmatprep.subr.mxu0 0.0
  %3992 = vmatpush1.msra.mxu0 0.0
  %3993 = vmatprep.subr.mxu0 0.0
  %3994 = vmatpush1.msra.mxu0 0.0
  %3995 = vmatprep.subr.mxu0 0.0
  %3996 = vmatpush1.msra.mxu0 0.0
  %3997 = vmatprep.subr.mxu0 0.0
  %3998 = vmatpush1.msra.mxu0 0.0
  %3999 = vmatprep.subr.mxu0 0.0
  %4000 = vmatpush1.msra.mxu0 0.0
  %4001 = vmatprep.subr.mxu0 0.0
  %4002 = vmatpush1.msra.mxu0 0.0
  %4003 = vmatprep.subr.mxu0 0.0
  %4004 = vmatpush1.msra.mxu0 0.0
  %4005 = vmatprep.subr.mxu0 0.0
  %4006 = vmatpush1.msra.mxu0 0.0
  %4007 = vmatprep.subr.mxu0 0.0
  %4008 = vmatpush1.msra.mxu0 0.0
  %4009 = vmatprep.subr.mxu0 0.0
  %4010 = vmatpush1.msra.mxu0 0.0
  %4011 = vmatprep.subr.mxu0 0.0
  %4012 = vmatpush1.msra.mxu0 0.0
  %4013 = vmatprep.subr.mxu0 0.0
  %4014 = vmatpush1.msra.mxu0 0.0
  %4015 = vmatprep.subr.mxu0 0.0
  %4016 = vmatpush1.msra.mxu0 0.0
  %4017 = vmatprep.subr.mxu0 0.0
  %4018 = vmatpush1.msra.mxu0 0.0
  %4019 = vmatprep.subr.mxu0 0.0
  %4020 = vmatpush1.msra.mxu0 0.0
  %4021 = vmatprep.subr.mxu0 0.0
  %4022 = vmatpush1.msra.mxu0 0.0
  %4023 = vmatprep.subr.mxu0 0.0
  %4024 = vmatpush1.msra.mxu0 0.0
  %4025 = vmatprep.subr.mxu0 0.0
  %4026 = vmatpush1.msra.mxu0 0.0
  %4027 = vmatprep.subr.mxu0 0.0
  %4028 = vmatpush1.msra.mxu0 0.0
  %4029 = vmatprep.subr.mxu0 0.0
  %4030 = vmatpush1.msra.mxu0 0.0
  %4031 = vmatprep.subr.mxu0 0.0
  %4032 = vmatpush1.msra.mxu0 0.0
  %4033 = vmatprep.subr.mxu0 0.0
  %4034 = vmatpush1.msra.mxu0 0.0
  %4035 = vmatprep.subr.mxu0 0.0
  %4036 = vmatpush1.msra.mxu0 0.0
  %4037 = vmatprep.subr.mxu0 0.0
  %4038 = vmatpush1.msra.mxu0 0.0
  %4039 = vmatprep.mubr.f32.mxu0 0.0
  %4040 = vmatmul.mubr.f32.gmra.mrb[0].mxu0 %v3968
  %v4041 = vpop.f32.mrb[0].mxu0
  %v4042 = vadd.f32 0.0, %v4041
  %v4043 = vpop.f32.mrb[0].mxu0
  %4044 = vmatprep.mubr.f32.mxu0 0.0
  %4045 = vmatmul.mubr.f32.gmra.mrb[0].mxu0 %v3971
  %v4046 = vpop.f32.mrb[0].mxu0
  %v4047 = vadd.f32 0.0, %v4046
  %v4048 = vpop.f32.mrb[0].mxu0
  %4049 = vdwg.mxu0
  %v4050 = vrcp.pop %v3958
  %v4051 = vrcp.pop %v3961
  %v4052 = vmul.f32 %v4042, %v4050
  %v4053 = vmul.f32 %v4047, %v4051
  %4056 = vrot.lane.b32.xlu0 %v4052, 16
  %v4057 = vpop.permute.xlu0 %4056
  %4058 = vrot.lane.b32.xlu0 %v4053, 16
  %v4059 = vpop.permute.xlu0 %4058
  %4062 = vst.msk [vmem:[#allocation2 + $0x9] sm:$0xff] %vm992, %v4057
  %4063 = vst.msk [vmem:[#allocation2 + $0x11] sm:$0x1] %vm994, %v4059
  %4064 = vrot.lane.b32.xlu0 %v3438, 104
  %v4065 = vpop.permute.xlu0 %4064
  %4066 = vrot.lane.b32.xlu0 %v3437, 104
  %v4067 = vpop.permute.xlu0 %4066
  %4068 = vrot.lane.b32.xlu0 %v3442, 72
  %v4069 = vpop.permute.xlu0 %4068
  %4070 = vrot.lane.b32.xlu0 %v3441, 72
  %v4071 = vpop.permute.xlu0 %4070
  %v4072 = vsel %vm368, %v4065, 0
  %v4074 = vsel %vm368, %v4067, 0
  %v4076 = vsel %vm368, %v4069, 0
  %v4078 = vsel %vm368, %v4071, 0
  %4080 = vmatprep.subr.mxu0 0.0
  %4081 = vmatpush1.xpose.msra.mxu0 %v4076
  %4082 = vmatprep.subr.mxu0 0.0
  %4083 = vmatpush1.xpose.msra.mxu0 %v4078
  %4084 = vmatprep.subr.mxu0 0.0
  %4085 = vmatpush1.xpose.msra.mxu0 0.0
  %4086 = vmatprep.subr.mxu0 0.0
  %4087 = vmatpush1.xpose.msra.mxu0 0.0
  %4088 = vmatprep.subr.mxu0 0.0
  %4089 = vmatpush1.xpose.msra.mxu0 0.0
  %4090 = vmatprep.subr.mxu0 0.0
  %4091 = vmatpush1.xpose.msra.mxu0 0.0
  %4092 = vmatprep.subr.mxu0 0.0
  %4093 = vmatpush1.xpose.msra.mxu0 0.0
  %4094 = vmatprep.subr.mxu0 0.0
  %4095 = vmatpush1.xpose.msra.mxu0 0.0
  %4096 = vmatprep.subr.mxu0 0.0
  %4097 = vmatpush1.xpose.msra.mxu0 0.0
  %4098 = vmatprep.subr.mxu0 0.0
  %4099 = vmatpush1.xpose.msra.mxu0 0.0
  %4100 = vmatprep.subr.mxu0 0.0
  %4101 = vmatpush1.xpose.msra.mxu0 0.0
  %4102 = vmatprep.subr.mxu0 0.0
  %4103 = vmatpush1.xpose.msra.mxu0 0.0
  %4104 = vmatprep.subr.mxu0 0.0
  %4105 = vmatpush1.xpose.msra.mxu0 0.0
  %4106 = vmatprep.subr.mxu0 0.0
  %4107 = vmatpush1.xpose.msra.mxu0 0.0
  %4108 = vmatprep.subr.mxu0 0.0
  %4109 = vmatpush1.xpose.msra.mxu0 0.0
  %4110 = vmatprep.subr.mxu0 0.0
  %4111 = vmatpush1.xpose.msra.mxu0 0.0
  %4112 = vmatprep.subr.mxu0 0.0
  %4113 = vmatpush1.xpose.msra.mxu0 0.0
  %4114 = vmatprep.subr.mxu0 0.0
  %4115 = vmatpush1.xpose.msra.mxu0 0.0
  %4116 = vmatprep.subr.mxu0 0.0
  %4117 = vmatpush1.xpose.msra.mxu0 0.0
  %4118 = vmatprep.subr.mxu0 0.0
  %4119 = vmatpush1.xpose.msra.mxu0 0.0
  %4120 = vmatprep.subr.mxu0 0.0
  %4121 = vmatpush1.xpose.msra.mxu0 0.0
  %4122 = vmatprep.subr.mxu0 0.0
  %4123 = vmatpush1.xpose.msra.mxu0 0.0
  %4124 = vmatprep.subr.mxu0 0.0
  %4125 = vmatpush1.xpose.msra.mxu0 0.0
  %4126 = vmatprep.subr.mxu0 0.0
  %4127 = vmatpush1.xpose.msra.mxu0 0.0
  %4128 = vmatprep.subr.mxu0 0.0
  %4129 = vmatpush1.xpose.msra.mxu0 0.0
  %4130 = vmatprep.subr.mxu0 0.0
  %4131 = vmatpush1.xpose.msra.mxu0 0.0
  %4132 = vmatprep.subr.mxu0 0.0
  %4133 = vmatpush1.xpose.msra.mxu0 0.0
  %4134 = vmatprep.subr.mxu0 0.0
  %4135 = vmatpush1.xpose.msra.mxu0 0.0
  %4136 = vmatprep.subr.mxu0 0.0
  %4137 = vmatpush1.xpose.msra.mxu0 0.0
  %4138 = vmatprep.subr.mxu0 0.0
  %4139 = vmatpush1.xpose.msra.mxu0 0.0
  %4140 = vmatprep.subr.mxu0 0.0
  %4141 = vmatpush1.xpose.msra.mxu0 0.0
  %4142 = vmatprep.subr.mxu0 0.0
  %4143 = vmatpush1.xpose.msra.mxu0 0.0
  %4144 = vmatprep.mubr.f32.mxu0 0.0
  %4145 = vmatmul.mubr.f32.gmra.mrb[0].mxu0 %v4072
  %v4146 = vpop.f32.mrb[0].mxu0
  %v4147 = vadd.f32 %v3433, %v4146
  %v4148 = vpop.f32.mrb[0].mxu0
  %4149 = vmatprep.mubr.f32.mxu0 0.0
  %4150 = vmatmul.mubr.f32.gmra.mrb[0].mxu0 %v4074
  %v4151 = vpop.f32.mrb[0].mxu0
  %v4152 = vadd.f32 %v3434, %v4151
  %v4153 = vpop.f32.mrb[0].mxu0
  %4154 = vdwg.mxu0
  %v4155 = vsel %vm454, %v4147, -inf
  %4156 = vmax.xlane.f32.xlu0 %v4155
  %v4157 = vpop.xlane.xlu0 %4156
  %v4158 = vsel %vm458, %v4152, -inf
  %4159 = vmax.xlane.f32.xlu0 %v4158
  %v4160 = vpop.xlane.xlu0 %4159
  %v4161 = vsub.f32 %v4147, %v4157
  %v4162 = vsub.f32 %v4152, %v4160
  %v4163 = vmul.f32 %v4161, 1.442695
  %v4164 = vpow.pop %v4163
  %v4165 = vmul.f32 %v4162, 1.442695
  %v4166 = vpow.pop %v4165
  %v4167 = vsel %vm454, %v4164, 0.0
  %4168 = vadd.xlane.f32.xlu0 %v4167
  %v4169 = vpop.xlane.xlu0 %4168
  %v4170 = vsel %vm458, %v4166, 0.0
  %4171 = vadd.xlane.f32.xlu0 %v4170
  %v4172 = vpop.xlane.xlu0 %4171
  %4173 = vrot.lane.b32.xlu0 %v3442, 40
  %v4174 = vpop.permute.xlu0 %4173
  %4175 = vrot.lane.b32.xlu0 %v3441, 40
  %v4176 = vpop.permute.xlu0 %4175
  %v4179 = vsel %vm454, %v4164, 0
  %v4182 = vsel %vm454, %v4166, 0
  %v4184 = vsel %vm485, %v4176, 0
  %4186 = vmatprep.subr.mxu0 0.0
  %4187 = vmatpush1.msra.mxu0 %v4174
  %4188 = vmatprep.subr.mxu0 0.0
  %4189 = vmatpush1.msra.mxu0 %v4184
  %4190 = vmatprep.subr.mxu0 0.0
  %4191 = vmatpush1.msra.mxu0 0.0
  %4192 = vmatprep.subr.mxu0 0.0
  %4193 = vmatpush1.msra.mxu0 0.0
  %4194 = vmatprep.subr.mxu0 0.0
  %4195 = vmatpush1.msra.mxu0 0.0
  %4196 = vmatprep.subr.mxu0 0.0
  %4197 = vmatpush1.msra.mxu0 0.0
  %4198 = vmatprep.subr.mxu0 0.0
  %4199 = vmatpush1.msra.mxu0 0.0
  %4200 = vmatprep.subr.mxu0 0.0
  %4201 = vmatpush1.msra.mxu0 0.0
  %4202 = vmatprep.subr.mxu0 0.0
  %4203 = vmatpush1.msra.mxu0 0.0
  %4204 = vmatprep.subr.mxu0 0.0
  %4205 = vmatpush1.msra.mxu0 0.0
  %4206 = vmatprep.subr.mxu0 0.0
  %4207 = vmatpush1.msra.mxu0 0.0
  %4208 = vmatprep.subr.mxu0 0.0
  %4209 = vmatpush1.msra.mxu0 0.0
  %4210 = vmatprep.subr.mxu0 0.0
  %4211 = vmatpush1.msra.mxu0 0.0
  %4212 = vmatprep.subr.mxu0 0.0
  %4213 = vmatpush1.msra.mxu0 0.0
  %4214 = vmatprep.subr.mxu0 0.0
  %4215 = vmatpush1.msra.mxu0 0.0
  %4216 = vmatprep.subr.mxu0 0.0
  %4217 = vmatpush1.msra.mxu0 0.0
  %4218 = vmatprep.subr.mxu0 0.0
  %4219 = vmatpush1.msra.mxu0 0.0
  %4220 = vmatprep.subr.mxu0 0.0
  %4221 = vmatpush1.msra.mxu0 0.0
  %4222 = vmatprep.subr.mxu0 0.0
  %4223 = vmatpush1.msra.mxu0 0.0
  %4224 = vmatprep.subr.mxu0 0.0
  %4225 = vmatpush1.msra.mxu0 0.0
  %4226 = vmatprep.subr.mxu0 0.0
  %4227 = vmatpush1.msra.mxu0 0.0
  %4228 = vmatprep.subr.mxu0 0.0
  %4229 = vmatpush1.msra.mxu0 0.0
  %4230 = vmatprep.subr.mxu0 0.0
  %4231 = vmatpush1.msra.mxu0 0.0
  %4232 = vmatprep.subr.mxu0 0.0
  %4233 = vmatpush1.msra.mxu0 0.0
  %4234 = vmatprep.subr.mxu0 0.0
  %4235 = vmatpush1.msra.mxu0 0.0
  %4236 = vmatprep.subr.mxu0 0.0
  %4237 = vmatpush1.msra.mxu0 0.0
  %4238 = vmatprep.subr.mxu0 0.0
  %4239 = vmatpush1.msra.mxu0 0.0
  %4240 = vmatprep.subr.mxu0 0.0
  %4241 = vmatpush1.msra.mxu0 0.0
  %4242 = vmatprep.subr.mxu0 0.0
  %4243 = vmatpush1.msra.mxu0 0.0
  %4244 = vmatprep.subr.mxu0 0.0
  %4245 = vmatpush1.msra.mxu0 0.0
  %4246 = vmatprep.subr.mxu0 0.0
  %4247 = vmatpush1.msra.mxu0 0.0
  %4248 = vmatprep.subr.mxu0 0.0
  %4249 = vmatpush1.msra.mxu0 0.0
  %4250 = vmatprep.mubr.f32.mxu0 0.0
  %4251 = vmatmul.mubr.f32.gmra.mrb[0].mxu0 %v4179
  %v4252 = vpop.f32.mrb[0].mxu0
  %v4253 = vadd.f32 0.0, %v4252
  %v4254 = vpop.f32.mrb[0].mxu0
  %4255 = vmatprep.mubr.f32.mxu0 0.0
  %4256 = vmatmul.mubr.f32.gmra.mrb[0].mxu0 %v4182
  %v4257 = vpop.f32.mrb[0].mxu0
  %v4258 = vadd.f32 0.0, %v4257
  %v4259 = vpop.f32.mrb[0].mxu0
  %4260 = vdwg.mxu0
  %v4261 = vrcp.pop %v4169
  %v4262 = vrcp.pop %v4172
  %v4263 = vmul.f32 %v4253, %v4261
  %v4264 = vmul.f32 %v4258, %v4262
  %4267 = vrot.lane.b32.xlu0 %v4263, 24
  %v4268 = vpop.permute.xlu0 %4267
  %4269 = vrot.lane.b32.xlu0 %v4264, 24
  %v4270 = vpop.permute.xlu0 %4269
  %4273 = vst.msk [vmem:[#allocation2 + $0x9] sm:$0xff] %vm1205, %v4268
  %4274 = vst.msk [vmem:[#allocation2 + $0x11] sm:$0x1] %vm1207, %v4270
  %v4275 = vld [vmem:[#allocation2] sm:$0xff]
  %v4276 = vld [vmem:[#allocation2 + $0x8] sm:$0xff]
  %v4277 = vld [vmem:[#allocation2 + $0x10] sm:$0x3]
  %s4278 = scalar_lea.vmem %s8, 32
  %v4279 = vld [vmem:[%s4278] sm:$0xff]
  %v4280 = vld [vmem:[%s4278 + $0x8] sm:$0xff]
  %v4281 = vld [vmem:[%s4278 + $0x10] sm:$0xff]
  %v4282 = vld [vmem:[%s4278 + $0x18] sm:$0xff]
  %s4283 = scalar_lea.vmem %s9, 1
  %v4284 = vld [vmem:[%s4283] sm:$0x1]
  %v4286 = vlaneseq
  %v4287 = vshrl.u32 %v4286, 7
  %v4288 = vsub.s32 0, %v4287
  %v4289 = vrot.slane %v4284, %v4288
  %v4292 = vsel %vm267, %v4275, 0
  %v4295 = vsel %vm267, %v4276, 0
  %v4298 = vsel %vm267, %v4277, 0
  %4300 = vmatprep.subr.mxu0 0.0
  %4301 = vmatpush1.msra.mxu0 %v4279
  %4302 = vmatprep.subr.mxu0 0.0
  %4303 = vmatpush1.msra.mxu0 %v4280
  %4304 = vmatprep.subr.mxu0 0.0
  %4305 = vmatpush1.msra.mxu0 %v4281
  %4306 = vmatprep.subr.mxu0 0.0
  %4307 = vmatpush1.msra.mxu0 %v4282
  %4308 = vmatprep.subr.mxu0 0.0
  %4309 = vmatpush1.msra.mxu0 0.0
  %4310 = vmatprep.subr.mxu0 0.0
  %4311 = vmatpush1.msra.mxu0 0.0
  %4312 = vmatprep.subr.mxu0 0.0
  %4313 = vmatpush1.msra.mxu0 0.0
  %4314 = vmatprep.subr.mxu0 0.0
  %4315 = vmatpush1.msra.mxu0 0.0
  %4316 = vmatprep.subr.mxu0 0.0
  %4317 = vmatpush1.msra.mxu0 0.0
  %4318 = vmatprep.subr.mxu0 0.0
  %4319 = vmatpush1.msra.mxu0 0.0
  %4320 = vmatprep.subr.mxu0 0.0
  %4321 = vmatpush1.msra.mxu0 0.0
  %4322 = vmatprep.subr.mxu0 0.0
  %4323 = vmatpush1.msra.mxu0 0.0
  %4324 = vmatprep.subr.mxu0 0.0
  %4325 = vmatpush1.msra.mxu0 0.0
  %4326 = vmatprep.subr.mxu0 0.0
  %4327 = vmatpush1.msra.mxu0 0.0
  %4328 = vmatprep.subr.mxu0 0.0
  %4329 = vmatpush1.msra.mxu0 0.0
  %4330 = vmatprep.subr.mxu0 0.0
  %4331 = vmatpush1.msra.mxu0 0.0
  %4332 = vmatprep.subr.mxu0 0.0
  %4333 = vmatpush1.msra.mxu0 0.0
  %4334 = vmatprep.subr.mxu0 0.0
  %4335 = vmatpush1.msra.mxu0 0.0
  %4336 = vmatprep.subr.mxu0 0.0
  %4337 = vmatpush1.msra.mxu0 0.0
  %4338 = vmatprep.subr.mxu0 0.0
  %4339 = vmatpush1.msra.mxu0 0.0
  %4340 = vmatprep.subr.mxu0 0.0
  %4341 = vmatpush1.msra.mxu0 0.0
  %4342 = vmatprep.subr.mxu0 0.0
  %4343 = vmatpush1.msra.mxu0 0.0
  %4344 = vmatprep.subr.mxu0 0.0
  %4345 = vmatpush1.msra.mxu0 0.0
  %4346 = vmatprep.subr.mxu0 0.0
  %4347 = vmatpush1.msra.mxu0 0.0
  %4348 = vmatprep.subr.mxu0 0.0
  %4349 = vmatpush1.msra.mxu0 0.0
  %4350 = vmatprep.subr.mxu0 0.0
  %4351 = vmatpush1.msra.mxu0 0.0
  %4352 = vmatprep.subr.mxu0 0.0
  %4353 = vmatpush1.msra.mxu0 0.0
  %4354 = vmatprep.subr.mxu0 0.0
  %4355 = vmatpush1.msra.mxu0 0.0
  %4356 = vmatprep.subr.mxu0 0.0
  %4357 = vmatpush1.msra.mxu0 0.0
  %4358 = vmatprep.subr.mxu0 0.0
  %4359 = vmatpush1.msra.mxu0 0.0
  %4360 = vmatprep.subr.mxu0 0.0
  %4361 = vmatpush1.msra.mxu0 0.0
  %4362 = vmatprep.subr.mxu0 0.0
  %4363 = vmatpush1.msra.mxu0 0.0
  %4364 = vmatprep.mubr.f32.mxu0 0.0
  %4365 = vmatmul.mubr.f32.gmra.mrb[0].mxu0 %v4292
  %v4366 = vpop.f32.mrb[0].mxu0
  %v4367 = vadd.f32 %v4289, %v4366
  %v4368 = vpop.f32.mrb[0].mxu0
  %4369 = vmatprep.mubr.f32.mxu0 0.0
  %4370 = vmatmul.mubr.f32.gmra.mrb[0].mxu0 %v4295
  %v4371 = vpop.f32.mrb[0].mxu0
  %v4372 = vadd.f32 %v4289, %v4371
  %v4373 = vpop.f32.mrb[0].mxu0
  %4374 = vmatprep.mubr.f32.mxu0 0.0
  %4375 = vmatmul.mubr.f32.gmra.mrb[0].mxu0 %v4298
  %v4376 = vpop.f32.mrb[0].mxu0
  %v4377 = vadd.f32 %v4289, %v4376
  %v4378 = vpop.f32.mrb[0].mxu0
  %4379 = vdwg.mxu0
  %v4380 = vadd.f32 %v2487, %v4367
  %v4381 = vadd.f32 %v2488, %v4372
  %v4382 = vadd.f32 %v2489, %v4377
  %s4383 = scalar_lea.vmem %s14, 1
  %v4384 = vld [vmem:[%s4383] sm:$0x1]
  %s4385 = scalar_lea.vmem %s15, 1
  %v4386 = vld [vmem:[%s4385] sm:$0x1]
  %v4387 = vsel %vm267, %v4380, 0.0
  %4388 = vadd.xlane.f32.xlu0 %v4387
  %v4389 = vpop.xlane.xlu0 %4388
  %v4390 = vsel %vm267, %v4381, 0.0
  %4391 = vadd.xlane.f32.xlu0 %v4390
  %v4392 = vpop.xlane.xlu0 %4391
  %v4393 = vsel %vm2167, %v4382, 0.0
  %4394 = vadd.xlane.f32.xlu0 %v4393
  %v4395 = vpop.xlane.xlu0 %4394
  %v4396 = vmul.f32 %v4389, %v2171
  %v4397 = vmul.f32 %v4392, %v2171
  %v4398 = vmul.f32 %v4395, %v2171
  %v4399 = vsub.f32 %v4380, %v4396
  %v4400 = vsub.f32 %v4381, %v4397
  %v4401 = vsub.f32 %v4382, %v4398
  %v4402 = vmul.f32 %v4399, %v4399
  %v4403 = vmul.f32 %v4400, %v4400
  %v4404 = vmul.f32 %v4401, %v4401
  %v4405 = vsel %vm267, %v4402, 0.0
  %4406 = vadd.xlane.f32.xlu0 %v4405
  %v4407 = vpop.xlane.xlu0 %4406
  %v4408 = vsel %vm267, %v4403, 0.0
  %4409 = vadd.xlane.f32.xlu0 %v4408
  %v4410 = vpop.xlane.xlu0 %4409
  %v4411 = vsel %vm2167, %v4404, 0.0
  %4412 = vadd.xlane.f32.xlu0 %v4411
  %v4413 = vpop.xlane.xlu0 %4412
  %v4414 = vmul.f32 %v4407, %v2171
  %v4415 = vmul.f32 %v4410, %v2171
  %v4416 = vmul.f32 %v4413, %v2171
  %v4417 = vadd.f32 %v4414, 1e-05
  %v4418 = vadd.f32 %v4415, 1e-05
  %v4419 = vadd.f32 %v4416, 1e-05
  %v4420 = vrsqrt.pop %v4417
  %v4421 = vrsqrt.pop %v4418
  %v4422 = vrsqrt.pop %v4419
  %v4423 = vmul.f32 %v4399, %v4420
  %v4424 = vmul.f32 %v4400, %v4421
  %v4425 = vmul.f32 %v4401, %v4422
  %v4427 = vlaneseq
  %v4428 = vshrl.u32 %v4427, 7
  %v4429 = vsub.s32 0, %v4428
  %v4430 = vrot.slane %v4384, %v4429
  %v4432 = vmul.f32 %v4423, %v4430
  %v4433 = vmul.f32 %v4424, %v4430
  %v4434 = vmul.f32 %v4425, %v4430
  %v4436 = vlaneseq
  %v4437 = vshrl.u32 %v4436, 7
  %v4438 = vsub.s32 0, %v4437
  %v4439 = vrot.slane %v4386, %v4438
  %v4441 = vadd.f32 %v4432, %v4439
  %v4442 = vadd.f32 %v4433, %v4439
  %v4443 = vadd.f32 %v4434, %v4439
  %s4444 = scalar_lea.vmem %s10, 32
  %v4445 = vld [vmem:[%s4444] sm:$0xff]
  %v4446 = vld [vmem:[%s4444 + $0x8] sm:$0xff]
  %v4447 = vld [vmem:[%s4444 + $0x10] sm:$0xff]
  %v4448 = vld [vmem:[%s4444 + $0x18] sm:$0xff]
  %s4449 = scalar_lea.vmem %s11, 1
  %v4450 = vld [vmem:[%s4449] sm:$0x1]
  %v4452 = vlaneseq
  %v4453 = vshrl.u32 %v4452, 7
  %v4454 = vsub.s32 0, %v4453
  %v4455 = vrot.slane %v4450, %v4454
  %v4458 = vsel %vm267, %v4441, 0
  %v4461 = vsel %vm267, %v4442, 0
  %v4464 = vsel %vm267, %v4443, 0
  %4466 = vmatprep.subr.mxu0 0.0
  %4467 = vmatpush1.msra.mxu0 %v4445
  %4468 = vmatprep.subr.mxu0 0.0
  %4469 = vmatpush1.msra.mxu0 %v4446
  %4470 = vmatprep.subr.mxu0 0.0
  %4471 = vmatpush1.msra.mxu0 %v4447
  %4472 = vmatprep.subr.mxu0 0.0
  %4473 = vmatpush1.msra.mxu0 %v4448
  %4474 = vmatprep.subr.mxu0 0.0
  %4475 = vmatpush1.msra.mxu0 0.0
  %4476 = vmatprep.subr.mxu0 0.0
  %4477 = vmatpush1.msra.mxu0 0.0
  %4478 = vmatprep.subr.mxu0 0.0
  %4479 = vmatpush1.msra.mxu0 0.0
  %4480 = vmatprep.subr.mxu0 0.0
  %4481 = vmatpush1.msra.mxu0 0.0
  %4482 = vmatprep.subr.mxu0 0.0
  %4483 = vmatpush1.msra.mxu0 0.0
  %4484 = vmatprep.subr.mxu0 0.0
  %4485 = vmatpush1.msra.mxu0 0.0
  %4486 = vmatprep.subr.mxu0 0.0
  %4487 = vmatpush1.msra.mxu0 0.0
  %4488 = vmatprep.subr.mxu0 0.0
  %4489 = vmatpush1.msra.mxu0 0.0
  %4490 = vmatprep.subr.mxu0 0.0
  %4491 = vmatpush1.msra.mxu0 0.0
  %4492 = vmatprep.subr.mxu0 0.0
  %4493 = vmatpush1.msra.mxu0 0.0
  %4494 = vmatprep.subr.mxu0 0.0
  %4495 = vmatpush1.msra.mxu0 0.0
  %4496 = vmatprep.subr.mxu0 0.0
  %4497 = vmatpush1.msra.mxu0 0.0
  %4498 = vmatprep.subr.mxu0 0.0
  %4499 = vmatpush1.msra.mxu0 0.0
  %4500 = vmatprep.subr.mxu0 0.0
  %4501 = vmatpush1.msra.mxu0 0.0
  %4502 = vmatprep.subr.mxu0 0.0
  %4503 = vmatpush1.msra.mxu0 0.0
  %4504 = vmatprep.subr.mxu0 0.0
  %4505 = vmatpush1.msra.mxu0 0.0
  %4506 = vmatprep.subr.mxu0 0.0
  %4507 = vmatpush1.msra.mxu0 0.0
  %4508 = vmatprep.subr.mxu0 0.0
  %4509 = vmatpush1.msra.mxu0 0.0
  %4510 = vmatprep.subr.mxu0 0.0
  %4511 = vmatpush1.msra.mxu0 0.0
  %4512 = vmatprep.subr.mxu0 0.0
  %4513 = vmatpush1.msra.mxu0 0.0
  %4514 = vmatprep.subr.mxu0 0.0
  %4515 = vmatpush1.msra.mxu0 0.0
  %4516 = vmatprep.subr.mxu0 0.0
  %4517 = vmatpush1.msra.mxu0 0.0
  %4518 = vmatprep.subr.mxu0 0.0
  %4519 = vmatpush1.msra.mxu0 0.0
  %4520 = vmatprep.subr.mxu0 0.0
  %4521 = vmatpush1.msra.mxu0 0.0
  %4522 = vmatprep.subr.mxu0 0.0
  %4523 = vmatpush1.msra.mxu0 0.0
  %4524 = vmatprep.subr.mxu0 0.0
  %4525 = vmatpush1.msra.mxu0 0.0
  %4526 = vmatprep.subr.mxu0 0.0
  %4527 = vmatpush1.msra.mxu0 0.0
  %4528 = vmatprep.subr.mxu0 0.0
  %4529 = vmatpush1.msra.mxu0 0.0
  %4530 = vmatprep.mubr.f32.mxu0 0.0
  %4531 = vmatmul.mubr.f32.gmra.mrb[0].mxu0 %v4458
  %v4532 = vpop.f32.mrb[0].mxu0
  %v4533 = vadd.f32 %v4455, %v4532
  %v4534 = vpop.f32.mrb[0].mxu0
  %4535 = vmatprep.mubr.f32.mxu0 0.0
  %4536 = vmatmul.mubr.f32.gmra.mrb[0].mxu0 %v4461
  %v4537 = vpop.f32.mrb[0].mxu0
  %v4538 = vadd.f32 %v4455, %v4537
  %v4539 = vpop.f32.mrb[0].mxu0
  %4540 = vmatprep.mubr.f32.mxu0 0.0
  %4541 = vmatmul.mubr.f32.gmra.mrb[0].mxu0 %v4464
  %v4542 = vpop.f32.mrb[0].mxu0
  %v4543 = vadd.f32 %v4455, %v4542
  %v4544 = vpop.f32.mrb[0].mxu0
  %4545 = vdwg.mxu0
  %v4546 = vmax.f32 %v4533, 0.0
  %v4547 = vmax.f32 %v4538, 0.0
  %v4548 = vmax.f32 %v4543, 0.0
  %s4549 = scalar_lea.vmem %s12, 64
  %v4550 = vld [vmem:[%s4549] sm:$0xff]
  %v4551 = vld [vmem:[%s4549 + $0x8] sm:$0xff]
  %v4552 = vld [vmem:[%s4549 + $0x10] sm:$0xff]
  %v4553 = vld [vmem:[%s4549 + $0x18] sm:$0xff]
  %v4554 = vld [vmem:[%s4549 + $0x20] sm:$0xff]
  %v4555 = vld [vmem:[%s4549 + $0x28] sm:$0xff]
  %v4556 = vld [vmem:[%s4549 + $0x30] sm:$0xff]
  %v4557 = vld [vmem:[%s4549 + $0x38] sm:$0xff]
  %s4558 = scalar_lea.vmem %s13, 1
  %v4559 = vld [vmem:[%s4558] sm:$0x1]
  %v4561 = vlaneseq
  %v4562 = vshrl.u32 %v4561, 7
  %v4563 = vsub.s32 0, %v4562
  %v4564 = vrot.slane %v4559, %v4563
  %v4567 = vsel %vm2338, %v4546, 0
  %v4570 = vsel %vm2338, %v4547, 0
  %v4573 = vsel %vm2338, %v4548, 0
  %4575 = vmatprep.subr.mxu0 0.0
  %4576 = vmatpush1.msra.mxu0 %v4550
  %4577 = vmatprep.subr.mxu0 0.0
  %4578 = vmatpush1.msra.mxu0 %v4551
  %4579 = vmatprep.subr.mxu0 0.0
  %4580 = vmatpush1.msra.mxu0 %v4552
  %4581 = vmatprep.subr.mxu0 0.0
  %4582 = vmatpush1.msra.mxu0 %v4553
  %4583 = vmatprep.subr.mxu0 0.0
  %4584 = vmatpush1.msra.mxu0 %v4554
  %4585 = vmatprep.subr.mxu0 0.0
  %4586 = vmatpush1.msra.mxu0 %v4555
  %4587 = vmatprep.subr.mxu0 0.0
  %4588 = vmatpush1.msra.mxu0 %v4556
  %4589 = vmatprep.subr.mxu0 0.0
  %4590 = vmatpush1.msra.mxu0 %v4557
  %4591 = vmatprep.subr.mxu0 0.0
  %4592 = vmatpush1.msra.mxu0 0.0
  %4593 = vmatprep.subr.mxu0 0.0
  %4594 = vmatpush1.msra.mxu0 0.0
  %4595 = vmatprep.subr.mxu0 0.0
  %4596 = vmatpush1.msra.mxu0 0.0
  %4597 = vmatprep.subr.mxu0 0.0
  %4598 = vmatpush1.msra.mxu0 0.0
  %4599 = vmatprep.subr.mxu0 0.0
  %4600 = vmatpush1.msra.mxu0 0.0
  %4601 = vmatprep.subr.mxu0 0.0
  %4602 = vmatpush1.msra.mxu0 0.0
  %4603 = vmatprep.subr.mxu0 0.0
  %4604 = vmatpush1.msra.mxu0 0.0
  %4605 = vmatprep.subr.mxu0 0.0
  %4606 = vmatpush1.msra.mxu0 0.0
  %4607 = vmatprep.subr.mxu0 0.0
  %4608 = vmatpush1.msra.mxu0 0.0
  %4609 = vmatprep.subr.mxu0 0.0
  %4610 = vmatpush1.msra.mxu0 0.0
  %4611 = vmatprep.subr.mxu0 0.0
  %4612 = vmatpush1.msra.mxu0 0.0
  %4613 = vmatprep.subr.mxu0 0.0
  %4614 = vmatpush1.msra.mxu0 0.0
  %4615 = vmatprep.subr.mxu0 0.0
  %4616 = vmatpush1.msra.mxu0 0.0
  %4617 = vmatprep.subr.mxu0 0.0
  %4618 = vmatpush1.msra.mxu0 0.0
  %4619 = vmatprep.subr.mxu0 0.0
  %4620 = vmatpush1.msra.mxu0 0.0
  %4621 = vmatprep.subr.mxu0 0.0
  %4622 = vmatpush1.msra.mxu0 0.0
  %4623 = vmatprep.subr.mxu0 0.0
  %4624 = vmatpush1.msra.mxu0 0.0
  %4625 = vmatprep.subr.mxu0 0.0
  %4626 = vmatpush1.msra.mxu0 0.0
  %4627 = vmatprep.subr.mxu0 0.0
  %4628 = vmatpush1.msra.mxu0 0.0
  %4629 = vmatprep.subr.mxu0 0.0
  %4630 = vmatpush1.msra.mxu0 0.0
  %4631 = vmatprep.subr.mxu0 0.0
  %4632 = vmatpush1.msra.mxu0 0.0
  %4633 = vmatprep.subr.mxu0 0.0
  %4634 = vmatpush1.msra.mxu0 0.0
  %4635 = vmatprep.subr.mxu0 0.0
  %4636 = vmatpush1.msra.mxu0 0.0
  %4637 = vmatprep.subr.mxu0 0.0
  %4638 = vmatpush1.msra.mxu0 0.0
  %4639 = vmatprep.mubr.f32.mxu0 0.0
  %4640 = vmatmul.mubr.f32.gmra.mrb[0].mxu0 %v4567
  %v4641 = vpop.f32.mrb[0].mxu0
  %v4642 = vadd.f32 %v4564, %v4641
  %v4643 = vpop.f32.mrb[0].mxu0
  %4644 = vmatprep.mubr.f32.mxu0 0.0
  %4645 = vmatmul.mubr.f32.gmra.mrb[0].mxu0 %v4570
  %v4646 = vpop.f32.mrb[0].mxu0
  %v4647 = vadd.f32 %v4564, %v4646
  %v4648 = vpop.f32.mrb[0].mxu0
  %4649 = vmatprep.mubr.f32.mxu0 0.0
  %4650 = vmatmul.mubr.f32.gmra.mrb[0].mxu0 %v4573
  %v4651 = vpop.f32.mrb[0].mxu0
  %v4652 = vadd.f32 %v4564, %v4651
  %v4653 = vpop.f32.mrb[0].mxu0
  %4654 = vdwg.mxu0
  %v4655 = vadd.f32 %v4441, %v4642
  %v4656 = vadd.f32 %v4442, %v4647
  %v4657 = vadd.f32 %v4443, %v4652
  %s4658 = scalar_lea.vmem %s16, 1
  %v4659 = vld [vmem:[%s4658] sm:$0x1]
  %s4660 = scalar_lea.vmem %s17, 1
  %v4661 = vld [vmem:[%s4660] sm:$0x1]
  %v4662 = vsel %vm267, %v4655, 0.0
  %4663 = vadd.xlane.f32.xlu0 %v4662
  %v4664 = vpop.xlane.xlu0 %4663
  %v4665 = vsel %vm267, %v4656, 0.0
  %4666 = vadd.xlane.f32.xlu0 %v4665
  %v4667 = vpop.xlane.xlu0 %4666
  %v4668 = vsel %vm2167, %v4657, 0.0
  %4669 = vadd.xlane.f32.xlu0 %v4668
  %v4670 = vpop.xlane.xlu0 %4669
  %v4671 = vmul.f32 %v4664, %v2171
  %v4672 = vmul.f32 %v4667, %v2171
  %v4673 = vmul.f32 %v4670, %v2171
  %v4674 = vsub.f32 %v4655, %v4671
  %v4675 = vsub.f32 %v4656, %v4672
  %v4676 = vsub.f32 %v4657, %v4673
  %v4677 = vmul.f32 %v4674, %v4674
  %v4678 = vmul.f32 %v4675, %v4675
  %v4679 = vmul.f32 %v4676, %v4676
  %v4680 = vsel %vm267, %v4677, 0.0
  %4681 = vadd.xlane.f32.xlu0 %v4680
  %v4682 = vpop.xlane.xlu0 %4681
  %v4683 = vsel %vm267, %v4678, 0.0
  %4684 = vadd.xlane.f32.xlu0 %v4683
  %v4685 = vpop.xlane.xlu0 %4684
  %v4686 = vsel %vm2167, %v4679, 0.0
  %4687 = vadd.xlane.f32.xlu0 %v4686
  %v4688 = vpop.xlane.xlu0 %4687
  %v4689 = vmul.f32 %v4682, %v2171
  %v4690 = vmul.f32 %v4685, %v2171
  %v4691 = vmul.f32 %v4688, %v2171
  %v4692 = vadd.f32 %v4689, 1e-05
  %v4693 = vadd.f32 %v4690, 1e-05
  %v4694 = vadd.f32 %v4691, 1e-05
  %v4695 = vrsqrt.pop %v4692
  %v4696 = vrsqrt.pop %v4693
  %v4697 = vrsqrt.pop %v4694
  %v4698 = vmul.f32 %v4674, %v4695
  %v4699 = vmul.f32 %v4675, %v4696
  %v4700 = vmul.f32 %v4676, %v4697
  %v4702 = vlaneseq
  %v4703 = vshrl.u32 %v4702, 7
  %v4704 = vsub.s32 0, %v4703
  %v4705 = vrot.slane %v4659, %v4704
  %v4707 = vmul.f32 %v4698, %v4705
  %v4708 = vmul.f32 %v4699, %v4705
  %v4709 = vmul.f32 %v4700, %v4705
  %v4711 = vlaneseq
  %v4712 = vshrl.u32 %v4711, 7
  %v4713 = vsub.s32 0, %v4712
  %v4714 = vrot.slane %v4661, %v4713
  %v4716 = vadd.f32 %v4707, %v4714
  %v4717 = vadd.f32 %v4708, %v4714
  %v4718 = vadd.f32 %v4709, %v4714
  %v4719 = vld [vmem:[%s18] sm:$0xff]
  %v4720 = vld [vmem:[%s18 + $0x8] sm:$0xff]
  %v4721 = vld [vmem:[%s18 + $0x10] sm:$0xff]
  %v4722 = vld [vmem:[%s18 + $0x18] sm:$0xff]
  %v4723 = vld [vmem:[%s19] sm:$0x1]
  %v4725 = vlaneseq
  %v4726 = vshrl.u32 %v4725, 7
  %v4727 = vsub.s32 0, %v4726
  %v4728 = vrot.slane %v4723, %v4727
  %v4731 = vsel %vm267, %v4716, 0
  %v4734 = vsel %vm267, %v4717, 0
  %v4737 = vsel %vm267, %v4718, 0
  %4739 = vmatprep.subr.mxu0 0.0
  %4740 = vmatpush1.msra.mxu0 %v4719
  %4741 = vmatprep.subr.mxu0 0.0
  %4742 = vmatpush1.msra.mxu0 %v4720
  %4743 = vmatprep.subr.mxu0 0.0
  %4744 = vmatpush1.msra.mxu0 %v4721
  %4745 = vmatprep.subr.mxu0 0.0
  %4746 = vmatpush1.msra.mxu0 %v4722
  %4747 = vmatprep.subr.mxu0 0.0
  %4748 = vmatpush1.msra.mxu0 0.0
  %4749 = vmatprep.subr.mxu0 0.0
  %4750 = vmatpush1.msra.mxu0 0.0
  %4751 = vmatprep.subr.mxu0 0.0
  %4752 = vmatpush1.msra.mxu0 0.0
  %4753 = vmatprep.subr.mxu0 0.0
  %4754 = vmatpush1.msra.mxu0 0.0
  %4755 = vmatprep.subr.mxu0 0.0
  %4756 = vmatpush1.msra.mxu0 0.0
  %4757 = vmatprep.subr.mxu0 0.0
  %4758 = vmatpush1.msra.mxu0 0.0
  %4759 = vmatprep.subr.mxu0 0.0
  %4760 = vmatpush1.msra.mxu0 0.0
  %4761 = vmatprep.subr.mxu0 0.0
  %4762 = vmatpush1.msra.mxu0 0.0
  %4763 = vmatprep.subr.mxu0 0.0
  %4764 = vmatpush1.msra.mxu0 0.0
  %4765 = vmatprep.subr.mxu0 0.0
  %4766 = vmatpush1.msra.mxu0 0.0
  %4767 = vmatprep.subr.mxu0 0.0
  %4768 = vmatpush1.msra.mxu0 0.0
  %4769 = vmatprep.subr.mxu0 0.0
  %4770 = vmatpush1.msra.mxu0 0.0
  %4771 = vmatprep.subr.mxu0 0.0
  %4772 = vmatpush1.msra.mxu0 0.0
  %4773 = vmatprep.subr.mxu0 0.0
  %4774 = vmatpush1.msra.mxu0 0.0
  %4775 = vmatprep.subr.mxu0 0.0
  %4776 = vmatpush1.msra.mxu0 0.0
  %4777 = vmatprep.subr.mxu0 0.0
  %4778 = vmatpush1.msra.mxu0 0.0
  %4779 = vmatprep.subr.mxu0 0.0
  %4780 = vmatpush1.msra.mxu0 0.0
  %4781 = vmatprep.subr.mxu0 0.0
  %4782 = vmatpush1.msra.mxu0 0.0
  %4783 = vmatprep.subr.mxu0 0.0
  %4784 = vmatpush1.msra.mxu0 0.0
  %4785 = vmatprep.subr.mxu0 0.0
  %4786 = vmatpush1.msra.mxu0 0.0
  %4787 = vmatprep.subr.mxu0 0.0
  %4788 = vmatpush1.msra.mxu0 0.0
  %4789 = vmatprep.subr.mxu0 0.0
  %4790 = vmatpush1.msra.mxu0 0.0
  %4791 = vmatprep.subr.mxu0 0.0
  %4792 = vmatpush1.msra.mxu0 0.0
  %4793 = vmatprep.subr.mxu0 0.0
  %4794 = vmatpush1.msra.mxu0 0.0
  %4795 = vmatprep.subr.mxu0 0.0
  %4796 = vmatpush1.msra.mxu0 0.0
  %4797 = vmatprep.subr.mxu0 0.0
  %4798 = vmatpush1.msra.mxu0 0.0
  %4799 = vmatprep.subr.mxu0 0.0
  %4800 = vmatpush1.msra.mxu0 0.0
  %4801 = vmatprep.subr.mxu0 0.0
  %4802 = vmatpush1.msra.mxu0 0.0
  %4803 = vmatprep.mubr.f32.mxu0 0.0
  %4804 = vmatmul.mubr.f32.gmra.mrb[0].mxu0 %v4731
  %v4805 = vpop.f32.mrb[0].mxu0
  %v4806 = vadd.f32 %v4728, %v4805
  %v4807 = vpop.f32.mrb[0].mxu0
  %4808 = vmatprep.mubr.f32.mxu0 0.0
  %4809 = vmatmul.mubr.f32.gmra.mrb[0].mxu0 %v4734
  %v4810 = vpop.f32.mrb[0].mxu0
  %v4811 = vadd.f32 %v4728, %v4810
  %v4812 = vpop.f32.mrb[0].mxu0
  %4813 = vmatprep.mubr.f32.mxu0 0.0
  %4814 = vmatmul.mubr.f32.gmra.mrb[0].mxu0 %v4737
  %v4815 = vpop.f32.mrb[0].mxu0
  %v4816 = vadd.f32 %v4728, %v4815
  %v4817 = vpop.f32.mrb[0].mxu0
  %4818 = vdwg.mxu0
  %4819 = vst [vmem:[%s20] sm:$0xff] %v4806
  %4820 = vst [vmem:[%s20 + $0x8] sm:$0xff] %v4811
  %4821 = vst [vmem:[%s20 + $0x10] sm:$0x3] %v4816
  // Predicated region
  $region82: #{forward.1} parent=0 // pred_check
    _
  $region83: #{forward.1} parent=0 // pred_check_branch
    %4823 = sbr.rel (0) target = $region85
  $region84: #{forward.1} parent=0 // pred_region
    _
  $region85: #{forward.1} parent=0 // pred_fallthru
    _
  // Predicated region
  $region86: #{forward.1} parent=0 // pred_check
    _
  $region87: #{forward.1} parent=0 // pred_check_branch
    %4825 = sbr.rel (0) target = $region89
  $region88: #{forward.1} parent=0 // pred_region
    _
  $region89: #{forward.1} parent=0 // pred_fallthru
    _

</llo_original>
